<compile_context>
chip_gen: v5e
topology: v5e:2x2
jax: 0.10.0
libtpu: 0.0.40
codegen_flags: <defaults>
</compile_context>

<pallas_src>
import numpy as np

import jax
import jax.numpy as jnp
from jax.experimental import pallas as pl
from jax.experimental.pallas import tpu as pltpu

LM_DIM = 1024            # DistilProtBert hidden size
HIDDEN = 128             # hidden_dim
NUM_CLASSES = 8
NUM_RELATIONS = 3
NUM_RGCN_LAYERS = 2
NUM_HEADS = 4
HEAD_DIM = HIDDEN // NUM_HEADS
CLS_PAD = 128            # lane-dense padded classifier width
IGNORE_INDEX = -100
LN_EPS = 1e-5
VOCAB = 32
REL_W = NUM_RELATIONS * HIDDEN   # 384
NEG_INF = -1e30


# ----------------------------------------------------------------------------
# helpers
# ----------------------------------------------------------------------------
def _round_up(x, m):
    return ((x + m - 1) // m) * m


def _row_tiling(m):
    """Row tile (multiple of 16 for bf16 sublane packing) and padded row count."""
    if m >= 4096:
        tm = 512
    elif m >= 512:
        tm = 256
    elif m >= 32:
        tm = _round_up((m + 1) // 2, 16)     # >=2 row blocks -> both v7x cores
    else:
        tm = max(16, _round_up(m, 16))
    return tm, _round_up(m, tm)


def _k_tile(k3):
    """Reduction tile over the stacked (3*M) contraction dim."""
    if k3 <= 1536:
        return k3                             # single K step, still tiny VMEM
    if k3 % 1536 == 0:
        return 1536
    if k3 % 768 == 0:                         # m_pad is a multiple of 256 here
        return 768
    return k3 // NUM_RELATIONS                # == m_pad, always divides


def _seq_batching(b, s):
    """Sequences per attention-tail block so the MXU sees >=128-row matmuls."""
    tb = max(1, min(b, max(1, 256 // max(s, 1))))
    if b > 1 and tb >= b and (b // 2) * s >= 64:
        tb = b // 2                           # keep both v7x cores busy
    while (tb * s) % 8 != 0 and tb < b:
        tb += 1
    if (tb * s) % 8 != 0:
        tb = b                                # single block == full array: legal
    return tb, _round_up(b, tb)


def _cparams(semantics):
    return pltpu.CompilerParams(
        dimension_semantics=semantics,
        vmem_limit_bytes=48 * 1024 * 1024,
    )


def _const_spec(shape):
    # constant-index operand: never refetched, single-buffered (no VMEM waste)
    zeros = (0,) * len(shape)
    return pl.BlockSpec(shape, lambda *_: zeros, pipeline_mode=pl.Buffered(1))


# ----------------------------------------------------------------------------
# Pallas kernels
# ----------------------------------------------------------------------------
def _lm_transform_kernel(ids_ref, emb_ref, wlm_ref, blm_ref, g_ref, beta_ref,
                         wrel_ref, wroot_ref, brg_ref,
                         lm_ref, orel_ref, oroot_ref):
    # embedding gather (one-hot matmul, table resident) -> relu -> lm_head ->
    # relu -> LayerNorm = lm_output; plus the layer-1 RGCN feature transforms.
    ids = ids_ref[...]                                         # (tm, 1) int32
    tm = ids.shape[0]
    iota = jax.lax.broadcasted_iota(jnp.int32, (tm, VOCAB), 1)
    onehot = jnp.where(ids == iota, 1.0, 0.0).astype(jnp.bfloat16)
    x = jnp.dot(onehot, emb_ref[...], preferred_element_type=jnp.float32)
    x = jnp.maximum(x, 0.0).astype(jnp.bfloat16)               # relu(hidden state)
    y = jnp.dot(x, wlm_ref[...], preferred_element_type=jnp.float32) + blm_ref[...]
    y = jnp.maximum(y, 0.0)                                    # relu(lm_head)
    mu = jnp.mean(y, axis=-1, keepdims=True)
    var = jnp.mean(jnp.square(y - mu), axis=-1, keepdims=True)
    lm = (y - mu) * jax.lax.rsqrt(var + LN_EPS) * g_ref[...] + beta_ref[...]
    lm_ref[...] = lm.astype(lm_ref.dtype)
    lmb = lm.astype(jnp.bfloat16)
    rel = jnp.dot(lmb, wrel_ref[...], preferred_element_type=jnp.float32)  # (tm,384)
    for r in range(NUM_RELATIONS):                     # relation-major row slabs
        orel_ref[r] = rel[:, r * HIDDEN:(r + 1) * HIDDEN].astype(orel_ref.dtype)
    oroot_ref[...] = (jnp.dot(lmb, wroot_ref[...],
                              preferred_element_type=jnp.float32)
                      + brg_ref[...]).astype(oroot_ref.dtype)


def _agg_transform_kernel(a_ref, xwrel_ref, xwroot_ref,
                          wrel_ref, wroot_ref, b_ref,
                          orel_ref, oroot_ref, acc_ref):
    # h = relu(X W_root + b + A_stacked @ XW_stacked)  (K-tiled accumulation),
    # then the next layer's feature transforms.
    k = pl.program_id(1)

    @pl.when(k == 0)
    def _():
        acc_ref[...] = xwroot_ref[...]

    acc_ref[...] += jnp.dot(a_ref[...], xwrel_ref[...],
                            preferred_element_type=jnp.float32)

    @pl.when(k == pl.num_programs(1) - 1)
    def _():
        h = jnp.maximum(acc_ref[...], 0.0)
        hb = h.astype(jnp.bfloat16)
        rel = jnp.dot(hb, wrel_ref[...], preferred_element_type=jnp.float32)
        for r in range(NUM_RELATIONS):
            orel_ref[r] = rel[:, r * HIDDEN:(r + 1) * HIDDEN].astype(orel_ref.dtype)
        oroot_ref[...] = (jnp.dot(hb, wroot_ref[...],
                                  preferred_element_type=jnp.float32)
                          + b_ref[...]).astype(oroot_ref.dtype)


def _agg_fc_kernel(a_ref, xwrel_ref, xwroot_ref, wfc_ref, bfc_ref,
                   o_ref, acc_ref):
    # last RGCN layer aggregation (K-tiled) + relu + first attn_fc.
    k = pl.program_id(1)

    @pl.when(k == 0)
    def _():
        acc_ref[...] = xwroot_ref[...]

    acc_ref[...] += jnp.dot(a_ref[...], xwrel_ref[...],
                            preferred_element_type=jnp.float32)

    @pl.when(k == pl.num_programs(1) - 1)
    def _():
        h = jnp.maximum(acc_ref[...], 0.0)
        o_ref[...] = (jnp.dot(h.astype(jnp.bfloat16), wfc_ref[...],
                              preferred_element_type=jnp.float32)
                      + bfc_ref[...]).astype(o_ref.dtype)


def _attn_tail_kernel(qin_ref, lm_ref, bias_ref,
                      wq_ref, bq_ref, wk_ref, bk_ref, wv_ref, bv_ref,
                      wo_ref, bo_ref, wfc_ref, bfc_ref, wc_ref, bc_ref, o_ref):
    # Batched tail: per block of TB sequences do 4-head attention
    # (q = attn_fc(gcn), k = v = lm_output) with a block-diagonal mask, then
    # out_proj -> attn_fc -> + lm_output -> cls_head (lane-padded logits).
    qin = qin_ref[...]                       # (R, H) f32, attn_fc already applied
    lm = lm_ref[...]                         # (R, H) f32
    bias = bias_ref[...]                     # (R, R) additive block-diag mask
    qb = qin.astype(jnp.bfloat16)
    lb = lm.astype(jnp.bfloat16)
    rows = qin.shape[0]
    scale = 1.0 / (HEAD_DIM ** 0.5)
    ao = jnp.zeros((rows, HIDDEN), jnp.float32)
    for h in range(NUM_HEADS):
        lo, hi = h * HEAD_DIM, (h + 1) * HEAD_DIM
        # per-head Q/K/V from weight slices (no 32-lane activation slicing)
        qh = (jnp.dot(qb, wq_ref[:, lo:hi], preferred_element_type=jnp.float32)
              + bq_ref[:, lo:hi]) * scale
        kh = (jnp.dot(lb, wk_ref[:, lo:hi], preferred_element_type=jnp.float32)
              + bk_ref[:, lo:hi])
        vh = (jnp.dot(lb, wv_ref[:, lo:hi], preferred_element_type=jnp.float32)
              + bv_ref[:, lo:hi]).astype(jnp.bfloat16)
        s_mat = jax.lax.dot_general(
            qh.astype(jnp.bfloat16), kh.astype(jnp.bfloat16),
            (((1,), (1,)), ((), ())), preferred_element_type=jnp.float32)
        s_mat = s_mat + bias
        s_mat = s_mat - jnp.max(s_mat, axis=-1, keepdims=True)
        e = jnp.exp(s_mat)
        p = e * pl.reciprocal(jnp.sum(e, axis=-1, keepdims=True), approx=True)
        ctx = jnp.dot(p.astype(jnp.bfloat16), vh,
                      preferred_element_type=jnp.float32)       # (R, 32)
        # out_proj of concatenated heads == sum_h ctx_h @ Wo[h*Dh:(h+1)*Dh, :]
        ao = ao + jnp.dot(ctx.astype(jnp.bfloat16), wo_ref[lo:hi, :],
                          preferred_element_type=jnp.float32)
    ao = ao + bo_ref[...]
    o2 = jnp.dot(ao.astype(jnp.bfloat16), wfc_ref[...],
                 preferred_element_type=jnp.float32) + bfc_ref[...]
    res = o2 + lm                                               # residual
    logits = jnp.dot(res.astype(jnp.bfloat16), wc_ref[...],
                     preferred_element_type=jnp.float32) + bc_ref[...]
    o_ref[...] = logits.astype(o_ref.dtype)


# ----------------------------------------------------------------------------
# pallas_call wrappers
# ----------------------------------------------------------------------------
def lm_head_and_transform(ids2d, params, tm):
    m_pad = ids2d.shape[0]
    p_lm, p0 = params["lm"], params["rgcn"][0]
    row2 = lambda i: (i, 0)
    return pl.pallas_call(
        _lm_transform_kernel,
        grid=(m_pad // tm,),
        in_specs=(
            pl.BlockSpec((tm, 1), row2),                  # token ids (only row stream)
            _const_spec((VOCAB, LM_DIM)),                 # bf16 embedding table
            _const_spec((LM_DIM, HIDDEN)),
            _const_spec((1, HIDDEN)),
            _const_spec((1, HIDDEN)),
            _const_spec((1, HIDDEN)),
            _const_spec((HIDDEN, REL_W)),
            _const_spec((HIDDEN, HIDDEN)),
            _const_spec((1, HIDDEN)),
        ),
        out_specs=(
            pl.BlockSpec((tm, HIDDEN), row2),
            pl.BlockSpec((NUM_RELATIONS, tm, HIDDEN), lambda i: (0, i, 0)),
            pl.BlockSpec((tm, HIDDEN), row2),
        ),
        out_shape=(
            jax.ShapeDtypeStruct((m_pad, HIDDEN), jnp.float32),
            jax.ShapeDtypeStruct((NUM_RELATIONS, m_pad, HIDDEN), jnp.bfloat16),
            jax.ShapeDtypeStruct((m_pad, HIDDEN), jnp.float32),
        ),
        compiler_params=_cparams(("parallel",)),
    )(ids2d, params["lm_embed"], p_lm["w"], p_lm["b"], p_lm["ln_g"], p_lm["ln_b"],
      p0["w_rel"], p0["w_root"], p0["b"])


def rgcn_agg_and_transform(a_hat, xw_rel_stk, xw_root, p_next, tm, tk):
    m_pad = xw_root.shape[0]
    k3 = xw_rel_stk.shape[0]                 # 3 * m_pad
    cost = pl.CostEstimate(
        flops=int(2 * m_pad * HIDDEN * (k3 + REL_W + HIDDEN)),
        transcendentals=0,
        bytes_accessed=int(m_pad * k3 * 2 + k3 * HIDDEN * 2
                           + REL_W * m_pad * 2 + 4 * m_pad * HIDDEN * 4),
    )
    return pl.pallas_call(
        _agg_transform_kernel,
        grid=(m_pad // tm, k3 // tk),
        in_specs=(
            pl.BlockSpec((tm, tk), lambda i, k: (i, k)),          # A (relation-major)
            pl.BlockSpec((tk, HIDDEN), lambda i, k: (k, 0)),      # stacked X W_r
            pl.BlockSpec((tm, HIDDEN), lambda i, k: (i, 0)),      # X W_root + b
            _const_spec((HIDDEN, REL_W)),
            _const_spec((HIDDEN, HIDDEN)),
            _const_spec((1, HIDDEN)),
        ),
        out_specs=(
            pl.BlockSpec((NUM_RELATIONS, tm, HIDDEN), lambda i, k: (0, i, 0)),
            pl.BlockSpec((tm, HIDDEN), lambda i, k: (i, 0)),
        ),
        out_shape=(
            jax.ShapeDtypeStruct((NUM_RELATIONS, m_pad, HIDDEN), jnp.bfloat16),
            jax.ShapeDtypeStruct((m_pad, HIDDEN), jnp.float32),
        ),
        scratch_shapes=[pltpu.VMEM((tm, HIDDEN), jnp.float32)],
        compiler_params=_cparams(("parallel", "arbitrary")),
        cost_estimate=cost,
    )(a_hat, xw_rel_stk, xw_root, p_next["w_rel"], p_next["w_root"], p_next["b"])


def rgcn_agg_and_fc(a_hat, xw_rel_stk, xw_root, w_fc, b_fc, tm, tk):
    m_pad = xw_root.shape[0]
    k3 = xw_rel_stk.shape[0]
    cost = pl.CostEstimate(
        flops=int(2 * m_pad * HIDDEN * (k3 + HIDDEN)),
        transcendentals=0,
        bytes_accessed=int(m_pad * k3 * 2 + k3 * HIDDEN * 2 + 3 * m_pad * HIDDEN * 4),
    )
    return pl.pallas_call(
        _agg_fc_kernel,
        grid=(m_pad // tm, k3 // tk),
        in_specs=(
            pl.BlockSpec((tm, tk), lambda i, k: (i, k)),
            pl.BlockSpec((tk, HIDDEN), lambda i, k: (k, 0)),
            pl.BlockSpec((tm, HIDDEN), lambda i, k: (i, 0)),
            _const_spec((HIDDEN, HIDDEN)),
            _const_spec((1, HIDDEN)),
        ),
        out_specs=pl.BlockSpec((tm, HIDDEN), lambda i, k: (i, 0)),
        out_shape=jax.ShapeDtypeStruct((m_pad, HIDDEN), jnp.float32),
        scratch_shapes=[pltpu.VMEM((tm, HIDDEN), jnp.float32)],
        compiler_params=_cparams(("parallel", "arbitrary")),
        cost_estimate=cost,
    )(a_hat, xw_rel_stk, xw_root, w_fc, b_fc)


def attn_cls_tail(q_rows, lm_rows, p, seq_len, tb):
    rows = q_rows.shape[0]
    r_block = tb * seq_len
    # block-diagonal additive mask (same for every block: blocks are aligned
    # to sequence starts), built at trace time -> constant input
    seq_ids = np.arange(r_block) // seq_len
    attn_bias = jnp.asarray(
        np.where(seq_ids[:, None] == seq_ids[None, :], 0.0, NEG_INF),
        dtype=jnp.float32)
    row2 = lambda i: (i, 0)
    return pl.pallas_call(
        _attn_tail_kernel,
        grid=(rows // r_block,),
        in_specs=(
            pl.BlockSpec((r_block, HIDDEN), row2),
            pl.BlockSpec((r_block, HIDDEN), row2),
            _const_spec((r_block, r_block)),
            _const_spec((HIDDEN, HIDDEN)), _const_spec((1, HIDDEN)),
            _const_spec((HIDDEN, HIDDEN)), _const_spec((1, HIDDEN)),
            _const_spec((HIDDEN, HIDDEN)), _const_spec((1, HIDDEN)),
            _const_spec((HIDDEN, HIDDEN)), _const_spec((1, HIDDEN)),
            _const_spec((HIDDEN, HIDDEN)), _const_spec((1, HIDDEN)),
            _const_spec((HIDDEN, CLS_PAD)), _const_spec((1, CLS_PAD)),
        ),
        out_specs=pl.BlockSpec((r_block, CLS_PAD), row2),
        out_shape=jax.ShapeDtypeStruct((rows, CLS_PAD), jnp.float32),
        compiler_params=_cparams(("parallel",)),
    )(q_rows, lm_rows, attn_bias,
      p["wq"], p["bq"], p["wk"], p["bk"], p["wv"], p["bv"],
      p["wo"], p["bo"], p["w_fc"], p["b_fc"], p["w_cls"], p["b_cls"])


# ----------------------------------------------------------------------------
# plain-JAX glue
# ----------------------------------------------------------------------------
def build_rgcn_adjacency(edge_index, edge_type, n):
    """Relation-major (n, 3n) mean-normalized adjacency, built directly in bf16
    from per-edge 1/deg weights (PyG RGCNConv, aggr='mean')."""
    src = edge_index[0].astype(jnp.int32)
    dst = edge_index[1].astype(jnp.int32)
    rel = edge_type.astype(jnp.int32)
    deg = jnp.zeros((NUM_RELATIONS, n), jnp.float32).at[rel, dst].add(1.0)
    w = (1.0 / jnp.maximum(deg[rel, dst], 1.0)).astype(jnp.bfloat16)
    a = jnp.zeros((n, NUM_RELATIONS * n), jnp.bfloat16)
    return a.at[dst, rel * n + src].add(w)     # message flows src -> dst


def _glorot(key, shape):
    fan_in, fan_out = shape
    bound = (6.0 / (fan_in + fan_out)) ** 0.5
    return jax.random.uniform(key, shape, jnp.float32, -bound, bound)


def _linear_default(key, fan_in, fan_out):
    kw, kb = jax.random.split(key)
    bound = 1.0 / (fan_in ** 0.5)
    w = jax.random.uniform(kw, (fan_in, fan_out), jnp.float32, -bound, bound)
    b = jax.random.uniform(kb, (1, fan_out), jnp.float32, -bound, bound)
    return w, b


def init_params(key):
    ks = iter(jax.random.split(key, 32))
    p = {}
    # TODO(synk): pretrained DistilProtBert encoder has no Pallas equivalent;
    # replaced with a deterministic (VOCAB, 1024) embedding table producing the
    # last_hidden_state, kept bf16-resident in VMEM inside K1.
    p["lm_embed"] = (jax.random.normal(next(ks), (VOCAB, LM_DIM), jnp.float32)
                     * 0.02).astype(jnp.bfloat16)
    p["lm"] = {
        "w": _glorot(next(ks), (LM_DIM, HIDDEN)).astype(jnp.bfloat16),  # xavier
        "b": jnp.zeros((1, HIDDEN), jnp.float32),                        # zero bias
        "ln_g": jnp.ones((1, HIDDEN), jnp.float32),
        "ln_b": jnp.zeros((1, HIDDEN), jnp.float32),
    }
    p["rgcn"] = []
    for _ in range(NUM_RGCN_LAYERS):
        w_rel = jnp.concatenate(
            [_glorot(next(ks), (HIDDEN, HIDDEN)) for _ in range(NUM_RELATIONS)],
            axis=1)                                                      # (H, 3H)
        w_root = _glorot(next(ks), (HIDDEN, HIDDEN))
        p["rgcn"].append({
            "w_rel": w_rel.astype(jnp.bfloat16),
            "w_root": w_root.astype(jnp.bfloat16),
            "b": jnp.zeros((1, HIDDEN), jnp.float32),
        })
    wq = _glorot(next(ks), (HIDDEN, HIDDEN))
    wk = _glorot(next(ks), (HIDDEN, HIDDEN))
    wv = _glorot(next(ks), (HIDDEN, HIDDEN))
    wo, _ = _linear_default(next(ks), HIDDEN, HIDDEN)
    w_fc, b_fc = _linear_default(next(ks), HIDDEN, HIDDEN)
    w_cls, b_cls = _linear_default(next(ks), HIDDEN, NUM_CLASSES)
    w_cls_pad = jnp.zeros((HIDDEN, CLS_PAD), jnp.float32).at[:, :NUM_CLASSES].set(w_cls)
    b_cls_pad = jnp.zeros((1, CLS_PAD), jnp.float32).at[:, :NUM_CLASSES].set(b_cls)
    p["attn"] = {
        "wq": wq.astype(jnp.bfloat16), "bq": jnp.zeros((1, HIDDEN), jnp.float32),
        "wk": wk.astype(jnp.bfloat16), "bk": jnp.zeros((1, HIDDEN), jnp.float32),
        "wv": wv.astype(jnp.bfloat16), "bv": jnp.zeros((1, HIDDEN), jnp.float32),
        "wo": wo.astype(jnp.bfloat16), "bo": jnp.zeros((1, HIDDEN), jnp.float32),
        "w_fc": w_fc.astype(jnp.bfloat16), "b_fc": b_fc,
        "w_cls": w_cls_pad.astype(jnp.bfloat16), "b_cls": b_cls_pad,
    }
    return p


@jax.jit
def lm_concat_rgcn_attn_forward(params, input_ids, attention_mask, labels,
                                edge_index, edge_type):
    b, s = input_ids.shape
    m = b * s
    tm, m_pad = _row_tiling(m)

    ids = input_ids.reshape(m).astype(jnp.int32)
    if m_pad > m:
        ids = jnp.pad(ids, (0, m_pad - m))
    ids2d = ids.reshape(m_pad, 1)

    # K1: embedding gather + relu + lm_head + relu + LayerNorm + layer-1 transform
    lm_out, xw_rel, xw_root = lm_head_and_transform(ids2d, params, tm)

    a_hat = build_rgcn_adjacency(edge_index, edge_type, m_pad)   # (M, 3M) bf16
    tk = _k_tile(NUM_RELATIONS * m_pad)

    # K2 (x L-1): K-tiled aggregation of layer l, relu, layer l+1 transform
    for l in range(1, NUM_RGCN_LAYERS):
        xw_rel, xw_root = rgcn_agg_and_transform(
            a_hat, xw_rel.reshape(NUM_RELATIONS * m_pad, HIDDEN), xw_root,
            params["rgcn"][l], tm, tk)

    # K3: last aggregation, relu, first attn_fc  ->  attention query input
    q_in = rgcn_agg_and_fc(
        a_hat, xw_rel.reshape(NUM_RELATIONS * m_pad, HIDDEN), xw_root,
        params["attn"]["w_fc"], params["attn"]["b_fc"], tm, tk)

    # K4: batched MHA + attn_fc + residual + cls_head (lane-padded logits)
    tb, b_pad = _seq_batching(b, s)
    rows_k4 = b_pad * s

    def fit_rows(x):
        if rows_k4 <= x.shape[0]:
            return x[:rows_k4]
        return jnp.pad(x, ((0, rows_k4 - x.shape[0]), (0, 0)))

    logits_pad = attn_cls_tail(fit_rows(q_in), fit_rows(lm_out),
                               params["attn"], s, tb)
    logits = logits_pad[:m, :NUM_CLASSES].reshape(b, s, NUM_CLASSES)

    # masked cross-entropy (CrossEntropyLoss, ignore_index=-100)
    active = attention_mask.reshape(-1) == 1
    flat_labels = jnp.where(active, labels.reshape(-1), IGNORE_INDEX)
    flat_logits = logits.reshape(-1, NUM_CLASSES).astype(jnp.float32)
    valid = flat_labels != IGNORE_INDEX
    logz = jax.nn.logsumexp(flat_logits, axis=-1)
    safe_labels = jnp.where(valid, flat_labels, 0)
    picked = jnp.take_along_axis(flat_logits, safe_labels[:, None], axis=-1)[:, 0]
    per_tok = jnp.where(valid, logz - picked, 0.0)
    # NOTE: torch returns NaN with zero valid targets; denominator clamped here.
    loss = per_tok.sum() / jnp.maximum(valid.sum(), 1).astype(jnp.float32)

    return {"loss": loss, "logits": logits}


# ----------------------------------------------------------------------------
# Example run
# ----------------------------------------------------------------------------
if __name__ == "__main__":
    B, S = 2, 8
    key = jax.random.PRNGKey(0)
    k_param, k_ids, k_lab = jax.random.split(key, 3)

    params = init_params(k_param)

    input_ids = jax.random.randint(k_ids, (B, S), 0, VOCAB, dtype=jnp.int32)
    attention_mask = jnp.ones((B, S), jnp.int32)
    labels = jax.random.randint(k_lab, (B, S), 0, NUM_CLASSES, dtype=jnp.int32)

    # chain graph inside each sequence (bidirectional), PyG-style (2, E) + types
    src, dst, etype = [], [], []
    for bb in range(B):
        base = bb * S
        for i in range(S - 1):
            src += [base + i, base + i + 1]
            dst += [base + i + 1, base + i]
            etype += [i % NUM_RELATIONS, i % NUM_RELATIONS]
    edge_index = jnp.array([src, dst], dtype=jnp.int32)    # (2, 28)
    edge_type = jnp.array(etype, dtype=jnp.int32)          # (28,)

    out = lm_concat_rgcn_attn_forward(params, input_ids, attention_mask,
                                      labels, edge_index, edge_type)
    jax.block_until_ready(out["loss"])
    jax.block_until_ready(out["logits"])

    assert out["logits"].shape == (B, S, NUM_CLASSES)
    assert jnp.isfinite(out["loss"])
    print("KERNEL_OK")
</pallas_src>

<mosaic_0001>
module attributes {stable_mosaic.version = 11 : i64} {
  func.func @_lm_transform_kernel(%arg0: i32, %arg1: memref<16x1xi32, #tpu.memory_space<vmem>>, %arg2: memref<32x1024xbf16, #tpu.memory_space<vmem>>, %arg3: memref<1024x128xbf16, #tpu.memory_space<vmem>>, %arg4: memref<1x128xf32, #tpu.memory_space<vmem>>, %arg5: memref<1x128xf32, #tpu.memory_space<vmem>>, %arg6: memref<1x128xf32, #tpu.memory_space<vmem>>, %arg7: memref<128x384xbf16, #tpu.memory_space<vmem>>, %arg8: memref<128x128xbf16, #tpu.memory_space<vmem>>, %arg9: memref<1x128xf32, #tpu.memory_space<vmem>>, %arg10: memref<16x128xf32, #tpu.memory_space<vmem>>, %arg11: memref<3x16x128xbf16, #tpu.memory_space<vmem>>, %arg12: memref<16x128xf32, #tpu.memory_space<vmem>>) attributes {dimension_semantics = [#tpu.dimension_semantics<parallel>], iteration_bounds = array<i64: 1>, scalar_prefetch = 0 : i64, scratch_operands = 0 : i64, tpu.core_type = #tpu.core_type<tc>, window_params = [{transform_indices = @transform_0, window_bounds = array<i64: 16, 1>}, {pipeline_mode = #tpu.pipeline_mode<synchronous>, transform_indices = @transform_1, window_bounds = array<i64: 32, 1024>}, {pipeline_mode = #tpu.pipeline_mode<synchronous>, transform_indices = @transform_2, window_bounds = array<i64: 1024, 128>}, {pipeline_mode = #tpu.pipeline_mode<synchronous>, transform_indices = @transform_3, window_bounds = array<i64: 1, 128>}, {pipeline_mode = #tpu.pipeline_mode<synchronous>, transform_indices = @transform_4, window_bounds = array<i64: 1, 128>}, {pipeline_mode = #tpu.pipeline_mode<synchronous>, transform_indices = @transform_5, window_bounds = array<i64: 1, 128>}, {pipeline_mode = #tpu.pipeline_mode<synchronous>, transform_indices = @transform_6, window_bounds = array<i64: 128, 384>}, {pipeline_mode = #tpu.pipeline_mode<synchronous>, transform_indices = @transform_7, window_bounds = array<i64: 128, 128>}, {pipeline_mode = #tpu.pipeline_mode<synchronous>, transform_indices = @transform_8, window_bounds = array<i64: 1, 128>}, {transform_indices = @transform_9, window_bounds = array<i64: 16, 128>}, {transform_indices = @transform_10, window_bounds = array<i64: 3, 16, 128>}, {transform_indices = @transform_11, window_bounds = array<i64: 16, 128>}]} {
    %c0 = arith.constant 0 : index
    %c0_0 = arith.constant 0 : index
    %0 = vector.load %arg1[%c0, %c0_0] : memref<16x1xi32, #tpu.memory_space<vmem>>, vector<16x1xi32>
    %1 = tpu.iota {dimensions = array<i32: 1>} : vector<16x32xi32>
    %2 = vector.broadcast %0 : vector<16x1xi32> to vector<16x32xi32>
    %3 = arith.cmpi eq, %2, %1 : vector<16x32xi32>
    %cst = arith.constant 1.000000e+00 : f32
    %cst_1 = arith.constant 0.000000e+00 : f32
    %4 = vector.broadcast %cst : f32 to vector<16x32xf32>
    %5 = vector.broadcast %cst_1 : f32 to vector<16x32xf32>
    %6 = arith.select %3, %4, %5 : vector<16x32xi1>, vector<16x32xf32>
    %7 = arith.truncf %6 : vector<16x32xf32> to vector<16x32xbf16>
    %c0_2 = arith.constant 0 : index
    %c0_3 = arith.constant 0 : index
    %8 = vector.load %arg2[%c0_2, %c0_3] : memref<32x1024xbf16, #tpu.memory_space<vmem>>, vector<32x1024xbf16>
    %cst_4 = arith.constant dense<0.000000e+00> : vector<16x1024xf32>
    %9 = tpu.matmul %7, %8, %cst_4 {dimension_numbers = #tpu.dot_dimension_numbers<[1], [0], [0], [1], [0, 0, 1, 1], [], []>} : vector<16x32xbf16>, vector<32x1024xbf16>, vector<16x1024xf32> -> vector<16x1024xf32>
    %cst_5 = arith.constant 0.000000e+00 : f32
    %10 = vector.broadcast %cst_5 : f32 to vector<16x1024xf32>
    %11 = arith.maximumf %9, %10 : vector<16x1024xf32>
    %12 = arith.truncf %11 : vector<16x1024xf32> to vector<16x1024xbf16>
    %c0_6 = arith.constant 0 : index
    %c0_7 = arith.constant 0 : index
    %13 = vector.load %arg3[%c0_6, %c0_7] : memref<1024x128xbf16, #tpu.memory_space<vmem>>, vector<1024x128xbf16>
    %cst_8 = arith.constant dense<0.000000e+00> : vector<16x128xf32>
    %14 = tpu.matmul %12, %13, %cst_8 {dimension_numbers = #tpu.dot_dimension_numbers<[1], [0], [0], [1], [0, 0, 1, 1], [], []>} : vector<16x1024xbf16>, vector<1024x128xbf16>, vector<16x128xf32> -> vector<16x128xf32>
    %c0_9 = arith.constant 0 : index
    %c0_10 = arith.constant 0 : index
    %15 = vector.load %arg4[%c0_9, %c0_10] : memref<1x128xf32, #tpu.memory_space<vmem>>, vector<1x128xf32>
    %16 = vector.broadcast %15 : vector<1x128xf32> to vector<16x128xf32>
    %17 = arith.addf %14, %16 : vector<16x128xf32>
    %cst_11 = arith.constant 0.000000e+00 : f32
    %18 = vector.broadcast %cst_11 : f32 to vector<16x128xf32>
    %19 = arith.maximumf %17, %18 : vector<16x128xf32>
    %cst_12 = arith.constant dense<0.000000e+00> : vector<16xf32>
    %20 = vector.multi_reduction <add>, %19, %cst_12 [1] : vector<16x128xf32> to vector<16xf32>
    %21 = vector.shape_cast %20 : vector<16xf32> to vector<16x1xf32>
    %cst_13 = arith.constant 1.280000e+02 : f32
    %22 = vector.broadcast %cst_13 : f32 to vector<16x1xf32>
    %23 = arith.divf %21, %22 : vector<16x1xf32>
    %24 = vector.broadcast %23 : vector<16x1xf32> to vector<16x128xf32>
    %25 = arith.subf %19, %24 : vector<16x128xf32>
    %26 = arith.mulf %25, %25 : vector<16x128xf32>
    %cst_14 = arith.constant dense<0.000000e+00> : vector<16xf32>
    %27 = vector.multi_reduction <add>, %26, %cst_14 [1] : vector<16x128xf32> to vector<16xf32>
    %28 = vector.shape_cast %27 : vector<16xf32> to vector<16x1xf32>
    %cst_15 = arith.constant 1.280000e+02 : f32
    %29 = vector.broadcast %cst_15 : f32 to vector<16x1xf32>
    %30 = arith.divf %28, %29 : vector<16x1xf32>
    %31 = vector.broadcast %23 : vector<16x1xf32> to vector<16x128xf32>
    %32 = arith.subf %19, %31 : vector<16x128xf32>
    %cst_16 = arith.constant 9.99999974E-6 : f32
    %33 = vector.broadcast %cst_16 : f32 to vector<16x1xf32>
    %34 = arith.addf %30, %33 : vector<16x1xf32>
    %35 = math.rsqrt %34 : vector<16x1xf32>
    %36 = vector.broadcast %35 : vector<16x1xf32> to vector<16x128xf32>
    %37 = arith.mulf %32, %36 : vector<16x128xf32>
    %c0_17 = arith.constant 0 : index
    %c0_18 = arith.constant 0 : index
    %38 = vector.load %arg5[%c0_17, %c0_18] : memref<1x128xf32, #tpu.memory_space<vmem>>, vector<1x128xf32>
    %39 = vector.broadcast %38 : vector<1x128xf32> to vector<16x128xf32>
    %40 = arith.mulf %37, %39 : vector<16x128xf32>
    %c0_19 = arith.constant 0 : index
    %c0_20 = arith.constant 0 : index
    %41 = vector.load %arg6[%c0_19, %c0_20] : memref<1x128xf32, #tpu.memory_space<vmem>>, vector<1x128xf32>
    %42 = vector.broadcast %41 : vector<1x128xf32> to vector<16x128xf32>
    %43 = arith.addf %40, %42 : vector<16x128xf32>
    %c0_21 = arith.constant 0 : index
    %c0_22 = arith.constant 0 : index
    %44 = vector.load %arg10[%c0_21, %c0_22] : memref<16x128xf32, #tpu.memory_space<vmem>>, vector<16x128xf32>
    tpu.vector_store %arg10[%c0_21, %c0_22], %43 {strides = array<i32>} : memref<16x128xf32, #tpu.memory_space<vmem>>, vector<16x128xf32>,
    %45 = arith.truncf %43 : vector<16x128xf32> to vector<16x128xbf16>
    %c0_23 = arith.constant 0 : index
    %c0_24 = arith.constant 0 : index
    %46 = vector.load %arg7[%c0_23, %c0_24] : memref<128x384xbf16, #tpu.memory_space<vmem>>, vector<128x384xbf16>
    %cst_25 = arith.constant dense<0.000000e+00> : vector<16x384xf32>
    %47 = tpu.matmul %45, %46, %cst_25 {dimension_numbers = #tpu.dot_dimension_numbers<[1], [0], [0], [1], [0, 0, 1, 1], [], []>} : vector<16x128xbf16>, vector<128x384xbf16>, vector<16x384xf32> -> vector<16x384xf32>
    %48 = vector.extract_strided_slice %47 {offsets = [0, 0], sizes = [16, 128], strides = [1, 1]} : vector<16x384xf32> to vector<16x128xf32>
    %49 = arith.truncf %48 : vector<16x128xf32> to vector<16x128xbf16>
    %c0_26 = arith.constant 0 : index
    %c0_27 = arith.constant 0 : index
    %c0_28 = arith.constant 0 : index
    %50 = vector.load %arg11[%c0_26, %c0_27, %c0_28] : memref<3x16x128xbf16, #tpu.memory_space<vmem>>, vector<1x16x128xbf16>
    %51 = vector.shape_cast %50 : vector<1x16x128xbf16> to vector<16x128xbf16>
    %52 = vector.shape_cast %49 : vector<16x128xbf16> to vector<1x16x128xbf16>
    tpu.vector_store %arg11[%c0_26, %c0_27, %c0_28], %52 {strides = array<i32>} : memref<3x16x128xbf16, #tpu.memory_space<vmem>>, vector<1x16x128xbf16>,
    %53 = vector.extract_strided_slice %47 {offsets = [0, 128], sizes = [16, 128], strides = [1, 1]} : vector<16x384xf32> to vector<16x128xf32>
    %54 = arith.truncf %53 : vector<16x128xf32> to vector<16x128xbf16>
    %c1 = arith.constant 1 : index
    %c0_29 = arith.constant 0 : index
    %c0_30 = arith.constant 0 : index
    %55 = vector.load %arg11[%c1, %c0_29, %c0_30] : memref<3x16x128xbf16, #tpu.memory_space<vmem>>, vector<1x16x128xbf16>
    %56 = vector.shape_cast %55 : vector<1x16x128xbf16> to vector<16x128xbf16>
    %57 = vector.shape_cast %54 : vector<16x128xbf16> to vector<1x16x128xbf16>
    tpu.vector_store %arg11[%c1, %c0_29, %c0_30], %57 {strides = array<i32>} : memref<3x16x128xbf16, #tpu.memory_space<vmem>>, vector<1x16x128xbf16>,
    %58 = vector.extract_strided_slice %47 {offsets = [0, 256], sizes = [16, 128], strides = [1, 1]} : vector<16x384xf32> to vector<16x128xf32>
    %59 = arith.truncf %58 : vector<16x128xf32> to vector<16x128xbf16>
    %c2 = arith.constant 2 : index
    %c0_31 = arith.constant 0 : index
    %c0_32 = arith.constant 0 : index
    %60 = vector.load %arg11[%c2, %c0_31, %c0_32] : memref<3x16x128xbf16, #tpu.memory_space<vmem>>, vector<1x16x128xbf16>
    %61 = vector.shape_cast %60 : vector<1x16x128xbf16> to vector<16x128xbf16>
    %62 = vector.shape_cast %59 : vector<16x128xbf16> to vector<1x16x128xbf16>
    tpu.vector_store %arg11[%c2, %c0_31, %c0_32], %62 {strides = array<i32>} : memref<3x16x128xbf16, #tpu.memory_space<vmem>>, vector<1x16x128xbf16>,
    %c0_33 = arith.constant 0 : index
    %c0_34 = arith.constant 0 : index
    %63 = vector.load %arg8[%c0_33, %c0_34] : memref<128x128xbf16, #tpu.memory_space<vmem>>, vector<128x128xbf16>
    %cst_35 = arith.constant dense<0.000000e+00> : vector<16x128xf32>
    %64 = tpu.matmul %45, %63, %cst_35 {dimension_numbers = #tpu.dot_dimension_numbers<[1], [0], [0], [1], [0, 0, 1, 1], [], []>} : vector<16x128xbf16>, vector<128x128xbf16>, vector<16x128xf32> -> vector<16x128xf32>
    %c0_36 = arith.constant 0 : index
    %c0_37 = arith.constant 0 : index
    %65 = vector.load %arg9[%c0_36, %c0_37] : memref<1x128xf32, #tpu.memory_space<vmem>>, vector<1x128xf32>
    %66 = vector.broadcast %65 : vector<1x128xf32> to vector<16x128xf32>
    %67 = arith.addf %64, %66 : vector<16x128xf32>
    %c0_38 = arith.constant 0 : index
    %c0_39 = arith.constant 0 : index
    %68 = vector.load %arg12[%c0_38, %c0_39] : memref<16x128xf32, #tpu.memory_space<vmem>>, vector<16x128xf32>
    tpu.vector_store %arg12[%c0_38, %c0_39], %67 {strides = array<i32>} : memref<16x128xf32, #tpu.memory_space<vmem>>, vector<16x128xf32>,
    return
  }
  func.func @transform_0(%arg0: i32) -> (i32, i32) {
    %c0_i32 = arith.constant 0 : i32
    %c0_i32_0 = arith.constant 0 : i32
    return %arg0, %c0_i32 : i32, i32
  }
  func.func @transform_1(%arg0: i32) -> (i32, i32) {
    %c0_i32 = arith.constant 0 : i32
    %c0_i32_0 = arith.constant 0 : i32
    %c0_i32_1 = arith.constant 0 : i32
    return %c0_i32, %c0_i32_0 : i32, i32
  }
  func.func @transform_2(%arg0: i32) -> (i32, i32) {
    %c0_i32 = arith.constant 0 : i32
    %c0_i32_0 = arith.constant 0 : i32
    %c0_i32_1 = arith.constant 0 : i32
    return %c0_i32, %c0_i32_0 : i32, i32
  }
  func.func @transform_3(%arg0: i32) -> (i32, i32) {
    %c0_i32 = arith.constant 0 : i32
    %c0_i32_0 = arith.constant 0 : i32
    %c0_i32_1 = arith.constant 0 : i32
    return %c0_i32, %c0_i32_0 : i32, i32
  }
  func.func @transform_4(%arg0: i32) -> (i32, i32) {
    %c0_i32 = arith.constant 0 : i32
    %c0_i32_0 = arith.constant 0 : i32
    %c0_i32_1 = arith.constant 0 : i32
    return %c0_i32, %c0_i32_0 : i32, i32
  }
  func.func @transform_5(%arg0: i32) -> (i32, i32) {
    %c0_i32 = arith.constant 0 : i32
    %c0_i32_0 = arith.constant 0 : i32
    %c0_i32_1 = arith.constant 0 : i32
    return %c0_i32, %c0_i32_0 : i32, i32
  }
  func.func @transform_6(%arg0: i32) -> (i32, i32) {
    %c0_i32 = arith.constant 0 : i32
    %c0_i32_0 = arith.constant 0 : i32
    %c0_i32_1 = arith.constant 0 : i32
    return %c0_i32, %c0_i32_0 : i32, i32
  }
  func.func @transform_7(%arg0: i32) -> (i32, i32) {
    %c0_i32 = arith.constant 0 : i32
    %c0_i32_0 = arith.constant 0 : i32
    %c0_i32_1 = arith.constant 0 : i32
    return %c0_i32, %c0_i32_0 : i32, i32
  }
  func.func @transform_8(%arg0: i32) -> (i32, i32) {
    %c0_i32 = arith.constant 0 : i32
    %c0_i32_0 = arith.constant 0 : i32
    %c0_i32_1 = arith.constant 0 : i32
    return %c0_i32, %c0_i32_0 : i32, i32
  }
  func.func @transform_9(%arg0: i32) -> (i32, i32) {
    %c0_i32 = arith.constant 0 : i32
    %c0_i32_0 = arith.constant 0 : i32
    return %arg0, %c0_i32 : i32, i32
  }
  func.func @transform_10(%arg0: i32) -> (i32, i32, i32) {
    %c0_i32 = arith.constant 0 : i32
    %c0_i32_0 = arith.constant 0 : i32
    %c0_i32_1 = arith.constant 0 : i32
    return %c0_i32, %arg0, %c0_i32_0 : i32, i32, i32
  }
  func.func @transform_11(%arg0: i32) -> (i32, i32) {
    %c0_i32 = arith.constant 0 : i32
    %c0_i32_0 = arith.constant 0 : i32
    return %arg0, %c0_i32 : i32, i32
  }
}

module attributes {stable_mosaic.version = 11 : i64} {
  func.func @_agg_transform_kernel(%arg0: i32, %arg1: i32, %arg2: memref<16x48xbf16, #tpu.memory_space<vmem>>, %arg3: memref<48x128xbf16, #tpu.memory_space<vmem>>, %arg4: memref<16x128xf32, #tpu.memory_space<vmem>>, %arg5: memref<128x384xbf16, #tpu.memory_space<vmem>>, %arg6: memref<128x128xbf16, #tpu.memory_space<vmem>>, %arg7: memref<1x128xf32, #tpu.memory_space<vmem>>, %arg8: memref<3x16x128xbf16, #tpu.memory_space<vmem>>, %arg9: memref<16x128xf32, #tpu.memory_space<vmem>>, %arg10: memref<16x128xf32, #tpu.memory_space<vmem>>) attributes {dimension_semantics = [#tpu.dimension_semantics<parallel>, #tpu.dimension_semantics<arbitrary>], iteration_bounds = array<i64: 1, 1>, scalar_prefetch = 0 : i64, scratch_operands = 1 : i64, tpu.core_type = #tpu.core_type<tc>, window_params = [{transform_indices = @transform_0, window_bounds = array<i64: 16, 48>}, {transform_indices = @transform_1, window_bounds = array<i64: 48, 128>}, {transform_indices = @transform_2, window_bounds = array<i64: 16, 128>}, {pipeline_mode = #tpu.pipeline_mode<synchronous>, transform_indices = @transform_3, window_bounds = array<i64: 128, 384>}, {pipeline_mode = #tpu.pipeline_mode<synchronous>, transform_indices = @transform_4, window_bounds = array<i64: 128, 128>}, {pipeline_mode = #tpu.pipeline_mode<synchronous>, transform_indices = @transform_5, window_bounds = array<i64: 1, 128>}, {transform_indices = @transform_6, window_bounds = array<i64: 3, 16, 128>}, {transform_indices = @transform_7, window_bounds = array<i64: 16, 128>}]} {
    %c0_i32 = arith.constant 0 : i32
    %0 = arith.cmpi eq, %arg1, %c0_i32 : i32
    %1 = arith.extui %0 : i1 to i32
    %c0_i32_0 = arith.constant 0 : i32
    %2 = arith.cmpi ne, %1, %c0_i32_0 : i32
    scf.if %2 {
      %c0_10 = arith.constant 0 : index
      %c0_11 = arith.constant 0 : index
      %12 = vector.load %arg4[%c0_10, %c0_11] : memref<16x128xf32, #tpu.memory_space<vmem>>, vector<16x128xf32>
      %c0_12 = arith.constant 0 : index
      %c0_13 = arith.constant 0 : index
      %13 = vector.load %arg10[%c0_12, %c0_13] : memref<16x128xf32, #tpu.memory_space<vmem>>, vector<16x128xf32>
      tpu.vector_store %arg10[%c0_12, %c0_13], %12 {strides = array<i32>} : memref<16x128xf32, #tpu.memory_space<vmem>>, vector<16x128xf32>,
    } else {
    }
    %c0 = arith.constant 0 : index
    %c0_1 = arith.constant 0 : index
    %3 = vector.load %arg10[%c0, %c0_1] : memref<16x128xf32, #tpu.memory_space<vmem>>, vector<16x128xf32>
    %c0_2 = arith.constant 0 : index
    %c0_3 = arith.constant 0 : index
    %4 = vector.load %arg2[%c0_2, %c0_3] : memref<16x48xbf16, #tpu.memory_space<vmem>>, vector<16x48xbf16>
    %c0_4 = arith.constant 0 : index
    %c0_5 = arith.constant 0 : index
    %5 = vector.load %arg3[%c0_4, %c0_5] : memref<48x128xbf16, #tpu.memory_space<vmem>>, vector<48x128xbf16>
    %cst = arith.constant dense<0.000000e+00> : vector<16x128xf32>
    %6 = tpu.matmul %4, %5, %cst {dimension_numbers = #tpu.dot_dimension_numbers<[1], [0], [0], [1], [0, 0, 1, 1], [], []>} : vector<16x48xbf16>, vector<48x128xbf16>, vector<16x128xf32> -> vector<16x128xf32>
    %7 = arith.addf %3, %6 : vector<16x128xf32>
    %c0_6 = arith.constant 0 : index
    %c0_7 = arith.constant 0 : index
    %8 = vector.load %arg10[%c0_6, %c0_7] : memref<16x128xf32, #tpu.memory_space<vmem>>, vector<16x128xf32>
    tpu.vector_store %arg10[%c0_6, %c0_7], %7 {strides = array<i32>} : memref<16x128xf32, #tpu.memory_space<vmem>>, vector<16x128xf32>,
    %c0_i32_8 = arith.constant 0 : i32
    %9 = arith.cmpi eq, %arg1, %c0_i32_8 : i32
    %10 = arith.extui %9 : i1 to i32
    %c0_i32_9 = arith.constant 0 : i32
    %11 = arith.cmpi ne, %10, %c0_i32_9 : i32
    scf.if %11 {
      %c0_10 = arith.constant 0 : index
      %c0_11 = arith.constant 0 : index
      %12 = vector.load %arg10[%c0_10, %c0_11] : memref<16x128xf32, #tpu.memory_space<vmem>>, vector<16x128xf32>
      %cst_12 = arith.constant 0.000000e+00 : f32
      %13 = vector.broadcast %cst_12 : f32 to vector<16x128xf32>
      %14 = arith.maximumf %12, %13 : vector<16x128xf32>
      %15 = arith.truncf %14 : vector<16x128xf32> to vector<16x128xbf16>
      %c0_13 = arith.constant 0 : index
      %c0_14 = arith.constant 0 : index
      %16 = vector.load %arg5[%c0_13, %c0_14] : memref<128x384xbf16, #tpu.memory_space<vmem>>, vector<128x384xbf16>
      %cst_15 = arith.constant dense<0.000000e+00> : vector<16x384xf32>
      %17 = tpu.matmul %15, %16, %cst_15 {dimension_numbers = #tpu.dot_dimension_numbers<[1], [0], [0], [1], [0, 0, 1, 1], [], []>} : vector<16x128xbf16>, vector<128x384xbf16>, vector<16x384xf32> -> vector<16x384xf32>
      %18 = vector.extract_strided_slice %17 {offsets = [0, 0], sizes = [16, 128], strides = [1, 1]} : vector<16x384xf32> to vector<16x128xf32>
      %19 = arith.truncf %18 : vector<16x128xf32> to vector<16x128xbf16>
      %c0_16 = arith.constant 0 : index
      %c0_17 = arith.constant 0 : index
      %c0_18 = arith.constant 0 : index
      %20 = vector.load %arg8[%c0_16, %c0_17, %c0_18] : memref<3x16x128xbf16, #tpu.memory_space<vmem>>, vector<1x16x128xbf16>
      %21 = vector.shape_cast %20 : vector<1x16x128xbf16> to vector<16x128xbf16>
      %22 = vector.shape_cast %19 : vector<16x128xbf16> to vector<1x16x128xbf16>
      tpu.vector_store %arg8[%c0_16, %c0_17, %c0_18], %22 {strides = array<i32>} : memref<3x16x128xbf16, #tpu.memory_space<vmem>>, vector<1x16x128xbf16>,
      %23 = vector.extract_strided_slice %17 {offsets = [0, 128], sizes = [16, 128], strides = [1, 1]} : vector<16x384xf32> to vector<16x128xf32>
      %24 = arith.truncf %23 : vector<16x128xf32> to vector<16x128xbf16>
      %c1 = arith.constant 1 : index
      %c0_19 = arith.constant 0 : index
      %c0_20 = arith.constant 0 : index
      %25 = vector.load %arg8[%c1, %c0_19, %c0_20] : memref<3x16x128xbf16, #tpu.memory_space<vmem>>, vector<1x16x128xbf16>
      %26 = vector.shape_cast %25 : vector<1x16x128xbf16> to vector<16x128xbf16>
      %27 = vector.shape_cast %24 : vector<16x128xbf16> to vector<1x16x128xbf16>
      tpu.vector_store %arg8[%c1, %c0_19, %c0_20], %27 {strides = array<i32>} : memref<3x16x128xbf16, #tpu.memory_space<vmem>>, vector<1x16x128xbf16>,
      %28 = vector.extract_strided_slice %17 {offsets = [0, 256], sizes = [16, 128], strides = [1, 1]} : vector<16x384xf32> to vector<16x128xf32>
      %29 = arith.truncf %28 : vector<16x128xf32> to vector<16x128xbf16>
      %c2 = arith.constant 2 : index
      %c0_21 = arith.constant 0 : index
      %c0_22 = arith.constant 0 : index
      %30 = vector.load %arg8[%c2, %c0_21, %c0_22] : memref<3x16x128xbf16, #tpu.memory_space<vmem>>, vector<1x16x128xbf16>
      %31 = vector.shape_cast %30 : vector<1x16x128xbf16> to vector<16x128xbf16>
      %32 = vector.shape_cast %29 : vector<16x128xbf16> to vector<1x16x128xbf16>
      tpu.vector_store %arg8[%c2, %c0_21, %c0_22], %32 {strides = array<i32>} : memref<3x16x128xbf16, #tpu.memory_space<vmem>>, vector<1x16x128xbf16>,
      %c0_23 = arith.constant 0 : index
      %c0_24 = arith.constant 0 : index
      %33 = vector.load %arg6[%c0_23, %c0_24] : memref<128x128xbf16, #tpu.memory_space<vmem>>, vector<128x128xbf16>
      %cst_25 = arith.constant dense<0.000000e+00> : vector<16x128xf32>
      %34 = tpu.matmul %15, %33, %cst_25 {dimension_numbers = #tpu.dot_dimension_numbers<[1], [0], [0], [1], [0, 0, 1, 1], [], []>} : vector<16x128xbf16>, vector<128x128xbf16>, vector<16x128xf32> -> vector<16x128xf32>
      %c0_26 = arith.constant 0 : index
      %c0_27 = arith.constant 0 : index
      %35 = vector.load %arg7[%c0_26, %c0_27] : memref<1x128xf32, #tpu.memory_space<vmem>>, vector<1x128xf32>
      %36 = vector.broadcast %35 : vector<1x128xf32> to vector<16x128xf32>
      %37 = arith.addf %34, %36 : vector<16x128xf32>
      %c0_28 = arith.constant 0 : index
      %c0_29 = arith.constant 0 : index
      %38 = vector.load %arg9[%c0_28, %c0_29] : memref<16x128xf32, #tpu.memory_space<vmem>>, vector<16x128xf32>
      tpu.vector_store %arg9[%c0_28, %c0_29], %37 {strides = array<i32>} : memref<16x128xf32, #tpu.memory_space<vmem>>, vector<16x128xf32>,
    } else {
    }
    return
  }
  func.func @transform_0(%arg0: i32, %arg1: i32) -> (i32, i32) {
    %c0_i32 = arith.constant 0 : i32
    return %arg0, %arg1 : i32, i32
  }
  func.func @transform_1(%arg0: i32, %arg1: i32) -> (i32, i32) {
    %c0_i32 = arith.constant 0 : i32
    %c0_i32_0 = arith.constant 0 : i32
    return %arg1, %c0_i32 : i32, i32
  }
  func.func @transform_2(%arg0: i32, %arg1: i32) -> (i32, i32) {
    %c0_i32 = arith.constant 0 : i32
    %c0_i32_0 = arith.constant 0 : i32
    return %arg0, %c0_i32 : i32, i32
  }
  func.func @transform_3(%arg0: i32, %arg1: i32) -> (i32, i32) {
    %c0_i32 = arith.constant 0 : i32
    %c0_i32_0 = arith.constant 0 : i32
    %c0_i32_1 = arith.constant 0 : i32
    return %c0_i32, %c0_i32_0 : i32, i32
  }
  func.func @transform_4(%arg0: i32, %arg1: i32) -> (i32, i32) {
    %c0_i32 = arith.constant 0 : i32
    %c0_i32_0 = arith.constant 0 : i32
    %c0_i32_1 = arith.constant 0 : i32
    return %c0_i32, %c0_i32_0 : i32, i32
  }
  func.func @transform_5(%arg0: i32, %arg1: i32) -> (i32, i32) {
    %c0_i32 = arith.constant 0 : i32
    %c0_i32_0 = arith.constant 0 : i32
    %c0_i32_1 = arith.constant 0 : i32
    return %c0_i32, %c0_i32_0 : i32, i32
  }
  func.func @transform_6(%arg0: i32, %arg1: i32) -> (i32, i32, i32) {
    %c0_i32 = arith.constant 0 : i32
    %c0_i32_0 = arith.constant 0 : i32
    %c0_i32_1 = arith.constant 0 : i32
    return %c0_i32, %arg0, %c0_i32_0 : i32, i32, i32
  }
  func.func @transform_7(%arg0: i32, %arg1: i32) -> (i32, i32) {
    %c0_i32 = arith.constant 0 : i32
    %c0_i32_0 = arith.constant 0 : i32
    return %arg0, %c0_i32 : i32, i32
  }
}

module attributes {stable_mosaic.version = 11 : i64} {
  func.func @_agg_fc_kernel(%arg0: i32, %arg1: i32, %arg2: memref<16x48xbf16, #tpu.memory_space<vmem>>, %arg3: memref<48x128xbf16, #tpu.memory_space<vmem>>, %arg4: memref<16x128xf32, #tpu.memory_space<vmem>>, %arg5: memref<128x128xbf16, #tpu.memory_space<vmem>>, %arg6: memref<1x128xf32, #tpu.memory_space<vmem>>, %arg7: memref<16x128xf32, #tpu.memory_space<vmem>>, %arg8: memref<16x128xf32, #tpu.memory_space<vmem>>) attributes {dimension_semantics = [#tpu.dimension_semantics<parallel>, #tpu.dimension_semantics<arbitrary>], iteration_bounds = array<i64: 1, 1>, scalar_prefetch = 0 : i64, scratch_operands = 1 : i64, tpu.core_type = #tpu.core_type<tc>, window_params = [{transform_indices = @transform_0, window_bounds = array<i64: 16, 48>}, {transform_indices = @transform_1, window_bounds = array<i64: 48, 128>}, {transform_indices = @transform_2, window_bounds = array<i64: 16, 128>}, {pipeline_mode = #tpu.pipeline_mode<synchronous>, transform_indices = @transform_3, window_bounds = array<i64: 128, 128>}, {pipeline_mode = #tpu.pipeline_mode<synchronous>, transform_indices = @transform_4, window_bounds = array<i64: 1, 128>}, {transform_indices = @transform_5, window_bounds = array<i64: 16, 128>}]} {
    %c0_i32 = arith.constant 0 : i32
    %0 = arith.cmpi eq, %arg1, %c0_i32 : i32
    %1 = arith.extui %0 : i1 to i32
    %c0_i32_0 = arith.constant 0 : i32
    %2 = arith.cmpi ne, %1, %c0_i32_0 : i32
    scf.if %2 {
      %c0_10 = arith.constant 0 : index
      %c0_11 = arith.constant 0 : index
      %12 = vector.load %arg4[%c0_10, %c0_11] : memref<16x128xf32, #tpu.memory_space<vmem>>, vector<16x128xf32>
      %c0_12 = arith.constant 0 : index
      %c0_13 = arith.constant 0 : index
      %13 = vector.load %arg8[%c0_12, %c0_13] : memref<16x128xf32, #tpu.memory_space<vmem>>, vector<16x128xf32>
      tpu.vector_store %arg8[%c0_12, %c0_13], %12 {strides = array<i32>} : memref<16x128xf32, #tpu.memory_space<vmem>>, vector<16x128xf32>,
    } else {
    }
    %c0 = arith.constant 0 : index
    %c0_1 = arith.constant 0 : index
    %3 = vector.load %arg8[%c0, %c0_1] : memref<16x128xf32, #tpu.memory_space<vmem>>, vector<16x128xf32>
    %c0_2 = arith.constant 0 : index
    %c0_3 = arith.constant 0 : index
    %4 = vector.load %arg2[%c0_2, %c0_3] : memref<16x48xbf16, #tpu.memory_space<vmem>>, vector<16x48xbf16>
    %c0_4 = arith.constant 0 : index
    %c0_5 = arith.constant 0 : index
    %5 = vector.load %arg3[%c0_4, %c0_5] : memref<48x128xbf16, #tpu.memory_space<vmem>>, vector<48x128xbf16>
    %cst = arith.constant dense<0.000000e+00> : vector<16x128xf32>
    %6 = tpu.matmul %4, %5, %cst {dimension_numbers = #tpu.dot_dimension_numbers<[1], [0], [0], [1], [0, 0, 1, 1], [], []>} : vector<16x48xbf16>, vector<48x128xbf16>, vector<16x128xf32> -> vector<16x128xf32>
    %7 = arith.addf %3, %6 : vector<16x128xf32>
    %c0_6 = arith.constant 0 : index
    %c0_7 = arith.constant 0 : index
    %8 = vector.load %arg8[%c0_6, %c0_7] : memref<16x128xf32, #tpu.memory_space<vmem>>, vector<16x128xf32>
    tpu.vector_store %arg8[%c0_6, %c0_7], %7 {strides = array<i32>} : memref<16x128xf32, #tpu.memory_space<vmem>>, vector<16x128xf32>,
    %c0_i32_8 = arith.constant 0 : i32
    %9 = arith.cmpi eq, %arg1, %c0_i32_8 : i32
    %10 = arith.extui %9 : i1 to i32
    %c0_i32_9 = arith.constant 0 : i32
    %11 = arith.cmpi ne, %10, %c0_i32_9 : i32
    scf.if %11 {
      %c0_10 = arith.constant 0 : index
      %c0_11 = arith.constant 0 : index
      %12 = vector.load %arg8[%c0_10, %c0_11] : memref<16x128xf32, #tpu.memory_space<vmem>>, vector<16x128xf32>
      %cst_12 = arith.constant 0.000000e+00 : f32
      %13 = vector.broadcast %cst_12 : f32 to vector<16x128xf32>
      %14 = arith.maximumf %12, %13 : vector<16x128xf32>
      %15 = arith.truncf %14 : vector<16x128xf32> to vector<16x128xbf16>
      %c0_13 = arith.constant 0 : index
      %c0_14 = arith.constant 0 : index
      %16 = vector.load %arg5[%c0_13, %c0_14] : memref<128x128xbf16, #tpu.memory_space<vmem>>, vector<128x128xbf16>
      %cst_15 = arith.constant dense<0.000000e+00> : vector<16x128xf32>
      %17 = tpu.matmul %15, %16, %cst_15 {dimension_numbers = #tpu.dot_dimension_numbers<[1], [0], [0], [1], [0, 0, 1, 1], [], []>} : vector<16x128xbf16>, vector<128x128xbf16>, vector<16x128xf32> -> vector<16x128xf32>
      %c0_16 = arith.constant 0 : index
      %c0_17 = arith.constant 0 : index
      %18 = vector.load %arg6[%c0_16, %c0_17] : memref<1x128xf32, #tpu.memory_space<vmem>>, vector<1x128xf32>
      %19 = vector.broadcast %18 : vector<1x128xf32> to vector<16x128xf32>
      %20 = arith.addf %17, %19 : vector<16x128xf32>
      %c0_18 = arith.constant 0 : index
      %c0_19 = arith.constant 0 : index
      %21 = vector.load %arg7[%c0_18, %c0_19] : memref<16x128xf32, #tpu.memory_space<vmem>>, vector<16x128xf32>
      tpu.vector_store %arg7[%c0_18, %c0_19], %20 {strides = array<i32>} : memref<16x128xf32, #tpu.memory_space<vmem>>, vector<16x128xf32>,
    } else {
    }
    return
  }
  func.func @transform_0(%arg0: i32, %arg1: i32) -> (i32, i32) {
    %c0_i32 = arith.constant 0 : i32
    return %arg0, %arg1 : i32, i32
  }
  func.func @transform_1(%arg0: i32, %arg1: i32) -> (i32, i32) {
    %c0_i32 = arith.constant 0 : i32
    %c0_i32_0 = arith.constant 0 : i32
    return %arg1, %c0_i32 : i32, i32
  }
  func.func @transform_2(%arg0: i32, %arg1: i32) -> (i32, i32) {
    %c0_i32 = arith.constant 0 : i32
    %c0_i32_0 = arith.constant 0 : i32
    return %arg0, %c0_i32 : i32, i32
  }
  func.func @transform_3(%arg0: i32, %arg1: i32) -> (i32, i32) {
    %c0_i32 = arith.constant 0 : i32
    %c0_i32_0 = arith.constant 0 : i32
    %c0_i32_1 = arith.constant 0 : i32
    return %c0_i32, %c0_i32_0 : i32, i32
  }
  func.func @transform_4(%arg0: i32, %arg1: i32) -> (i32, i32) {
    %c0_i32 = arith.constant 0 : i32
    %c0_i32_0 = arith.constant 0 : i32
    %c0_i32_1 = arith.constant 0 : i32
    return %c0_i32, %c0_i32_0 : i32, i32
  }
  func.func @transform_5(%arg0: i32, %arg1: i32) -> (i32, i32) {
    %c0_i32 = arith.constant 0 : i32
    %c0_i32_0 = arith.constant 0 : i32
    return %arg0, %c0_i32 : i32, i32
  }
}

module attributes {stable_mosaic.version = 11 : i64} {
  func.func @_attn_tail_kernel(%arg0: i32, %arg1: memref<16x128xf32, #tpu.memory_space<vmem>>, %arg2: memref<16x128xf32, #tpu.memory_space<vmem>>, %arg3: memref<16x16xf32, #tpu.memory_space<vmem>>, %arg4: memref<128x128xbf16, #tpu.memory_space<vmem>>, %arg5: memref<1x128xf32, #tpu.memory_space<vmem>>, %arg6: memref<128x128xbf16, #tpu.memory_space<vmem>>, %arg7: memref<1x128xf32, #tpu.memory_space<vmem>>, %arg8: memref<128x128xbf16, #tpu.memory_space<vmem>>, %arg9: memref<1x128xf32, #tpu.memory_space<vmem>>, %arg10: memref<128x128xbf16, #tpu.memory_space<vmem>>, %arg11: memref<1x128xf32, #tpu.memory_space<vmem>>, %arg12: memref<128x128xbf16, #tpu.memory_space<vmem>>, %arg13: memref<1x128xf32, #tpu.memory_space<vmem>>, %arg14: memref<128x128xbf16, #tpu.memory_space<vmem>>, %arg15: memref<1x128xf32, #tpu.memory_space<vmem>>, %arg16: memref<16x128xf32, #tpu.memory_space<vmem>>) attributes {dimension_semantics = [#tpu.dimension_semantics<parallel>], iteration_bounds = array<i64: 1>, scalar_prefetch = 0 : i64, scratch_operands = 0 : i64, tpu.core_type = #tpu.core_type<tc>, window_params = [{transform_indices = @transform_0, window_bounds = array<i64: 16, 128>}, {transform_indices = @transform_1, window_bounds = array<i64: 16, 128>}, {pipeline_mode = #tpu.pipeline_mode<synchronous>, transform_indices = @transform_2, window_bounds = array<i64: 16, 16>}, {pipeline_mode = #tpu.pipeline_mode<synchronous>, transform_indices = @transform_3, window_bounds = array<i64: 128, 128>}, {pipeline_mode = #tpu.pipeline_mode<synchronous>, transform_indices = @transform_4, window_bounds = array<i64: 1, 128>}, {pipeline_mode = #tpu.pipeline_mode<synchronous>, transform_indices = @transform_5, window_bounds = array<i64: 128, 128>}, {pipeline_mode = #tpu.pipeline_mode<synchronous>, transform_indices = @transform_6, window_bounds = array<i64: 1, 128>}, {pipeline_mode = #tpu.pipeline_mode<synchronous>, transform_indices = @transform_7, window_bounds = array<i64: 128, 128>}, {pipeline_mode = #tpu.pipeline_mode<synchronous>, transform_indices = @transform_8, window_bounds = array<i64: 1, 128>}, {pipeline_mode = #tpu.pipeline_mode<synchronous>, transform_indices = @transform_9, window_bounds = array<i64: 128, 128>}, {pipeline_mode = #tpu.pipeline_mode<synchronous>, transform_indices = @transform_10, window_bounds = array<i64: 1, 128>}, {pipeline_mode = #tpu.pipeline_mode<synchronous>, transform_indices = @transform_11, window_bounds = array<i64: 128, 128>}, {pipeline_mode = #tpu.pipeline_mode<synchronous>, transform_indices = @transform_12, window_bounds = array<i64: 1, 128>}, {pipeline_mode = #tpu.pipeline_mode<synchronous>, transform_indices = @transform_13, window_bounds = array<i64: 128, 128>}, {pipeline_mode = #tpu.pipeline_mode<synchronous>, transform_indices = @transform_14, window_bounds = array<i64: 1, 128>}, {transform_indices = @transform_15, window_bounds = array<i64: 16, 128>}]} {
    %c0 = arith.constant 0 : index
    %c0_0 = arith.constant 0 : index
    %0 = vector.load %arg1[%c0, %c0_0] : memref<16x128xf32, #tpu.memory_space<vmem>>, vector<16x128xf32>
    %c0_1 = arith.constant 0 : index
    %c0_2 = arith.constant 0 : index
    %1 = vector.load %arg2[%c0_1, %c0_2] : memref<16x128xf32, #tpu.memory_space<vmem>>, vector<16x128xf32>
    %c0_3 = arith.constant 0 : index
    %c0_4 = arith.constant 0 : index
    %2 = vector.load %arg3[%c0_3, %c0_4] : memref<16x16xf32, #tpu.memory_space<vmem>>, vector<16x16xf32>
    %3 = arith.truncf %0 : vector<16x128xf32> to vector<16x128xbf16>
    %4 = arith.truncf %1 : vector<16x128xf32> to vector<16x128xbf16>
    %cst = arith.constant 0.000000e+00 : f32
    %5 = vector.broadcast %cst : f32 to vector<16x128xf32>
    %c0_5 = arith.constant 0 : index
    %c0_6 = arith.constant 0 : index
    %6 = vector.load %arg4[%c0_5, %c0_6] : memref<128x128xbf16, #tpu.memory_space<vmem>>, vector<128x32xbf16>
    %cst_7 = arith.constant dense<0.000000e+00> : vector<16x32xf32>
    %7 = tpu.matmul %3, %6, %cst_7 {dimension_numbers = #tpu.dot_dimension_numbers<[1], [0], [0], [1], [0, 0, 1, 1], [], []>} : vector<16x128xbf16>, vector<128x32xbf16>, vector<16x32xf32> -> vector<16x32xf32>
    %c0_8 = arith.constant 0 : index
    %c0_9 = arith.constant 0 : index
    %8 = vector.load %arg5[%c0_8, %c0_9] : memref<1x128xf32, #tpu.memory_space<vmem>>, vector<1x32xf32>
    %9 = vector.broadcast %8 : vector<1x32xf32> to vector<16x32xf32>
    %10 = arith.addf %7, %9 : vector<16x32xf32>
    %cst_10 = arith.constant 0.176776692 : f32
    %11 = vector.broadcast %cst_10 : f32 to vector<16x32xf32>
    %12 = arith.mulf %10, %11 : vector<16x32xf32>
    %c0_11 = arith.constant 0 : index
    %c0_12 = arith.constant 0 : index
    %13 = vector.load %arg6[%c0_11, %c0_12] : memref<128x128xbf16, #tpu.memory_space<vmem>>, vector<128x32xbf16>
    %cst_13 = arith.constant dense<0.000000e+00> : vector<16x32xf32>
    %14 = tpu.matmul %4, %13, %cst_13 {dimension_numbers = #tpu.dot_dimension_numbers<[1], [0], [0], [1], [0, 0, 1, 1], [], []>} : vector<16x128xbf16>, vector<128x32xbf16>, vector<16x32xf32> -> vector<16x32xf32>
    %c0_14 = arith.constant 0 : index
    %c0_15 = arith.constant 0 : index
    %15 = vector.load %arg7[%c0_14, %c0_15] : memref<1x128xf32, #tpu.memory_space<vmem>>, vector<1x32xf32>
    %16 = vector.broadcast %15 : vector<1x32xf32> to vector<16x32xf32>
    %17 = arith.addf %14, %16 : vector<16x32xf32>
    %c0_16 = arith.constant 0 : index
    %c0_17 = arith.constant 0 : index
    %18 = vector.load %arg8[%c0_16, %c0_17] : memref<128x128xbf16, #tpu.memory_space<vmem>>, vector<128x32xbf16>
    %cst_18 = arith.constant dense<0.000000e+00> : vector<16x32xf32>
    %19 = tpu.matmul %4, %18, %cst_18 {dimension_numbers = #tpu.dot_dimension_numbers<[1], [0], [0], [1], [0, 0, 1, 1], [], []>} : vector<16x128xbf16>, vector<128x32xbf16>, vector<16x32xf32> -> vector<16x32xf32>
    %c0_19 = arith.constant 0 : index
    %c0_20 = arith.constant 0 : index
    %20 = vector.load %arg9[%c0_19, %c0_20] : memref<1x128xf32, #tpu.memory_space<vmem>>, vector<1x32xf32>
    %21 = vector.broadcast %20 : vector<1x32xf32> to vector<16x32xf32>
    %22 = arith.addf %19, %21 : vector<16x32xf32>
    %23 = arith.truncf %22 : vector<16x32xf32> to vector<16x32xbf16>
    %24 = arith.truncf %12 : vector<16x32xf32> to vector<16x32xbf16>
    %25 = arith.truncf %17 : vector<16x32xf32> to vector<16x32xbf16>
    %cst_21 = arith.constant dense<0.000000e+00> : vector<16x16xf32>
    %26 = tpu.matmul %24, %25, %cst_21 {dimension_numbers = #tpu.dot_dimension_numbers<[1], [1], [0], [0], [0, 0, 1, 0], [], []>} : vector<16x32xbf16>, vector<16x32xbf16>, vector<16x16xf32> -> vector<16x16xf32>
    %27 = arith.addf %26, %2 : vector<16x16xf32>
    %cst_22 = arith.constant dense<0xFF800000> : vector<16xf32>
    %28 = vector.multi_reduction <maximumf>, %27, %cst_22 [1] : vector<16x16xf32> to vector<16xf32>
    %29 = vector.shape_cast %28 : vector<16xf32> to vector<16x1xf32>
    %30 = vector.broadcast %29 : vector<16x1xf32> to vector<16x16xf32>
    %31 = arith.subf %27, %30 : vector<16x16xf32>
    %32 = math.exp %31 : vector<16x16xf32>
    %cst_23 = arith.constant dense<0.000000e+00> : vector<16xf32>
    %33 = vector.multi_reduction <add>, %32, %cst_23 [1] : vector<16x16xf32> to vector<16xf32>
    %34 = vector.shape_cast %33 : vector<16xf32> to vector<16x1xf32>
    %35 = tpu.reciprocal %34 {approx = true} : vector<16x1xf32> -> vector<16x1xf32>
    %36 = vector.broadcast %35 : vector<16x1xf32> to vector<16x16xf32>
    %37 = arith.mulf %32, %36 : vector<16x16xf32>
    %38 = arith.truncf %37 : vector<16x16xf32> to vector<16x16xbf16>
    %cst_24 = arith.constant dense<0.000000e+00> : vector<16x32xf32>
    %39 = tpu.matmul %38, %23, %cst_24 {dimension_numbers = #tpu.dot_dimension_numbers<[1], [0], [0], [1], [0, 0, 1, 1], [], []>} : vector<16x16xbf16>, vector<16x32xbf16>, vector<16x32xf32> -> vector<16x32xf32>
    %40 = arith.truncf %39 : vector<16x32xf32> to vector<16x32xbf16>
    %c0_25 = arith.constant 0 : index
    %c0_26 = arith.constant 0 : index
    %41 = vector.load %arg10[%c0_25, %c0_26] : memref<128x128xbf16, #tpu.memory_space<vmem>>, vector<32x128xbf16>
    %cst_27 = arith.constant dense<0.000000e+00> : vector<16x128xf32>
    %42 = tpu.matmul %40, %41, %cst_27 {dimension_numbers = #tpu.dot_dimension_numbers<[1], [0], [0], [1], [0, 0, 1, 1], [], []>} : vector<16x32xbf16>, vector<32x128xbf16>, vector<16x128xf32> -> vector<16x128xf32>
    %43 = arith.addf %5, %42 : vector<16x128xf32>
    %c0_28 = arith.constant 0 : index
    %c32 = arith.constant 32 : index
    %44 = vector.load %arg4[%c0_28, %c32] : memref<128x128xbf16, #tpu.memory_space<vmem>>, vector<128x32xbf16>
    %cst_29 = arith.constant dense<0.000000e+00> : vector<16x32xf32>
    %45 = tpu.matmul %3, %44, %cst_29 {dimension_numbers = #tpu.dot_dimension_numbers<[1], [0], [0], [1], [0, 0, 1, 1], [], []>} : vector<16x128xbf16>, vector<128x32xbf16>, vector<16x32xf32> -> vector<16x32xf32>
    %c0_30 = arith.constant 0 : index
    %c32_31 = arith.constant 32 : index
    %46 = vector.load %arg5[%c0_30, %c32_31] : memref<1x128xf32, #tpu.memory_space<vmem>>, vector<1x32xf32>
    %47 = vector.broadcast %46 : vector<1x32xf32> to vector<16x32xf32>
    %48 = arith.addf %45, %47 : vector<16x32xf32>
    %cst_32 = arith.constant 0.176776692 : f32
    %49 = vector.broadcast %cst_32 : f32 to vector<16x32xf32>
    %50 = arith.mulf %48, %49 : vector<16x32xf32>
    %c0_33 = arith.constant 0 : index
    %c32_34 = arith.constant 32 : index
    %51 = vector.load %arg6[%c0_33, %c32_34] : memref<128x128xbf16, #tpu.memory_space<vmem>>, vector<128x32xbf16>
    %cst_35 = arith.constant dense<0.000000e+00> : vector<16x32xf32>
    %52 = tpu.matmul %4, %51, %cst_35 {dimension_numbers = #tpu.dot_dimension_numbers<[1], [0], [0], [1], [0, 0, 1, 1], [], []>} : vector<16x128xbf16>, vector<128x32xbf16>, vector<16x32xf32> -> vector<16x32xf32>
    %c0_36 = arith.constant 0 : index
    %c32_37 = arith.constant 32 : index
    %53 = vector.load %arg7[%c0_36, %c32_37] : memref<1x128xf32, #tpu.memory_space<vmem>>, vector<1x32xf32>
    %54 = vector.broadcast %53 : vector<1x32xf32> to vector<16x32xf32>
    %55 = arith.addf %52, %54 : vector<16x32xf32>
    %c0_38 = arith.constant 0 : index
    %c32_39 = arith.constant 32 : index
    %56 = vector.load %arg8[%c0_38, %c32_39] : memref<128x128xbf16, #tpu.memory_space<vmem>>, vector<128x32xbf16>
    %cst_40 = arith.constant dense<0.000000e+00> : vector<16x32xf32>
    %57 = tpu.matmul %4, %56, %cst_40 {dimension_numbers = #tpu.dot_dimension_numbers<[1], [0], [0], [1], [0, 0, 1, 1], [], []>} : vector<16x128xbf16>, vector<128x32xbf16>, vector<16x32xf32> -> vector<16x32xf32>
    %c0_41 = arith.constant 0 : index
    %c32_42 = arith.constant 32 : index
    %58 = vector.load %arg9[%c0_41, %c32_42] : memref<1x128xf32, #tpu.memory_space<vmem>>, vector<1x32xf32>
    %59 = vector.broadcast %58 : vector<1x32xf32> to vector<16x32xf32>
    %60 = arith.addf %57, %59 : vector<16x32xf32>
    %61 = arith.truncf %60 : vector<16x32xf32> to vector<16x32xbf16>
    %62 = arith.truncf %50 : vector<16x32xf32> to vector<16x32xbf16>
    %63 = arith.truncf %55 : vector<16x32xf32> to vector<16x32xbf16>
    %cst_43 = arith.constant dense<0.000000e+00> : vector<16x16xf32>
    %64 = tpu.matmul %62, %63, %cst_43 {dimension_numbers = #tpu.dot_dimension_numbers<[1], [1], [0], [0], [0, 0, 1, 0], [], []>} : vector<16x32xbf16>, vector<16x32xbf16>, vector<16x16xf32> -> vector<16x16xf32>
    %65 = arith.addf %64, %2 : vector<16x16xf32>
    %cst_44 = arith.constant dense<0xFF800000> : vector<16xf32>
    %66 = vector.multi_reduction <maximumf>, %65, %cst_44 [1] : vector<16x16xf32> to vector<16xf32>
    %67 = vector.shape_cast %66 : vector<16xf32> to vector<16x1xf32>
    %68 = vector.broadcast %67 : vector<16x1xf32> to vector<16x16xf32>
    %69 = arith.subf %65, %68 : vector<16x16xf32>
    %70 = math.exp %69 : vector<16x16xf32>
    %cst_45 = arith.constant dense<0.000000e+00> : vector<16xf32>
    %71 = vector.multi_reduction <add>, %70, %cst_45 [1] : vector<16x16xf32> to vector<16xf32>
    %72 = vector.shape_cast %71 : vector<16xf32> to vector<16x1xf32>
    %73 = tpu.reciprocal %72 {approx = true} : vector<16x1xf32> -> vector<16x1xf32>
    %74 = vector.broadcast %73 : vector<16x1xf32> to vector<16x16xf32>
    %75 = arith.mulf %70, %74 : vector<16x16xf32>
    %76 = arith.truncf %75 : vector<16x16xf32> to vector<16x16xbf16>
    %cst_46 = arith.constant dense<0.000000e+00> : vector<16x32xf32>
    %77 = tpu.matmul %76, %61, %cst_46 {dimension_numbers = #tpu.dot_dimension_numbers<[1], [0], [0], [1], [0, 0, 1, 1], [], []>} : vector<16x16xbf16>, vector<16x32xbf16>, vector<16x32xf32> -> vector<16x32xf32>
    %78 = arith.truncf %77 : vector<16x32xf32> to vector<16x32xbf16>
    %c32_47 = arith.constant 32 : index
    %c0_48 = arith.constant 0 : index
    %79 = vector.load %arg10[%c32_47, %c0_48] : memref<128x128xbf16, #tpu.memory_space<vmem>>, vector<32x128xbf16>
    %cst_49 = arith.constant dense<0.000000e+00> : vector<16x128xf32>
    %80 = tpu.matmul %78, %79, %cst_49 {dimension_numbers = #tpu.dot_dimension_numbers<[1], [0], [0], [1], [0, 0, 1, 1], [], []>} : vector<16x32xbf16>, vector<32x128xbf16>, vector<16x128xf32> -> vector<16x128xf32>
    %81 = arith.addf %43, %80 : vector<16x128xf32>
    %c0_50 = arith.constant 0 : index
    %c64 = arith.constant 64 : index
    %82 = vector.load %arg4[%c0_50, %c64] : memref<128x128xbf16, #tpu.memory_space<vmem>>, vector<128x32xbf16>
    %cst_51 = arith.constant dense<0.000000e+00> : vector<16x32xf32>
    %83 = tpu.matmul %3, %82, %cst_51 {dimension_numbers = #tpu.dot_dimension_numbers<[1], [0], [0], [1], [0, 0, 1, 1], [], []>} : vector<16x128xbf16>, vector<128x32xbf16>, vector<16x32xf32> -> vector<16x32xf32>
    %c0_52 = arith.constant 0 : index
    %c64_53 = arith.constant 64 : index
    %84 = vector.load %arg5[%c0_52, %c64_53] : memref<1x128xf32, #tpu.memory_space<vmem>>, vector<1x32xf32>
    %85 = vector.broadcast %84 : vector<1x32xf32> to vector<16x32xf32>
    %86 = arith.addf %83, %85 : vector<16x32xf32>
    %cst_54 = arith.constant 0.176776692 : f32
    %87 = vector.broadcast %cst_54 : f32 to vector<16x32xf32>
    %88 = arith.mulf %86, %87 : vector<16x32xf32>
    %c0_55 = arith.constant 0 : index
    %c64_56 = arith.constant 64 : index
    %89 = vector.load %arg6[%c0_55, %c64_56] : memref<128x128xbf16, #tpu.memory_space<vmem>>, vector<128x32xbf16>
    %cst_57 = arith.constant dense<0.000000e+00> : vector<16x32xf32>
    %90 = tpu.matmul %4, %89, %cst_57 {dimension_numbers = #tpu.dot_dimension_numbers<[1], [0], [0], [1], [0, 0, 1, 1], [], []>} : vector<16x128xbf16>, vector<128x32xbf16>, vector<16x32xf32> -> vector<16x32xf32>
    %c0_58 = arith.constant 0 : index
    %c64_59 = arith.constant 64 : index
    %91 = vector.load %arg7[%c0_58, %c64_59] : memref<1x128xf32, #tpu.memory_space<vmem>>, vector<1x32xf32>
    %92 = vector.broadcast %91 : vector<1x32xf32> to vector<16x32xf32>
    %93 = arith.addf %90, %92 : vector<16x32xf32>
    %c0_60 = arith.constant 0 : index
    %c64_61 = arith.constant 64 : index
    %94 = vector.load %arg8[%c0_60, %c64_61] : memref<128x128xbf16, #tpu.memory_space<vmem>>, vector<128x32xbf16>
    %cst_62 = arith.constant dense<0.000000e+00> : vector<16x32xf32>
    %95 = tpu.matmul %4, %94, %cst_62 {dimension_numbers = #tpu.dot_dimension_numbers<[1], [0], [0], [1], [0, 0, 1, 1], [], []>} : vector<16x128xbf16>, vector<128x32xbf16>, vector<16x32xf32> -> vector<16x32xf32>
    %c0_63 = arith.constant 0 : index
    %c64_64 = arith.constant 64 : index
    %96 = vector.load %arg9[%c0_63, %c64_64] : memref<1x128xf32, #tpu.memory_space<vmem>>, vector<1x32xf32>
    %97 = vector.broadcast %96 : vector<1x32xf32> to vector<16x32xf32>
    %98 = arith.addf %95, %97 : vector<16x32xf32>
    %99 = arith.truncf %98 : vector<16x32xf32> to vector<16x32xbf16>
    %100 = arith.truncf %88 : vector<16x32xf32> to vector<16x32xbf16>
    %101 = arith.truncf %93 : vector<16x32xf32> to vector<16x32xbf16>
    %cst_65 = arith.constant dense<0.000000e+00> : vector<16x16xf32>
    %102 = tpu.matmul %100, %101, %cst_65 {dimension_numbers = #tpu.dot_dimension_numbers<[1], [1], [0], [0], [0, 0, 1, 0], [], []>} : vector<16x32xbf16>, vector<16x32xbf16>, vector<16x16xf32> -> vector<16x16xf32>
    %103 = arith.addf %102, %2 : vector<16x16xf32>
    %cst_66 = arith.constant dense<0xFF800000> : vector<16xf32>
    %104 = vector.multi_reduction <maximumf>, %103, %cst_66 [1] : vector<16x16xf32> to vector<16xf32>
    %105 = vector.shape_cast %104 : vector<16xf32> to vector<16x1xf32>
    %106 = vector.broadcast %105 : vector<16x1xf32> to vector<16x16xf32>
    %107 = arith.subf %103, %106 : vector<16x16xf32>
    %108 = math.exp %107 : vector<16x16xf32>
    %cst_67 = arith.constant dense<0.000000e+00> : vector<16xf32>
    %109 = vector.multi_reduction <add>, %108, %cst_67 [1] : vector<16x16xf32> to vector<16xf32>
    %110 = vector.shape_cast %109 : vector<16xf32> to vector<16x1xf32>
    %111 = tpu.reciprocal %110 {approx = true} : vector<16x1xf32> -> vector<16x1xf32>
    %112 = vector.broadcast %111 : vector<16x1xf32> to vector<16x16xf32>
    %113 = arith.mulf %108, %112 : vector<16x16xf32>
    %114 = arith.truncf %113 : vector<16x16xf32> to vector<16x16xbf16>
    %cst_68 = arith.constant dense<0.000000e+00> : vector<16x32xf32>
    %115 = tpu.matmul %114, %99, %cst_68 {dimension_numbers = #tpu.dot_dimension_numbers<[1], [0], [0], [1], [0, 0, 1, 1], [], []>} : vector<16x16xbf16>, vector<16x32xbf16>, vector<16x32xf32> -> vector<16x32xf32>
    %116 = arith.truncf %115 : vector<16x32xf32> to vector<16x32xbf16>
    %c64_69 = arith.constant 64 : index
    %c0_70 = arith.constant 0 : index
    %117 = vector.load %arg10[%c64_69, %c0_70] : memref<128x128xbf16, #tpu.memory_space<vmem>>, vector<32x128xbf16>
    %cst_71 = arith.constant dense<0.000000e+00> : vector<16x128xf32>
    %118 = tpu.matmul %116, %117, %cst_71 {dimension_numbers = #tpu.dot_dimension_numbers<[1], [0], [0], [1], [0, 0, 1, 1], [], []>} : vector<16x32xbf16>, vector<32x128xbf16>, vector<16x128xf32> -> vector<16x128xf32>
    %119 = arith.addf %81, %118 : vector<16x128xf32>
    %c0_72 = arith.constant 0 : index
    %c96 = arith.constant 96 : index
    %120 = vector.load %arg4[%c0_72, %c96] : memref<128x128xbf16, #tpu.memory_space<vmem>>, vector<128x32xbf16>
    %cst_73 = arith.constant dense<0.000000e+00> : vector<16x32xf32>
    %121 = tpu.matmul %3, %120, %cst_73 {dimension_numbers = #tpu.dot_dimension_numbers<[1], [0], [0], [1], [0, 0, 1, 1], [], []>} : vector<16x128xbf16>, vector<128x32xbf16>, vector<16x32xf32> -> vector<16x32xf32>
    %c0_74 = arith.constant 0 : index
    %c96_75 = arith.constant 96 : index
    %122 = vector.load %arg5[%c0_74, %c96_75] : memref<1x128xf32, #tpu.memory_space<vmem>>, vector<1x32xf32>
    %123 = vector.broadcast %122 : vector<1x32xf32> to vector<16x32xf32>
    %124 = arith.addf %121, %123 : vector<16x32xf32>
    %cst_76 = arith.constant 0.176776692 : f32
    %125 = vector.broadcast %cst_76 : f32 to vector<16x32xf32>
    %126 = arith.mulf %124, %125 : vector<16x32xf32>
    %c0_77 = arith.constant 0 : index
    %c96_78 = arith.constant 96 : index
    %127 = vector.load %arg6[%c0_77, %c96_78] : memref<128x128xbf16, #tpu.memory_space<vmem>>, vector<128x32xbf16>
    %cst_79 = arith.constant dense<0.000000e+00> : vector<16x32xf32>
    %128 = tpu.matmul %4, %127, %cst_79 {dimension_numbers = #tpu.dot_dimension_numbers<[1], [0], [0], [1], [0, 0, 1, 1], [], []>} : vector<16x128xbf16>, vector<128x32xbf16>, vector<16x32xf32> -> vector<16x32xf32>
    %c0_80 = arith.constant 0 : index
    %c96_81 = arith.constant 96 : index
    %129 = vector.load %arg7[%c0_80, %c96_81] : memref<1x128xf32, #tpu.memory_space<vmem>>, vector<1x32xf32>
    %130 = vector.broadcast %129 : vector<1x32xf32> to vector<16x32xf32>
    %131 = arith.addf %128, %130 : vector<16x32xf32>
    %c0_82 = arith.constant 0 : index
    %c96_83 = arith.constant 96 : index
    %132 = vector.load %arg8[%c0_82, %c96_83] : memref<128x128xbf16, #tpu.memory_space<vmem>>, vector<128x32xbf16>
    %cst_84 = arith.constant dense<0.000000e+00> : vector<16x32xf32>
    %133 = tpu.matmul %4, %132, %cst_84 {dimension_numbers = #tpu.dot_dimension_numbers<[1], [0], [0], [1], [0, 0, 1, 1], [], []>} : vector<16x128xbf16>, vector<128x32xbf16>, vector<16x32xf32> -> vector<16x32xf32>
    %c0_85 = arith.constant 0 : index
    %c96_86 = arith.constant 96 : index
    %134 = vector.load %arg9[%c0_85, %c96_86] : memref<1x128xf32, #tpu.memory_space<vmem>>, vector<1x32xf32>
    %135 = vector.broadcast %134 : vector<1x32xf32> to vector<16x32xf32>
    %136 = arith.addf %133, %135 : vector<16x32xf32>
    %137 = arith.truncf %136 : vector<16x32xf32> to vector<16x32xbf16>
    %138 = arith.truncf %126 : vector<16x32xf32> to vector<16x32xbf16>
    %139 = arith.truncf %131 : vector<16x32xf32> to vector<16x32xbf16>
    %cst_87 = arith.constant dense<0.000000e+00> : vector<16x16xf32>
    %140 = tpu.matmul %138, %139, %cst_87 {dimension_numbers = #tpu.dot_dimension_numbers<[1], [1], [0], [0], [0, 0, 1, 0], [], []>} : vector<16x32xbf16>, vector<16x32xbf16>, vector<16x16xf32> -> vector<16x16xf32>
    %141 = arith.addf %140, %2 : vector<16x16xf32>
    %cst_88 = arith.constant dense<0xFF800000> : vector<16xf32>
    %142 = vector.multi_reduction <maximumf>, %141, %cst_88 [1] : vector<16x16xf32> to vector<16xf32>
    %143 = vector.shape_cast %142 : vector<16xf32> to vector<16x1xf32>
    %144 = vector.broadcast %143 : vector<16x1xf32> to vector<16x16xf32>
    %145 = arith.subf %141, %144 : vector<16x16xf32>
    %146 = math.exp %145 : vector<16x16xf32>
    %cst_89 = arith.constant dense<0.000000e+00> : vector<16xf32>
    %147 = vector.multi_reduction <add>, %146, %cst_89 [1] : vector<16x16xf32> to vector<16xf32>
    %148 = vector.shape_cast %147 : vector<16xf32> to vector<16x1xf32>
    %149 = tpu.reciprocal %148 {approx = true} : vector<16x1xf32> -> vector<16x1xf32>
    %150 = vector.broadcast %149 : vector<16x1xf32> to vector<16x16xf32>
    %151 = arith.mulf %146, %150 : vector<16x16xf32>
    %152 = arith.truncf %151 : vector<16x16xf32> to vector<16x16xbf16>
    %cst_90 = arith.constant dense<0.000000e+00> : vector<16x32xf32>
    %153 = tpu.matmul %152, %137, %cst_90 {dimension_numbers = #tpu.dot_dimension_numbers<[1], [0], [0], [1], [0, 0, 1, 1], [], []>} : vector<16x16xbf16>, vector<16x32xbf16>, vector<16x32xf32> -> vector<16x32xf32>
    %154 = arith.truncf %153 : vector<16x32xf32> to vector<16x32xbf16>
    %c96_91 = arith.constant 96 : index
    %c0_92 = arith.constant 0 : index
    %155 = vector.load %arg10[%c96_91, %c0_92] : memref<128x128xbf16, #tpu.memory_space<vmem>>, vector<32x128xbf16>
    %cst_93 = arith.constant dense<0.000000e+00> : vector<16x128xf32>
    %156 = tpu.matmul %154, %155, %cst_93 {dimension_numbers = #tpu.dot_dimension_numbers<[1], [0], [0], [1], [0, 0, 1, 1], [], []>} : vector<16x32xbf16>, vector<32x128xbf16>, vector<16x128xf32> -> vector<16x128xf32>
    %157 = arith.addf %119, %156 : vector<16x128xf32>
    %c0_94 = arith.constant 0 : index
    %c0_95 = arith.constant 0 : index
    %158 = vector.load %arg11[%c0_94, %c0_95] : memref<1x128xf32, #tpu.memory_space<vmem>>, vector<1x128xf32>
    %159 = vector.broadcast %158 : vector<1x128xf32> to vector<16x128xf32>
    %160 = arith.addf %157, %159 : vector<16x128xf32>
    %161 = arith.truncf %160 : vector<16x128xf32> to vector<16x128xbf16>
    %c0_96 = arith.constant 0 : index
    %c0_97 = arith.constant 0 : index
    %162 = vector.load %arg12[%c0_96, %c0_97] : memref<128x128xbf16, #tpu.memory_space<vmem>>, vector<128x128xbf16>
    %cst_98 = arith.constant dense<0.000000e+00> : vector<16x128xf32>
    %163 = tpu.matmul %161, %162, %cst_98 {dimension_numbers = #tpu.dot_dimension_numbers<[1], [0], [0], [1], [0, 0, 1, 1], [], []>} : vector<16x128xbf16>, vector<128x128xbf16>, vector<16x128xf32> -> vector<16x128xf32>
    %c0_99 = arith.constant 0 : index
    %c0_100 = arith.constant 0 : index
    %164 = vector.load %arg13[%c0_99, %c0_100] : memref<1x128xf32, #tpu.memory_space<vmem>>, vector<1x128xf32>
    %165 = vector.broadcast %164 : vector<1x128xf32> to vector<16x128xf32>
    %166 = arith.addf %163, %165 : vector<16x128xf32>
    %167 = arith.addf %166, %1 : vector<16x128xf32>
    %168 = arith.truncf %167 : vector<16x128xf32> to vector<16x128xbf16>
    %c0_101 = arith.constant 0 : index
    %c0_102 = arith.constant 0 : index
    %169 = vector.load %arg14[%c0_101, %c0_102] : memref<128x128xbf16, #tpu.memory_space<vmem>>, vector<128x128xbf16>
    %cst_103 = arith.constant dense<0.000000e+00> : vector<16x128xf32>
    %170 = tpu.matmul %168, %169, %cst_103 {dimension_numbers = #tpu.dot_dimension_numbers<[1], [0], [0], [1], [0, 0, 1, 1], [], []>} : vector<16x128xbf16>, vector<128x128xbf16>, vector<16x128xf32> -> vector<16x128xf32>
    %c0_104 = arith.constant 0 : index
    %c0_105 = arith.constant 0 : index
    %171 = vector.load %arg15[%c0_104, %c0_105] : memref<1x128xf32, #tpu.memory_space<vmem>>, vector<1x128xf32>
    %172 = vector.broadcast %171 : vector<1x128xf32> to vector<16x128xf32>
    %173 = arith.addf %170, %172 : vector<16x128xf32>
    %c0_106 = arith.constant 0 : index
    %c0_107 = arith.constant 0 : index
    %174 = vector.load %arg16[%c0_106, %c0_107] : memref<16x128xf32, #tpu.memory_space<vmem>>, vector<16x128xf32>
    tpu.vector_store %arg16[%c0_106, %c0_107], %173 {strides = array<i32>} : memref<16x128xf32, #tpu.memory_space<vmem>>, vector<16x128xf32>,
    return
  }
  func.func @transform_0(%arg0: i32) -> (i32, i32) {
    %c0_i32 = arith.constant 0 : i32
    %c0_i32_0 = arith.constant 0 : i32
    return %arg0, %c0_i32 : i32, i32
  }
  func.func @transform_1(%arg0: i32) -> (i32, i32) {
    %c0_i32 = arith.constant 0 : i32
    %c0_i32_0 = arith.constant 0 : i32
    return %arg0, %c0_i32 : i32, i32
  }
  func.func @transform_2(%arg0: i32) -> (i32, i32) {
    %c0_i32 = arith.constant 0 : i32
    %c0_i32_0 = arith.constant 0 : i32
    %c0_i32_1 = arith.constant 0 : i32
    return %c0_i32, %c0_i32_0 : i32, i32
  }
  func.func @transform_3(%arg0: i32) -> (i32, i32) {
    %c0_i32 = arith.constant 0 : i32
    %c0_i32_0 = arith.constant 0 : i32
    %c0_i32_1 = arith.constant 0 : i32
    return %c0_i32, %c0_i32_0 : i32, i32
  }
  func.func @transform_4(%arg0: i32) -> (i32, i32) {
    %c0_i32 = arith.constant 0 : i32
    %c0_i32_0 = arith.constant 0 : i32
    %c0_i32_1 = arith.constant 0 : i32
    return %c0_i32, %c0_i32_0 : i32, i32
  }
  func.func @transform_5(%arg0: i32) -> (i32, i32) {
    %c0_i32 = arith.constant 0 : i32
    %c0_i32_0 = arith.constant 0 : i32
    %c0_i32_1 = arith.constant 0 : i32
    return %c0_i32, %c0_i32_0 : i32, i32
  }
  func.func @transform_6(%arg0: i32) -> (i32, i32) {
    %c0_i32 = arith.constant 0 : i32
    %c0_i32_0 = arith.constant 0 : i32
    %c0_i32_1 = arith.constant 0 : i32
    return %c0_i32, %c0_i32_0 : i32, i32
  }
  func.func @transform_7(%arg0: i32) -> (i32, i32) {
    %c0_i32 = arith.constant 0 : i32
    %c0_i32_0 = arith.constant 0 : i32
    %c0_i32_1 = arith.constant 0 : i32
    return %c0_i32, %c0_i32_0 : i32, i32
  }
  func.func @transform_8(%arg0: i32) -> (i32, i32) {
    %c0_i32 = arith.constant 0 : i32
    %c0_i32_0 = arith.constant 0 : i32
    %c0_i32_1 = arith.constant 0 : i32
    return %c0_i32, %c0_i32_0 : i32, i32
  }
  func.func @transform_9(%arg0: i32) -> (i32, i32) {
    %c0_i32 = arith.constant 0 : i32
    %c0_i32_0 = arith.constant 0 : i32
    %c0_i32_1 = arith.constant 0 : i32
    return %c0_i32, %c0_i32_0 : i32, i32
  }
  func.func @transform_10(%arg0: i32) -> (i32, i32) {
    %c0_i32 = arith.constant 0 : i32
    %c0_i32_0 = arith.constant 0 : i32
    %c0_i32_1 = arith.constant 0 : i32
    return %c0_i32, %c0_i32_0 : i32, i32
  }
  func.func @transform_11(%arg0: i32) -> (i32, i32) {
    %c0_i32 = arith.constant 0 : i32
    %c0_i32_0 = arith.constant 0 : i32
    %c0_i32_1 = arith.constant 0 : i32
    return %c0_i32, %c0_i32_0 : i32, i32
  }
  func.func @transform_12(%arg0: i32) -> (i32, i32) {
    %c0_i32 = arith.constant 0 : i32
    %c0_i32_0 = arith.constant 0 : i32
    %c0_i32_1 = arith.constant 0 : i32
    return %c0_i32, %c0_i32_0 : i32, i32
  }
  func.func @transform_13(%arg0: i32) -> (i32, i32) {
    %c0_i32 = arith.constant 0 : i32
    %c0_i32_0 = arith.constant 0 : i32
    %c0_i32_1 = arith.constant 0 : i32
    return %c0_i32, %c0_i32_0 : i32, i32
  }
  func.func @transform_14(%arg0: i32) -> (i32, i32) {
    %c0_i32 = arith.constant 0 : i32
    %c0_i32_0 = arith.constant 0 : i32
    %c0_i32_1 = arith.constant 0 : i32
    return %c0_i32, %c0_i32_0 : i32, i32
  }
  func.func @transform_15(%arg0: i32) -> (i32, i32) {
    %c0_i32 = arith.constant 0 : i32
    %c0_i32_0 = arith.constant 0 : i32
    return %arg0, %c0_i32 : i32, i32
  }
}

</mosaic_0001>

<llo_original>
// kernel: lm_concat_rgcn_attn_forward.5
$region0: #{lm_concat_rgcn_attn_forward.5}
  #allocation0 [shape = 'u32[]', space=smem, size = 0x4, offset = 0x4, fixed_abs, tag = 'smem constant byte address 0x4 - core index']
  #allocation1 [shape = 'u32[72,128]{1,0:T(1,128)}', space=vmem, size = 0x9000, scoped, tag = 'internal scratch']
  #allocation2 [shape = 'f32[16,128]{1,0:T(8,128)}', space=vmem, size = 0x2000, scoped, tag = 'scratch operand']
  %s0 = inlined_call_operand.vmem [shape: bf16[16,48], index: 0, kind: input, shape index: {}]
  %s1 = inlined_call_operand.vmem [shape: bf16[48,128], index: 1, kind: input, shape index: {}]
  %s2 = inlined_call_operand.vmem [shape: f32[16,128], index: 2, kind: input, shape index: {}]
  %s3 = inlined_call_operand.vmem [shape: bf16[128,384], index: 3, kind: input, shape index: {}]
  %s4 = inlined_call_operand.vmem [shape: bf16[128,128], index: 4, kind: input, shape index: {}]
  %s5 = inlined_call_operand.vmem [shape: f32[1,128], index: 5, kind: input, shape index: {}]
  %s6 = inlined_call_operand.vmem [shape: bf16[3,16,128], index: 6, kind: output, shape index: {0}]
  %s7 = inlined_call_operand.vmem [shape: f32[16,128], index: 7, kind: output, shape index: {1}]
  %8 = xla_tuple %s6, %s7
  %s9 = sld [smem:[#allocation0]]
  $region50: #{lm_concat_rgcn_attn_forward.5} parent=0
    _
  %s11 = ssub.s32 1, %s9
  %s12 = scalar_select 0, %s11, %s9
  // Predicated region
  $region2: #{lm_concat_rgcn_attn_forward.5} parent=0 // pred_check
    _
  $region3: #{lm_concat_rgcn_attn_forward.5} parent=0 // pred_check_branch
    %14 = sbr.rel (0) target = $region5
  $region4: #{lm_concat_rgcn_attn_forward.5} parent=0 // pred_region
    _
  $region5: #{lm_concat_rgcn_attn_forward.5} parent=0 // pred_fallthru
    _
  // Predicated region
  $region6: #{lm_concat_rgcn_attn_forward.5} parent=0 // pred_check
    _
  $region7: #{lm_concat_rgcn_attn_forward.5} parent=0 // pred_check_branch
    %16 = sbr.rel (0) target = $region9
  $region8: #{lm_concat_rgcn_attn_forward.5} parent=0 // pred_region
    _
  $region9: #{lm_concat_rgcn_attn_forward.5} parent=0 // pred_fallthru
    _
  // Predicated region
  $region10: #{lm_concat_rgcn_attn_forward.5} parent=0 // pred_check
    _
  $region11: #{lm_concat_rgcn_attn_forward.5} parent=0 // pred_check_branch
    %18 = sbr.rel (0) target = $region13
  $region12: #{lm_concat_rgcn_attn_forward.5} parent=0 // pred_region
    _
  $region13: #{lm_concat_rgcn_attn_forward.5} parent=0 // pred_fallthru
    _
  // Predicated region
  $region14: #{lm_concat_rgcn_attn_forward.5} parent=0 // pred_check
    _
  $region15: #{lm_concat_rgcn_attn_forward.5} parent=0 // pred_check_branch
    %20 = sbr.rel (0) target = $region17
  $region16: #{lm_concat_rgcn_attn_forward.5} parent=0 // pred_region
    _
  $region17: #{lm_concat_rgcn_attn_forward.5} parent=0 // pred_fallthru
    _
  // Predicated region
  $region18: #{lm_concat_rgcn_attn_forward.5} parent=0 // pred_check
    _
  $region19: #{lm_concat_rgcn_attn_forward.5} parent=0 // pred_check_branch
    %22 = sbr.rel (0) target = $region21
  $region20: #{lm_concat_rgcn_attn_forward.5} parent=0 // pred_region
    _
  $region21: #{lm_concat_rgcn_attn_forward.5} parent=0 // pred_fallthru
    _
  // Predicated region
  $region22: #{lm_concat_rgcn_attn_forward.5} parent=0 // pred_check
    _
  $region23: #{lm_concat_rgcn_attn_forward.5} parent=0 // pred_check_branch
    %24 = sbr.rel (0) target = $region25
  $region24: #{lm_concat_rgcn_attn_forward.5} parent=0 // pred_region
    _
  $region25: #{lm_concat_rgcn_attn_forward.5} parent=0 // pred_fallthru
    _
  %p26 = scmp.eq.s32.totalorder 0, 0
  // Predicated region
  $region26: #{lm_concat_rgcn_attn_forward.5} parent=0 // pred_check
    %p27 = pneg %p26
  $region27: #{lm_concat_rgcn_attn_forward.5} parent=0 // pred_check_branch
    %29 = sbr.rel (%p27) target = $region29
  $region28: #{lm_concat_rgcn_attn_forward.5} parent=0 // pred_region
    %v30 = vld [vmem:[%s2] sm:$0xff]
    %v31 = vld [vmem:[%s2 + $0x8] sm:$0xff]
    %32 = vst [vmem:[#allocation2] sm:$0xff] %v30
    %33 = vst [vmem:[#allocation2 + $0x8] sm:$0xff] %v31
  $region29: #{lm_concat_rgcn_attn_forward.5} parent=0 // pred_fallthru
    _
  %v34 = vld [vmem:[#allocation2] sm:$0xff]
  %v35 = vld [vmem:[#allocation2 + $0x8] sm:$0xff]
  %v36 = vld [vmem:[%s0] sm:$0xf]
  %v37 = vld [vmem:[%s0 + $0x4] sm:$0xf]
  %v38 = vld [vmem:[%s1] sm:$0xf]
  %v39 = vld [vmem:[%s1 + $0x4] sm:$0xf]
  %v40 = vld [vmem:[%s1 + $0x8] sm:$0xf]
  %v41 = vld [vmem:[%s1 + $0xc] sm:$0xf]
  %v42 = vld [vmem:[%s1 + $0x10] sm:$0xf]
  %v43 = vld [vmem:[%s1 + $0x14] sm:$0xf]
  %v46 = vunpack.c.l.b16 %v36
  %v47 = vunpack.c.l.b16 %v37
  %v48 = vpack.c.b16 %v47, %v46
  %v55 = vunpack.c.l.b16 %v38
  %v56 = vunpack.c.l.b16 %v39
  %v57 = vunpack.c.l.b16 %v40
  %v58 = vunpack.c.l.b16 %v41
  %v59 = vunpack.c.l.b16 %v42
  %v60 = vunpack.c.l.b16 %v43
  %v61 = vpack.c.b16 %v56, %v55
  %v62 = vpack.c.b16 %v58, %v57
  %v63 = vpack.c.b16 %v60, %v59
  %vm67 = vcmask 392192
  %v69 = vsel %vm67, %v48, 0
  %71 = vmatpush.bf16.msra.mxu0 0
  %72 = vmatpush.bf16.msra.mxu0 0
  %73 = vmatpush.bf16.msra.mxu0 0
  %74 = vmatpush.bf16.msra.mxu0 0
  %75 = vmatpush.bf16.msra.mxu0 0
  %76 = vmatpush.bf16.msra.mxu0 %v63
  %77 = vmatpush.bf16.msra.mxu0 %v62
  %78 = vmatpush.bf16.msra.mxu0 %v61
  %79 = vmatmul.bf16.gmra.mxu0 %v69
  %v80 = vpop.f32.mrf.mxu0
  %v81 = vadd.f32 0.0, %v80
  %v82 = vpop.f32.mrf.mxu0
  %v83 = vadd.f32 0.0, %v82
  %84 = vdwg.mxu0
  %v85 = vadd.f32 %v34, %v81
  %v86 = vadd.f32 %v35, %v83
  %87 = vst [vmem:[#allocation2] sm:$0xff] %v85
  %88 = vst [vmem:[#allocation2 + $0x8] sm:$0xff] %v86
  // Predicated region
  $region30: #{lm_concat_rgcn_attn_forward.5} parent=0 // pred_check
    %p89 = pneg %p26
  $region31: #{lm_concat_rgcn_attn_forward.5} parent=0 // pred_check_branch
    %91 = sbr.rel (%p89) target = $region33
  $region32: #{lm_concat_rgcn_attn_forward.5} parent=0 // pred_region
    %v92 = vld [vmem:[#allocation2] sm:$0xff]
    %v93 = vld [vmem:[#allocation2 + $0x8] sm:$0xff]
    %v94 = vmax.f32 %v92, 0.0
    %v95 = vmax.f32 %v93, 0.0
    %v96 = vpack.c.bf16 %v95, %v94
    %v97 = vld [vmem:[%s3] sm:$0xff]
    %v98 = vld [vmem:[%s3 + $0x8] sm:$0xf]
    %v99 = vld [vmem:[%s3 + $0xc] sm:$0xff]
    %v100 = vld [vmem:[%s3 + $0x14] sm:$0xf]
    %v101 = vld [vmem:[%s3 + $0x18] sm:$0xff]
    %v102 = vld [vmem:[%s3 + $0x20] sm:$0xf]
    %v103 = vld [vmem:[%s3 + $0x24] sm:$0xff]
    %v104 = vld [vmem:[%s3 + $0x2c] sm:$0xf]
    %v105 = vld [vmem:[%s3 + $0x30] sm:$0xff]
    %v106 = vld [vmem:[%s3 + $0x38] sm:$0xf]
    %v107 = vld [vmem:[%s3 + $0x3c] sm:$0xff]
    %v108 = vld [vmem:[%s3 + $0x44] sm:$0xf]
    %v109 = vld [vmem:[%s3 + $0x48] sm:$0xff]
    %v110 = vld [vmem:[%s3 + $0x50] sm:$0xf]
    %v111 = vld [vmem:[%s3 + $0x54] sm:$0xff]
    %v112 = vld [vmem:[%s3 + $0x5c] sm:$0xf]
    %v113 = vld [vmem:[%s3 + $0x60] sm:$0xff]
    %v114 = vld [vmem:[%s3 + $0x68] sm:$0xf]
    %v115 = vld [vmem:[%s3 + $0x6c] sm:$0xff]
    %v116 = vld [vmem:[%s3 + $0x74] sm:$0xf]
    %v117 = vld [vmem:[%s3 + $0x78] sm:$0xff]
    %v118 = vld [vmem:[%s3 + $0x80] sm:$0xf]
    %v119 = vld [vmem:[%s3 + $0x84] sm:$0xff]
    %v120 = vld [vmem:[%s3 + $0x8c] sm:$0xf]
    %v121 = vld [vmem:[%s3 + $0x90] sm:$0xff]
    %v122 = vld [vmem:[%s3 + $0x98] sm:$0xf]
    %v123 = vld [vmem:[%s3 + $0x9c] sm:$0xff]
    %v124 = vld [vmem:[%s3 + $0xa4] sm:$0xf]
    %v125 = vld [vmem:[%s3 + $0xa8] sm:$0xff]
    %v126 = vld [vmem:[%s3 + $0xb0] sm:$0xf]
    %v127 = vld [vmem:[%s3 + $0xb4] sm:$0xff]
    %v128 = vld [vmem:[%s3 + $0xbc] sm:$0xf]
    %v161 = vunpack.c.l.b16 %v97
    %v162 = vunpack.c.h.b16 %v97
    %v163 = vunpack.c.l.b16 %v98
    %v164 = vunpack.c.l.b16 %v99
    %v165 = vunpack.c.h.b16 %v99
    %v166 = vunpack.c.l.b16 %v100
    %v167 = vunpack.c.l.b16 %v101
    %v168 = vunpack.c.h.b16 %v101
    %v169 = vunpack.c.l.b16 %v102
    %v170 = vunpack.c.l.b16 %v103
    %v171 = vunpack.c.h.b16 %v103
    %v172 = vunpack.c.l.b16 %v104
    %v173 = vunpack.c.l.b16 %v105
    %v174 = vunpack.c.h.b16 %v105
    %v175 = vunpack.c.l.b16 %v106
    %v176 = vunpack.c.l.b16 %v107
    %v177 = vunpack.c.h.b16 %v107
    %v178 = vunpack.c.l.b16 %v108
    %v179 = vunpack.c.l.b16 %v109
    %v180 = vunpack.c.h.b16 %v109
    %v181 = vunpack.c.l.b16 %v110
    %v182 = vunpack.c.l.b16 %v111
    %v183 = vunpack.c.h.b16 %v111
    %v184 = vunpack.c.l.b16 %v112
    %v185 = vunpack.c.l.b16 %v113
    %v186 = vunpack.c.h.b16 %v113
    %v187 = vunpack.c.l.b16 %v114
    %v188 = vunpack.c.l.b16 %v115
    %v189 = vunpack.c.h.b16 %v115
    %v190 = vunpack.c.l.b16 %v116
    %v191 = vunpack.c.l.b16 %v117
    %v192 = vunpack.c.h.b16 %v117
    %v193 = vunpack.c.l.b16 %v118
    %v194 = vunpack.c.l.b16 %v119
    %v195 = vunpack.c.h.b16 %v119
    %v196 = vunpack.c.l.b16 %v120
    %v197 = vunpack.c.l.b16 %v121
    %v198 = vunpack.c.h.b16 %v121
    %v199 = vunpack.c.l.b16 %v122
    %v200 = vunpack.c.l.b16 %v123
    %v201 = vunpack.c.h.b16 %v123
    %v202 = vunpack.c.l.b16 %v124
    %v203 = vunpack.c.l.b16 %v125
    %v204 = vunpack.c.h.b16 %v125
    %v205 = vunpack.c.l.b16 %v126
    %v206 = vunpack.c.l.b16 %v127
    %v207 = vunpack.c.h.b16 %v127
    %v208 = vunpack.c.l.b16 %v128
    %v209 = vpack.c.b16 %v164, %v161
    %v210 = vpack.c.b16 %v165, %v162
    %v211 = vpack.c.b16 %v166, %v163
    %v212 = vpack.c.b16 %v170, %v167
    %v213 = vpack.c.b16 %v171, %v168
    %v214 = vpack.c.b16 %v172, %v169
    %v215 = vpack.c.b16 %v176, %v173
    %v216 = vpack.c.b16 %v177, %v174
    %v217 = vpack.c.b16 %v178, %v175
    %v218 = vpack.c.b16 %v182, %v179
    %v219 = vpack.c.b16 %v183, %v180
    %v220 = vpack.c.b16 %v184, %v181
    %v221 = vpack.c.b16 %v188, %v185
    %v222 = vpack.c.b16 %v189, %v186
    %v223 = vpack.c.b16 %v190, %v187
    %v224 = vpack.c.b16 %v194, %v191
    %v225 = vpack.c.b16 %v195, %v192
    %v226 = vpack.c.b16 %v196, %v193
    %v227 = vpack.c.b16 %v200, %v197
    %v228 = vpack.c.b16 %v201, %v198
    %v229 = vpack.c.b16 %v202, %v199
    %v230 = vpack.c.b16 %v206, %v203
    %v231 = vpack.c.b16 %v207, %v204
    %v232 = vpack.c.b16 %v208, %v205
    %257 = vmatpush.bf16.msra.mxu0 %v230
    %258 = vmatpush.bf16.msra.mxu0 %v227
    %259 = vmatpush.bf16.msra.mxu0 %v224
    %260 = vmatpush.bf16.msra.mxu0 %v221
    %261 = vmatpush.bf16.msra.mxu0 %v218
    %262 = vmatpush.bf16.msra.mxu0 %v215
    %263 = vmatpush.bf16.msra.mxu0 %v212
    %264 = vmatpush.bf16.msra.mxu0 %v209
    %265 = vmatmul.bf16.gmra.mxu0 %v96
    %v266 = vpop.f32.mrf.mxu0
    %v267 = vadd.f32 0.0, %v266
    %v268 = vpop.f32.mrf.mxu0
    %v269 = vadd.f32 0.0, %v268
    %270 = vdwg.mxu0
    %271 = vmatpush.bf16.msra.mxu0 %v231
    %272 = vmatpush.bf16.msra.mxu0 %v228
    %273 = vmatpush.bf16.msra.mxu0 %v225
    %274 = vmatpush.bf16.msra.mxu0 %v222
    %275 = vmatpush.bf16.msra.mxu0 %v219
    %276 = vmatpush.bf16.msra.mxu0 %v216
    %277 = vmatpush.bf16.msra.mxu0 %v213
    %278 = vmatpush.bf16.msra.mxu0 %v210
    %279 = vmatmul.bf16.gmra.mxu0 %v96
    %v280 = vpop.f32.mrf.mxu0
    %v281 = vadd.f32 0.0, %v280
    %v282 = vpop.f32.mrf.mxu0
    %v283 = vadd.f32 0.0, %v282
    %284 = vdwg.mxu0
    %285 = vmatpush.bf16.msra.mxu0 %v232
    %286 = vmatpush.bf16.msra.mxu0 %v229
    %287 = vmatpush.bf16.msra.mxu0 %v226
    %288 = vmatpush.bf16.msra.mxu0 %v223
    %289 = vmatpush.bf16.msra.mxu0 %v220
    %290 = vmatpush.bf16.msra.mxu0 %v217
    %291 = vmatpush.bf16.msra.mxu0 %v214
    %292 = vmatpush.bf16.msra.mxu0 %v211
    %293 = vmatmul.bf16.gmra.mxu0 %v96
    %v294 = vpop.f32.mrf.mxu0
    %v295 = vadd.f32 0.0, %v294
    %v296 = vpop.f32.mrf.mxu0
    %v297 = vadd.f32 0.0, %v296
    %298 = vdwg.mxu0
    %v299 = vpack.c.bf16 %v267, %v267
    %v300 = vpack.c.bf16 %v269, %v269
    %301 = vst [vmem:[%s6] sm:$0xf] %v299
    %302 = vst [vmem:[%s6 + $0x4] sm:$0xf] %v300
    %v303 = vpack.c.bf16 %v281, %v281
    %v304 = vpack.c.bf16 %v283, %v283
    %s305 = scalar_lea.vmem %s6, 8
    %306 = vst [vmem:[%s305] sm:$0xf] %v303
    %307 = vst [vmem:[%s305 + $0x4] sm:$0xf] %v304
    %v308 = vpack.c.bf16 %v295, %v295
    %v309 = vpack.c.bf16 %v297, %v297
    %s310 = scalar_lea.vmem %s6, 16
    %311 = vst [vmem:[%s310] sm:$0xf] %v308
    %312 = vst [vmem:[%s310 + $0x4] sm:$0xf] %v309
    %v313 = vld [vmem:[%s4] sm:$0xf]
    %v314 = vld [vmem:[%s4 + $0x4] sm:$0xf]
    %v315 = vld [vmem:[%s4 + $0x8] sm:$0xf]
    %v316 = vld [vmem:[%s4 + $0xc] sm:$0xf]
    %v317 = vld [vmem:[%s4 + $0x10] sm:$0xf]
    %v318 = vld [vmem:[%s4 + $0x14] sm:$0xf]
    %v319 = vld [vmem:[%s4 + $0x18] sm:$0xf]
    %v320 = vld [vmem:[%s4 + $0x1c] sm:$0xf]
    %v321 = vld [vmem:[%s4 + $0x20] sm:$0xf]
    %v322 = vld [vmem:[%s4 + $0x24] sm:$0xf]
    %v323 = vld [vmem:[%s4 + $0x28] sm:$0xf]
    %v324 = vld [vmem:[%s4 + $0x2c] sm:$0xf]
    %v325 = vld [vmem:[%s4 + $0x30] sm:$0xf]
    %v326 = vld [vmem:[%s4 + $0x34] sm:$0xf]
    %v327 = vld [vmem:[%s4 + $0x38] sm:$0xf]
    %v328 = vld [vmem:[%s4 + $0x3c] sm:$0xf]
    %v329 = vld [vmem:[%s5] sm:$0x1]
    %v331 = vperm.slane %v329, 0
    %v349 = vunpack.c.l.b16 %v313
    %v350 = vunpack.c.l.b16 %v314
    %v351 = vunpack.c.l.b16 %v315
    %v352 = vunpack.c.l.b16 %v316
    %v353 = vunpack.c.l.b16 %v317
    %v354 = vunpack.c.l.b16 %v318
    %v355 = vunpack.c.l.b16 %v319
    %v356 = vunpack.c.l.b16 %v320
    %v357 = vunpack.c.l.b16 %v321
    %v358 = vunpack.c.l.b16 %v322
    %v359 = vunpack.c.l.b16 %v323
    %v360 = vunpack.c.l.b16 %v324
    %v361 = vunpack.c.l.b16 %v325
    %v362 = vunpack.c.l.b16 %v326
    %v363 = vunpack.c.l.b16 %v327
    %v364 = vunpack.c.l.b16 %v328
    %v365 = vpack.c.b16 %v350, %v349
    %v366 = vpack.c.b16 %v352, %v351
    %v367 = vpack.c.b16 %v354, %v353
    %v368 = vpack.c.b16 %v356, %v355
    %v369 = vpack.c.b16 %v358, %v357
    %v370 = vpack.c.b16 %v360, %v359
    %v371 = vpack.c.b16 %v362, %v361
    %v372 = vpack.c.b16 %v364, %v363
    %381 = vmatpush.bf16.msra.mxu0 %v372
    %382 = vmatpush.bf16.msra.mxu0 %v371
    %383 = vmatpush.bf16.msra.mxu0 %v370
    %384 = vmatpush.bf16.msra.mxu0 %v369
    %385 = vmatpush.bf16.msra.mxu0 %v368
    %386 = vmatpush.bf16.msra.mxu0 %v367
    %387 = vmatpush.bf16.msra.mxu0 %v366
    %388 = vmatpush.bf16.msra.mxu0 %v365
    %389 = vmatmul.bf16.gmra.mxu0 %v96
    %v390 = vpop.f32.mrf.mxu0
    %v391 = vadd.f32 %v331, %v390
    %v392 = vpop.f32.mrf.mxu0
    %v393 = vadd.f32 %v331, %v392
    %394 = vdwg.mxu0
    %395 = vst [vmem:[%s7] sm:$0xff] %v391
    %396 = vst [vmem:[%s7 + $0x8] sm:$0xff] %v393
  $region33: #{lm_concat_rgcn_attn_forward.5} parent=0 // pred_fallthru
    _
  // Predicated region
  $region34: #{lm_concat_rgcn_attn_forward.5} parent=0 // pred_check
    _
  $region35: #{lm_concat_rgcn_attn_forward.5} parent=0 // pred_check_branch
    %398 = sbr.rel (0) target = $region37
  $region36: #{lm_concat_rgcn_attn_forward.5} parent=0 // pred_region
    _
  $region37: #{lm_concat_rgcn_attn_forward.5} parent=0 // pred_fallthru
    _
  // Predicated region
  $region38: #{lm_concat_rgcn_attn_forward.5} parent=0 // pred_check
    _
  $region39: #{lm_concat_rgcn_attn_forward.5} parent=0 // pred_check_branch
    %400 = sbr.rel (0) target = $region41
  $region40: #{lm_concat_rgcn_attn_forward.5} parent=0 // pred_region
    _
  $region41: #{lm_concat_rgcn_attn_forward.5} parent=0 // pred_fallthru
    _
  // Predicated region
  $region42: #{lm_concat_rgcn_attn_forward.5} parent=0 // pred_check
    _
  $region43: #{lm_concat_rgcn_attn_forward.5} parent=0 // pred_check_branch
    %402 = sbr.rel (0) target = $region45
  $region44: #{lm_concat_rgcn_attn_forward.5} parent=0 // pred_region
    _
  $region45: #{lm_concat_rgcn_attn_forward.5} parent=0 // pred_fallthru
    _
  // Predicated region
  $region46: #{lm_concat_rgcn_attn_forward.5} parent=0 // pred_check
    _
  $region47: #{lm_concat_rgcn_attn_forward.5} parent=0 // pred_check_branch
    %404 = sbr.rel (0) target = $region49
  $region48: #{lm_concat_rgcn_attn_forward.5} parent=0 // pred_region
    _
  $region49: #{lm_concat_rgcn_attn_forward.5} parent=0 // pred_fallthru
    _

// kernel: lm_concat_rgcn_attn_forward.4
$region0: #{lm_concat_rgcn_attn_forward.4}
  #allocation0 [shape = 'u32[]', space=smem, size = 0x4, offset = 0x4, fixed_abs, tag = 'smem constant byte address 0x4 - core index']
  #allocation1 [shape = 'u32[72,128]{1,0:T(1,128)}', space=vmem, size = 0x9000, scoped, tag = 'internal scratch']
  %s0 = inlined_call_operand.vmem [shape: s32[16,1], index: 0, kind: input, shape index: {}]
  %s1 = inlined_call_operand.vmem [shape: bf16[32,1024], index: 1, kind: input, shape index: {}]
  %s2 = inlined_call_operand.vmem [shape: bf16[1024,128], index: 2, kind: input, shape index: {}]
  %s3 = inlined_call_operand.vmem [shape: f32[1,128], index: 3, kind: input, shape index: {}]
  %s4 = inlined_call_operand.vmem [shape: f32[1,128], index: 4, kind: input, shape index: {}]
  %s5 = inlined_call_operand.vmem [shape: f32[1,128], index: 5, kind: input, shape index: {}]
  %s6 = inlined_call_operand.vmem [shape: bf16[128,384], index: 6, kind: input, shape index: {}]
  %s7 = inlined_call_operand.vmem [shape: bf16[128,128], index: 7, kind: input, shape index: {}]
  %s8 = inlined_call_operand.vmem [shape: f32[1,128], index: 8, kind: input, shape index: {}]
  %s9 = inlined_call_operand.vmem [shape: f32[16,128], index: 9, kind: output, shape index: {0}]
  %s10 = inlined_call_operand.vmem [shape: bf16[3,16,128], index: 10, kind: output, shape index: {1}]
  %s11 = inlined_call_operand.vmem [shape: f32[16,128], index: 11, kind: output, shape index: {2}]
  %12 = xla_tuple %s9, %s10, %s11
  %s13 = sld [smem:[#allocation0]]
  $region62: #{lm_concat_rgcn_attn_forward.4} parent=0
    _
  %s15 = ssub.s32 1, %s13
  %s16 = scalar_select 0, %s15, %s13
  // Predicated region
  $region2: #{lm_concat_rgcn_attn_forward.4} parent=0 // pred_check
    _
  $region3: #{lm_concat_rgcn_attn_forward.4} parent=0 // pred_check_branch
    %18 = sbr.rel (0) target = $region5
  $region4: #{lm_concat_rgcn_attn_forward.4} parent=0 // pred_region
    _
  $region5: #{lm_concat_rgcn_attn_forward.4} parent=0 // pred_fallthru
    _
  // Predicated region
  $region6: #{lm_concat_rgcn_attn_forward.4} parent=0 // pred_check
    _
  $region7: #{lm_concat_rgcn_attn_forward.4} parent=0 // pred_check_branch
    %20 = sbr.rel (0) target = $region9
  $region8: #{lm_concat_rgcn_attn_forward.4} parent=0 // pred_region
    _
  $region9: #{lm_concat_rgcn_attn_forward.4} parent=0 // pred_fallthru
    _
  // Predicated region
  $region10: #{lm_concat_rgcn_attn_forward.4} parent=0 // pred_check
    _
  $region11: #{lm_concat_rgcn_attn_forward.4} parent=0 // pred_check_branch
    %22 = sbr.rel (0) target = $region13
  $region12: #{lm_concat_rgcn_attn_forward.4} parent=0 // pred_region
    _
  $region13: #{lm_concat_rgcn_attn_forward.4} parent=0 // pred_fallthru
    _
  // Predicated region
  $region14: #{lm_concat_rgcn_attn_forward.4} parent=0 // pred_check
    _
  $region15: #{lm_concat_rgcn_attn_forward.4} parent=0 // pred_check_branch
    %24 = sbr.rel (0) target = $region17
  $region16: #{lm_concat_rgcn_attn_forward.4} parent=0 // pred_region
    _
  $region17: #{lm_concat_rgcn_attn_forward.4} parent=0 // pred_fallthru
    _
  // Predicated region
  $region18: #{lm_concat_rgcn_attn_forward.4} parent=0 // pred_check
    _
  $region19: #{lm_concat_rgcn_attn_forward.4} parent=0 // pred_check_branch
    %26 = sbr.rel (0) target = $region21
  $region20: #{lm_concat_rgcn_attn_forward.4} parent=0 // pred_region
    _
  $region21: #{lm_concat_rgcn_attn_forward.4} parent=0 // pred_fallthru
    _
  // Predicated region
  $region22: #{lm_concat_rgcn_attn_forward.4} parent=0 // pred_check
    _
  $region23: #{lm_concat_rgcn_attn_forward.4} parent=0 // pred_check_branch
    %28 = sbr.rel (0) target = $region25
  $region24: #{lm_concat_rgcn_attn_forward.4} parent=0 // pred_region
    _
  $region25: #{lm_concat_rgcn_attn_forward.4} parent=0 // pred_fallthru
    _
  // Predicated region
  $region26: #{lm_concat_rgcn_attn_forward.4} parent=0 // pred_check
    _
  $region27: #{lm_concat_rgcn_attn_forward.4} parent=0 // pred_check_branch
    %30 = sbr.rel (0) target = $region29
  $region28: #{lm_concat_rgcn_attn_forward.4} parent=0 // pred_region
    _
  $region29: #{lm_concat_rgcn_attn_forward.4} parent=0 // pred_fallthru
    _
  // Predicated region
  $region30: #{lm_concat_rgcn_attn_forward.4} parent=0 // pred_check
    _
  $region31: #{lm_concat_rgcn_attn_forward.4} parent=0 // pred_check_branch
    %32 = sbr.rel (0) target = $region33
  $region32: #{lm_concat_rgcn_attn_forward.4} parent=0 // pred_region
    _
  $region33: #{lm_concat_rgcn_attn_forward.4} parent=0 // pred_fallthru
    _
  // Predicated region
  $region34: #{lm_concat_rgcn_attn_forward.4} parent=0 // pred_check
    _
  $region35: #{lm_concat_rgcn_attn_forward.4} parent=0 // pred_check_branch
    %34 = sbr.rel (0) target = $region37
  $region36: #{lm_concat_rgcn_attn_forward.4} parent=0 // pred_region
    _
  $region37: #{lm_concat_rgcn_attn_forward.4} parent=0 // pred_fallthru
    _
  %v36 = vld [vmem:[%s0] sm:$0xff]
  %v37 = vld [vmem:[%s0 + $0x8] sm:$0xff]
  %v38 = vlaneseq
  %v39 = vand.u32 %v38, 127
  %40 = vset.pattern.permute.xlu0 0
  %41 = vperm.xlu0 %40, %v36
  %v42 = vpop.permute.xlu0 %41
  %43 = vset.pattern.permute.xlu0 0
  %44 = vperm.xlu0 %43, %v37
  %v45 = vpop.permute.xlu0 %44
  %vm46 = vcmp.eq.s32.totalorder %v42, %v39
  %vm47 = vcmp.eq.s32.totalorder %v45, %v39
  %v48 = vsel %vm46, 1.0, 0.0
  %v49 = vsel %vm47, 1.0, 0.0
  %v50 = vpack.c.bf16 %v49, %v48
  %v51 = vld [vmem:[%s1] sm:$0xff]
  %v52 = vld [vmem:[%s1 + $0x8] sm:$0xff]
  %v53 = vld [vmem:[%s1 + $0x10] sm:$0xff]
  %v54 = vld [vmem:[%s1 + $0x18] sm:$0xff]
  %v55 = vld [vmem:[%s1 + $0x20] sm:$0xff]
  %v56 = vld [vmem:[%s1 + $0x28] sm:$0xff]
  %v57 = vld [vmem:[%s1 + $0x30] sm:$0xff]
  %v58 = vld [vmem:[%s1 + $0x38] sm:$0xff]
  %v59 = vld [vmem:[%s1 + $0x40] sm:$0xff]
  %v60 = vld [vmem:[%s1 + $0x48] sm:$0xff]
  %v61 = vld [vmem:[%s1 + $0x50] sm:$0xff]
  %v62 = vld [vmem:[%s1 + $0x58] sm:$0xff]
  %v63 = vld [vmem:[%s1 + $0x60] sm:$0xff]
  %v64 = vld [vmem:[%s1 + $0x68] sm:$0xff]
  %v65 = vld [vmem:[%s1 + $0x70] sm:$0xff]
  %v66 = vld [vmem:[%s1 + $0x78] sm:$0xff]
  %v83 = vunpack.c.l.b16 %v51
  %v84 = vunpack.c.h.b16 %v51
  %v85 = vunpack.c.l.b16 %v52
  %v86 = vunpack.c.h.b16 %v52
  %v87 = vunpack.c.l.b16 %v53
  %v88 = vunpack.c.h.b16 %v53
  %v89 = vunpack.c.l.b16 %v54
  %v90 = vunpack.c.h.b16 %v54
  %v91 = vunpack.c.l.b16 %v55
  %v92 = vunpack.c.h.b16 %v55
  %v93 = vunpack.c.l.b16 %v56
  %v94 = vunpack.c.h.b16 %v56
  %v95 = vunpack.c.l.b16 %v57
  %v96 = vunpack.c.h.b16 %v57
  %v97 = vunpack.c.l.b16 %v58
  %v98 = vunpack.c.h.b16 %v58
  %v99 = vunpack.c.l.b16 %v59
  %v100 = vunpack.c.h.b16 %v59
  %v101 = vunpack.c.l.b16 %v60
  %v102 = vunpack.c.h.b16 %v60
  %v103 = vunpack.c.l.b16 %v61
  %v104 = vunpack.c.h.b16 %v61
  %v105 = vunpack.c.l.b16 %v62
  %v106 = vunpack.c.h.b16 %v62
  %v107 = vunpack.c.l.b16 %v63
  %v108 = vunpack.c.h.b16 %v63
  %v109 = vunpack.c.l.b16 %v64
  %v110 = vunpack.c.h.b16 %v64
  %v111 = vunpack.c.l.b16 %v65
  %v112 = vunpack.c.h.b16 %v65
  %v113 = vunpack.c.l.b16 %v66
  %v114 = vunpack.c.h.b16 %v66
  %v115 = vpack.c.b16 %v91, %v83
  %v116 = vpack.c.b16 %v92, %v84
  %v117 = vpack.c.b16 %v93, %v85
  %v118 = vpack.c.b16 %v94, %v86
  %v119 = vpack.c.b16 %v95, %v87
  %v120 = vpack.c.b16 %v96, %v88
  %v121 = vpack.c.b16 %v97, %v89
  %v122 = vpack.c.b16 %v98, %v90
  %v123 = vpack.c.b16 %v107, %v99
  %v124 = vpack.c.b16 %v108, %v100
  %v125 = vpack.c.b16 %v109, %v101
  %v126 = vpack.c.b16 %v110, %v102
  %v127 = vpack.c.b16 %v111, %v103
  %v128 = vpack.c.b16 %v112, %v104
  %v129 = vpack.c.b16 %v113, %v105
  %v130 = vpack.c.b16 %v114, %v106
  %vm147 = vcmask 261120
  %v149 = vsel %vm147, %v50, 0
  %151 = vmatpush.bf16.msra.mxu0 0
  %152 = vmatpush.bf16.msra.mxu0 0
  %153 = vmatpush.bf16.msra.mxu0 0
  %154 = vmatpush.bf16.msra.mxu0 0
  %155 = vmatpush.bf16.msra.mxu0 0
  %156 = vmatpush.bf16.msra.mxu0 0
  %157 = vmatpush.bf16.msra.mxu0 %v123
  %158 = vmatpush.bf16.msra.mxu0 %v115
  %159 = vmatmul.bf16.gmra.mxu0 %v149
  %v160 = vpop.f32.mrf.mxu0
  %v161 = vadd.f32 0.0, %v160
  %v162 = vpop.f32.mrf.mxu0
  %v163 = vadd.f32 0.0, %v162
  %164 = vdwg.mxu0
  %165 = vmatpush.bf16.msra.mxu0 0
  %166 = vmatpush.bf16.msra.mxu0 0
  %167 = vmatpush.bf16.msra.mxu0 0
  %168 = vmatpush.bf16.msra.mxu0 0
  %169 = vmatpush.bf16.msra.mxu0 0
  %170 = vmatpush.bf16.msra.mxu0 0
  %171 = vmatpush.bf16.msra.mxu0 %v124
  %172 = vmatpush.bf16.msra.mxu0 %v116
  %173 = vmatmul.bf16.gmra.mxu0 %v149
  %v174 = vpop.f32.mrf.mxu0
  %v175 = vadd.f32 0.0, %v174
  %v176 = vpop.f32.mrf.mxu0
  %v177 = vadd.f32 0.0, %v176
  %178 = vdwg.mxu0
  %179 = vmatpush.bf16.msra.mxu0 0
  %180 = vmatpush.bf16.msra.mxu0 0
  %181 = vmatpush.bf16.msra.mxu0 0
  %182 = vmatpush.bf16.msra.mxu0 0
  %183 = vmatpush.bf16.msra.mxu0 0
  %184 = vmatpush.bf16.msra.mxu0 0
  %185 = vmatpush.bf16.msra.mxu0 %v125
  %186 = vmatpush.bf16.msra.mxu0 %v117
  %187 = vmatmul.bf16.gmra.mxu0 %v149
  %v188 = vpop.f32.mrf.mxu0
  %v189 = vadd.f32 0.0, %v188
  %v190 = vpop.f32.mrf.mxu0
  %v191 = vadd.f32 0.0, %v190
  %192 = vdwg.mxu0
  %193 = vmatpush.bf16.msra.mxu0 0
  %194 = vmatpush.bf16.msra.mxu0 0
  %195 = vmatpush.bf16.msra.mxu0 0
  %196 = vmatpush.bf16.msra.mxu0 0
  %197 = vmatpush.bf16.msra.mxu0 0
  %198 = vmatpush.bf16.msra.mxu0 0
  %199 = vmatpush.bf16.msra.mxu0 %v126
  %200 = vmatpush.bf16.msra.mxu0 %v118
  %201 = vmatmul.bf16.gmra.mxu0 %v149
  %v202 = vpop.f32.mrf.mxu0
  %v203 = vadd.f32 0.0, %v202
  %v204 = vpop.f32.mrf.mxu0
  %v205 = vadd.f32 0.0, %v204
  %206 = vdwg.mxu0
  %207 = vmatpush.bf16.msra.mxu0 0
  %208 = vmatpush.bf16.msra.mxu0 0
  %209 = vmatpush.bf16.msra.mxu0 0
  %210 = vmatpush.bf16.msra.mxu0 0
  %211 = vmatpush.bf16.msra.mxu0 0
  %212 = vmatpush.bf16.msra.mxu0 0
  %213 = vmatpush.bf16.msra.mxu0 %v127
  %214 = vmatpush.bf16.msra.mxu0 %v119
  %215 = vmatmul.bf16.gmra.mxu0 %v149
  %v216 = vpop.f32.mrf.mxu0
  %v217 = vadd.f32 0.0, %v216
  %v218 = vpop.f32.mrf.mxu0
  %v219 = vadd.f32 0.0, %v218
  %220 = vdwg.mxu0
  %221 = vmatpush.bf16.msra.mxu0 0
  %222 = vmatpush.bf16.msra.mxu0 0
  %223 = vmatpush.bf16.msra.mxu0 0
  %224 = vmatpush.bf16.msra.mxu0 0
  %225 = vmatpush.bf16.msra.mxu0 0
  %226 = vmatpush.bf16.msra.mxu0 0
  %227 = vmatpush.bf16.msra.mxu0 %v128
  %228 = vmatpush.bf16.msra.mxu0 %v120
  %229 = vmatmul.bf16.gmra.mxu0 %v149
  %v230 = vpop.f32.mrf.mxu0
  %v231 = vadd.f32 0.0, %v230
  %v232 = vpop.f32.mrf.mxu0
  %v233 = vadd.f32 0.0, %v232
  %234 = vdwg.mxu0
  %235 = vmatpush.bf16.msra.mxu0 0
  %236 = vmatpush.bf16.msra.mxu0 0
  %237 = vmatpush.bf16.msra.mxu0 0
  %238 = vmatpush.bf16.msra.mxu0 0
  %239 = vmatpush.bf16.msra.mxu0 0
  %240 = vmatpush.bf16.msra.mxu0 0
  %241 = vmatpush.bf16.msra.mxu0 %v129
  %242 = vmatpush.bf16.msra.mxu0 %v121
  %243 = vmatmul.bf16.gmra.mxu0 %v149
  %v244 = vpop.f32.mrf.mxu0
  %v245 = vadd.f32 0.0, %v244
  %v246 = vpop.f32.mrf.mxu0
  %v247 = vadd.f32 0.0, %v246
  %248 = vdwg.mxu0
  %249 = vmatpush.bf16.msra.mxu0 0
  %250 = vmatpush.bf16.msra.mxu0 0
  %251 = vmatpush.bf16.msra.mxu0 0
  %252 = vmatpush.bf16.msra.mxu0 0
  %253 = vmatpush.bf16.msra.mxu0 0
  %254 = vmatpush.bf16.msra.mxu0 0
  %255 = vmatpush.bf16.msra.mxu0 %v130
  %256 = vmatpush.bf16.msra.mxu0 %v122
  %257 = vmatmul.bf16.gmra.mxu0 %v149
  %v258 = vpop.f32.mrf.mxu0
  %v259 = vadd.f32 0.0, %v258
  %v260 = vpop.f32.mrf.mxu0
  %v261 = vadd.f32 0.0, %v260
  %262 = vdwg.mxu0
  %v263 = vmax.f32 %v161, 0.0
  %v264 = vmax.f32 %v175, 0.0
  %v265 = vmax.f32 %v189, 0.0
  %v266 = vmax.f32 %v203, 0.0
  %v267 = vmax.f32 %v217, 0.0
  %v268 = vmax.f32 %v231, 0.0
  %v269 = vmax.f32 %v245, 0.0
  %v270 = vmax.f32 %v259, 0.0
  %v271 = vmax.f32 %v163, 0.0
  %v272 = vmax.f32 %v177, 0.0
  %v273 = vmax.f32 %v191, 0.0
  %v274 = vmax.f32 %v205, 0.0
  %v275 = vmax.f32 %v219, 0.0
  %v276 = vmax.f32 %v233, 0.0
  %v277 = vmax.f32 %v247, 0.0
  %v278 = vmax.f32 %v261, 0.0
  %v279 = vpack.c.bf16 %v271, %v263
  %v280 = vpack.c.bf16 %v272, %v264
  %v281 = vpack.c.bf16 %v273, %v265
  %v282 = vpack.c.bf16 %v274, %v266
  %v283 = vpack.c.bf16 %v275, %v267
  %v284 = vpack.c.bf16 %v276, %v268
  %v285 = vpack.c.bf16 %v277, %v269
  %v286 = vpack.c.bf16 %v278, %v270
  %v287 = vld [vmem:[%s2] sm:$0xf]
  %v288 = vld [vmem:[%s2 + $0x4] sm:$0xf]
  %v289 = vld [vmem:[%s2 + $0x8] sm:$0xf]
  %v290 = vld [vmem:[%s2 + $0xc] sm:$0xf]
  %v291 = vld [vmem:[%s2 + $0x10] sm:$0xf]
  %v292 = vld [vmem:[%s2 + $0x14] sm:$0xf]
  %v293 = vld [vmem:[%s2 + $0x18] sm:$0xf]
  %v294 = vld [vmem:[%s2 + $0x1c] sm:$0xf]
  %v295 = vld [vmem:[%s2 + $0x20] sm:$0xf]
  %v296 = vld [vmem:[%s2 + $0x24] sm:$0xf]
  %v297 = vld [vmem:[%s2 + $0x28] sm:$0xf]
  %v298 = vld [vmem:[%s2 + $0x2c] sm:$0xf]
  %v299 = vld [vmem:[%s2 + $0x30] sm:$0xf]
  %v300 = vld [vmem:[%s2 + $0x34] sm:$0xf]
  %v301 = vld [vmem:[%s2 + $0x38] sm:$0xf]
  %v302 = vld [vmem:[%s2 + $0x3c] sm:$0xf]
  %v303 = vld [vmem:[%s2 + $0x40] sm:$0xf]
  %v304 = vld [vmem:[%s2 + $0x44] sm:$0xf]
  %v305 = vld [vmem:[%s2 + $0x48] sm:$0xf]
  %v306 = vld [vmem:[%s2 + $0x4c] sm:$0xf]
  %v307 = vld [vmem:[%s2 + $0x50] sm:$0xf]
  %v308 = vld [vmem:[%s2 + $0x54] sm:$0xf]
  %v309 = vld [vmem:[%s2 + $0x58] sm:$0xf]
  %v310 = vld [vmem:[%s2 + $0x5c] sm:$0xf]
  %v311 = vld [vmem:[%s2 + $0x60] sm:$0xf]
  %v312 = vld [vmem:[%s2 + $0x64] sm:$0xf]
  %v313 = vld [vmem:[%s2 + $0x68] sm:$0xf]
  %v314 = vld [vmem:[%s2 + $0x6c] sm:$0xf]
  %v315 = vld [vmem:[%s2 + $0x70] sm:$0xf]
  %v316 = vld [vmem:[%s2 + $0x74] sm:$0xf]
  %v317 = vld [vmem:[%s2 + $0x78] sm:$0xf]
  %v318 = vld [vmem:[%s2 + $0x7c] sm:$0xf]
  %v319 = vld [vmem:[%s2 + $0x80] sm:$0xf]
  %v320 = vld [vmem:[%s2 + $0x84] sm:$0xf]
  %v321 = vld [vmem:[%s2 + $0x88] sm:$0xf]
  %v322 = vld [vmem:[%s2 + $0x8c] sm:$0xf]
  %v323 = vld [vmem:[%s2 + $0x90] sm:$0xf]
  %v324 = vld [vmem:[%s2 + $0x94] sm:$0xf]
  %v325 = vld [vmem:[%s2 + $0x98] sm:$0xf]
  %v326 = vld [vmem:[%s2 + $0x9c] sm:$0xf]
  %v327 = vld [vmem:[%s2 + $0xa0] sm:$0xf]
  %v328 = vld [vmem:[%s2 + $0xa4] sm:$0xf]
  %v329 = vld [vmem:[%s2 + $0xa8] sm:$0xf]
  %v330 = vld [vmem:[%s2 + $0xac] sm:$0xf]
  %v331 = vld [vmem:[%s2 + $0xb0] sm:$0xf]
  %v332 = vld [vmem:[%s2 + $0xb4] sm:$0xf]
  %v333 = vld [vmem:[%s2 + $0xb8] sm:$0xf]
  %v334 = vld [vmem:[%s2 + $0xbc] sm:$0xf]
  %v335 = vld [vmem:[%s2 + $0xc0] sm:$0xf]
  %v336 = vld [vmem:[%s2 + $0xc4] sm:$0xf]
  %v337 = vld [vmem:[%s2 + $0xc8] sm:$0xf]
  %v338 = vld [vmem:[%s2 + $0xcc] sm:$0xf]
  %v339 = vld [vmem:[%s2 + $0xd0] sm:$0xf]
  %v340 = vld [vmem:[%s2 + $0xd4] sm:$0xf]
  %v341 = vld [vmem:[%s2 + $0xd8] sm:$0xf]
  %v342 = vld [vmem:[%s2 + $0xdc] sm:$0xf]
  %v343 = vld [vmem:[%s2 + $0xe0] sm:$0xf]
  %v344 = vld [vmem:[%s2 + $0xe4] sm:$0xf]
  %v345 = vld [vmem:[%s2 + $0xe8] sm:$0xf]
  %v346 = vld [vmem:[%s2 + $0xec] sm:$0xf]
  %v347 = vld [vmem:[%s2 + $0xf0] sm:$0xf]
  %v348 = vld [vmem:[%s2 + $0xf4] sm:$0xf]
  %v349 = vld [vmem:[%s2 + $0xf8] sm:$0xf]
  %v350 = vld [vmem:[%s2 + $0xfc] sm:$0xf]
  %v351 = vld [vmem:[%s2 + $0x100] sm:$0xf]
  %v352 = vld [vmem:[%s2 + $0x104] sm:$0xf]
  %v353 = vld [vmem:[%s2 + $0x108] sm:$0xf]
  %v354 = vld [vmem:[%s2 + $0x10c] sm:$0xf]
  %v355 = vld [vmem:[%s2 + $0x110] sm:$0xf]
  %v356 = vld [vmem:[%s2 + $0x114] sm:$0xf]
  %v357 = vld [vmem:[%s2 + $0x118] sm:$0xf]
  %v358 = vld [vmem:[%s2 + $0x11c] sm:$0xf]
  %v359 = vld [vmem:[%s2 + $0x120] sm:$0xf]
  %v360 = vld [vmem:[%s2 + $0x124] sm:$0xf]
  %v361 = vld [vmem:[%s2 + $0x128] sm:$0xf]
  %v362 = vld [vmem:[%s2 + $0x12c] sm:$0xf]
  %v363 = vld [vmem:[%s2 + $0x130] sm:$0xf]
  %v364 = vld [vmem:[%s2 + $0x134] sm:$0xf]
  %v365 = vld [vmem:[%s2 + $0x138] sm:$0xf]
  %v366 = vld [vmem:[%s2 + $0x13c] sm:$0xf]
  %v367 = vld [vmem:[%s2 + $0x140] sm:$0xf]
  %v368 = vld [vmem:[%s2 + $0x144] sm:$0xf]
  %v369 = vld [vmem:[%s2 + $0x148] sm:$0xf]
  %v370 = vld [vmem:[%s2 + $0x14c] sm:$0xf]
  %v371 = vld [vmem:[%s2 + $0x150] sm:$0xf]
  %v372 = vld [vmem:[%s2 + $0x154] sm:$0xf]
  %v373 = vld [vmem:[%s2 + $0x158] sm:$0xf]
  %v374 = vld [vmem:[%s2 + $0x15c] sm:$0xf]
  %v375 = vld [vmem:[%s2 + $0x160] sm:$0xf]
  %v376 = vld [vmem:[%s2 + $0x164] sm:$0xf]
  %v377 = vld [vmem:[%s2 + $0x168] sm:$0xf]
  %v378 = vld [vmem:[%s2 + $0x16c] sm:$0xf]
  %v379 = vld [vmem:[%s2 + $0x170] sm:$0xf]
  %v380 = vld [vmem:[%s2 + $0x174] sm:$0xf]
  %v381 = vld [vmem:[%s2 + $0x178] sm:$0xf]
  %v382 = vld [vmem:[%s2 + $0x17c] sm:$0xf]
  %v383 = vld [vmem:[%s2 + $0x180] sm:$0xf]
  %v384 = vld [vmem:[%s2 + $0x184] sm:$0xf]
  %v385 = vld [vmem:[%s2 + $0x188] sm:$0xf]
  %v386 = vld [vmem:[%s2 + $0x18c] sm:$0xf]
  %v387 = vld [vmem:[%s2 + $0x190] sm:$0xf]
  %v388 = vld [vmem:[%s2 + $0x194] sm:$0xf]
  %v389 = vld [vmem:[%s2 + $0x198] sm:$0xf]
  %v390 = vld [vmem:[%s2 + $0x19c] sm:$0xf]
  %v391 = vld [vmem:[%s2 + $0x1a0] sm:$0xf]
  %v392 = vld [vmem:[%s2 + $0x1a4] sm:$0xf]
  %v393 = vld [vmem:[%s2 + $0x1a8] sm:$0xf]
  %v394 = vld [vmem:[%s2 + $0x1ac] sm:$0xf]
  %v395 = vld [vmem:[%s2 + $0x1b0] sm:$0xf]
  %v396 = vld [vmem:[%s2 + $0x1b4] sm:$0xf]
  %v397 = vld [vmem:[%s2 + $0x1b8] sm:$0xf]
  %v398 = vld [vmem:[%s2 + $0x1bc] sm:$0xf]
  %v399 = vld [vmem:[%s2 + $0x1c0] sm:$0xf]
  %v400 = vld [vmem:[%s2 + $0x1c4] sm:$0xf]
  %v401 = vld [vmem:[%s2 + $0x1c8] sm:$0xf]
  %v402 = vld [vmem:[%s2 + $0x1cc] sm:$0xf]
  %v403 = vld [vmem:[%s2 + $0x1d0] sm:$0xf]
  %v404 = vld [vmem:[%s2 + $0x1d4] sm:$0xf]
  %v405 = vld [vmem:[%s2 + $0x1d8] sm:$0xf]
  %v406 = vld [vmem:[%s2 + $0x1dc] sm:$0xf]
  %v407 = vld [vmem:[%s2 + $0x1e0] sm:$0xf]
  %v408 = vld [vmem:[%s2 + $0x1e4] sm:$0xf]
  %v409 = vld [vmem:[%s2 + $0x1e8] sm:$0xf]
  %v410 = vld [vmem:[%s2 + $0x1ec] sm:$0xf]
  %v411 = vld [vmem:[%s2 + $0x1f0] sm:$0xf]
  %v412 = vld [vmem:[%s2 + $0x1f4] sm:$0xf]
  %v413 = vld [vmem:[%s2 + $0x1f8] sm:$0xf]
  %v414 = vld [vmem:[%s2 + $0x1fc] sm:$0xf]
  %v415 = vld [vmem:[%s3] sm:$0x1]
  %v417 = vperm.slane %v415, 0
  %v547 = vunpack.c.l.b16 %v287
  %v548 = vunpack.c.l.b16 %v288
  %v549 = vunpack.c.l.b16 %v289
  %v550 = vunpack.c.l.b16 %v290
  %v551 = vunpack.c.l.b16 %v291
  %v552 = vunpack.c.l.b16 %v292
  %v553 = vunpack.c.l.b16 %v293
  %v554 = vunpack.c.l.b16 %v294
  %v555 = vunpack.c.l.b16 %v295
  %v556 = vunpack.c.l.b16 %v296
  %v557 = vunpack.c.l.b16 %v297
  %v558 = vunpack.c.l.b16 %v298
  %v559 = vunpack.c.l.b16 %v299
  %v560 = vunpack.c.l.b16 %v300
  %v561 = vunpack.c.l.b16 %v301
  %v562 = vunpack.c.l.b16 %v302
  %v563 = vunpack.c.l.b16 %v303
  %v564 = vunpack.c.l.b16 %v304
  %v565 = vunpack.c.l.b16 %v305
  %v566 = vunpack.c.l.b16 %v306
  %v567 = vunpack.c.l.b16 %v307
  %v568 = vunpack.c.l.b16 %v308
  %v569 = vunpack.c.l.b16 %v309
  %v570 = vunpack.c.l.b16 %v310
  %v571 = vunpack.c.l.b16 %v311
  %v572 = vunpack.c.l.b16 %v312
  %v573 = vunpack.c.l.b16 %v313
  %v574 = vunpack.c.l.b16 %v314
  %v575 = vunpack.c.l.b16 %v315
  %v576 = vunpack.c.l.b16 %v316
  %v577 = vunpack.c.l.b16 %v317
  %v578 = vunpack.c.l.b16 %v318
  %v579 = vunpack.c.l.b16 %v319
  %v580 = vunpack.c.l.b16 %v320
  %v581 = vunpack.c.l.b16 %v321
  %v582 = vunpack.c.l.b16 %v322
  %v583 = vunpack.c.l.b16 %v323
  %v584 = vunpack.c.l.b16 %v324
  %v585 = vunpack.c.l.b16 %v325
  %v586 = vunpack.c.l.b16 %v326
  %v587 = vunpack.c.l.b16 %v327
  %v588 = vunpack.c.l.b16 %v328
  %v589 = vunpack.c.l.b16 %v329
  %v590 = vunpack.c.l.b16 %v330
  %v591 = vunpack.c.l.b16 %v331
  %v592 = vunpack.c.l.b16 %v332
  %v593 = vunpack.c.l.b16 %v333
  %v594 = vunpack.c.l.b16 %v334
  %v595 = vunpack.c.l.b16 %v335
  %v596 = vunpack.c.l.b16 %v336
  %v597 = vunpack.c.l.b16 %v337
  %v598 = vunpack.c.l.b16 %v338
  %v599 = vunpack.c.l.b16 %v339
  %v600 = vunpack.c.l.b16 %v340
  %v601 = vunpack.c.l.b16 %v341
  %v602 = vunpack.c.l.b16 %v342
  %v603 = vunpack.c.l.b16 %v343
  %v604 = vunpack.c.l.b16 %v344
  %v605 = vunpack.c.l.b16 %v345
  %v606 = vunpack.c.l.b16 %v346
  %v607 = vunpack.c.l.b16 %v347
  %v608 = vunpack.c.l.b16 %v348
  %v609 = vunpack.c.l.b16 %v349
  %v610 = vunpack.c.l.b16 %v350
  %v611 = vunpack.c.l.b16 %v351
  %v612 = vunpack.c.l.b16 %v352
  %v613 = vunpack.c.l.b16 %v353
  %v614 = vunpack.c.l.b16 %v354
  %v615 = vunpack.c.l.b16 %v355
  %v616 = vunpack.c.l.b16 %v356
  %v617 = vunpack.c.l.b16 %v357
  %v618 = vunpack.c.l.b16 %v358
  %v619 = vunpack.c.l.b16 %v359
  %v620 = vunpack.c.l.b16 %v360
  %v621 = vunpack.c.l.b16 %v361
  %v622 = vunpack.c.l.b16 %v362
  %v623 = vunpack.c.l.b16 %v363
  %v624 = vunpack.c.l.b16 %v364
  %v625 = vunpack.c.l.b16 %v365
  %v626 = vunpack.c.l.b16 %v366
  %v627 = vunpack.c.l.b16 %v367
  %v628 = vunpack.c.l.b16 %v368
  %v629 = vunpack.c.l.b16 %v369
  %v630 = vunpack.c.l.b16 %v370
  %v631 = vunpack.c.l.b16 %v371
  %v632 = vunpack.c.l.b16 %v372
  %v633 = vunpack.c.l.b16 %v373
  %v634 = vunpack.c.l.b16 %v374
  %v635 = vunpack.c.l.b16 %v375
  %v636 = vunpack.c.l.b16 %v376
  %v637 = vunpack.c.l.b16 %v377
  %v638 = vunpack.c.l.b16 %v378
  %v639 = vunpack.c.l.b16 %v379
  %v640 = vunpack.c.l.b16 %v380
  %v641 = vunpack.c.l.b16 %v381
  %v642 = vunpack.c.l.b16 %v382
  %v643 = vunpack.c.l.b16 %v383
  %v644 = vunpack.c.l.b16 %v384
  %v645 = vunpack.c.l.b16 %v385
  %v646 = vunpack.c.l.b16 %v386
  %v647 = vunpack.c.l.b16 %v387
  %v648 = vunpack.c.l.b16 %v388
  %v649 = vunpack.c.l.b16 %v389
  %v650 = vunpack.c.l.b16 %v390
  %v651 = vunpack.c.l.b16 %v391
  %v652 = vunpack.c.l.b16 %v392
  %v653 = vunpack.c.l.b16 %v393
  %v654 = vunpack.c.l.b16 %v394
  %v655 = vunpack.c.l.b16 %v395
  %v656 = vunpack.c.l.b16 %v396
  %v657 = vunpack.c.l.b16 %v397
  %v658 = vunpack.c.l.b16 %v398
  %v659 = vunpack.c.l.b16 %v399
  %v660 = vunpack.c.l.b16 %v400
  %v661 = vunpack.c.l.b16 %v401
  %v662 = vunpack.c.l.b16 %v402
  %v663 = vunpack.c.l.b16 %v403
  %v664 = vunpack.c.l.b16 %v404
  %v665 = vunpack.c.l.b16 %v405
  %v666 = vunpack.c.l.b16 %v406
  %v667 = vunpack.c.l.b16 %v407
  %v668 = vunpack.c.l.b16 %v408
  %v669 = vunpack.c.l.b16 %v409
  %v670 = vunpack.c.l.b16 %v410
  %v671 = vunpack.c.l.b16 %v411
  %v672 = vunpack.c.l.b16 %v412
  %v673 = vunpack.c.l.b16 %v413
  %v674 = vunpack.c.l.b16 %v414
  %v675 = vpack.c.b16 %v548, %v547
  %v676 = vpack.c.b16 %v550, %v549
  %v677 = vpack.c.b16 %v552, %v551
  %v678 = vpack.c.b16 %v554, %v553
  %v679 = vpack.c.b16 %v556, %v555
  %v680 = vpack.c.b16 %v558, %v557
  %v681 = vpack.c.b16 %v560, %v559
  %v682 = vpack.c.b16 %v562, %v561
  %v683 = vpack.c.b16 %v564, %v563
  %v684 = vpack.c.b16 %v566, %v565
  %v685 = vpack.c.b16 %v568, %v567
  %v686 = vpack.c.b16 %v570, %v569
  %v687 = vpack.c.b16 %v572, %v571
  %v688 = vpack.c.b16 %v574, %v573
  %v689 = vpack.c.b16 %v576, %v575
  %v690 = vpack.c.b16 %v578, %v577
  %v691 = vpack.c.b16 %v580, %v579
  %v692 = vpack.c.b16 %v582, %v581
  %v693 = vpack.c.b16 %v584, %v583
  %v694 = vpack.c.b16 %v586, %v585
  %v695 = vpack.c.b16 %v588, %v587
  %v696 = vpack.c.b16 %v590, %v589
  %v697 = vpack.c.b16 %v592, %v591
  %v698 = vpack.c.b16 %v594, %v593
  %v699 = vpack.c.b16 %v596, %v595
  %v700 = vpack.c.b16 %v598, %v597
  %v701 = vpack.c.b16 %v600, %v599
  %v702 = vpack.c.b16 %v602, %v601
  %v703 = vpack.c.b16 %v604, %v603
  %v704 = vpack.c.b16 %v606, %v605
  %v705 = vpack.c.b16 %v608, %v607
  %v706 = vpack.c.b16 %v610, %v609
  %v707 = vpack.c.b16 %v612, %v611
  %v708 = vpack.c.b16 %v614, %v613
  %v709 = vpack.c.b16 %v616, %v615
  %v710 = vpack.c.b16 %v618, %v617
  %v711 = vpack.c.b16 %v620, %v619
  %v712 = vpack.c.b16 %v622, %v621
  %v713 = vpack.c.b16 %v624, %v623
  %v714 = vpack.c.b16 %v626, %v625
  %v715 = vpack.c.b16 %v628, %v627
  %v716 = vpack.c.b16 %v630, %v629
  %v717 = vpack.c.b16 %v632, %v631
  %v718 = vpack.c.b16 %v634, %v633
  %v719 = vpack.c.b16 %v636, %v635
  %v720 = vpack.c.b16 %v638, %v637
  %v721 = vpack.c.b16 %v640, %v639
  %v722 = vpack.c.b16 %v642, %v641
  %v723 = vpack.c.b16 %v644, %v643
  %v724 = vpack.c.b16 %v646, %v645
  %v725 = vpack.c.b16 %v648, %v647
  %v726 = vpack.c.b16 %v650, %v649
  %v727 = vpack.c.b16 %v652, %v651
  %v728 = vpack.c.b16 %v654, %v653
  %v729 = vpack.c.b16 %v656, %v655
  %v730 = vpack.c.b16 %v658, %v657
  %v731 = vpack.c.b16 %v660, %v659
  %v732 = vpack.c.b16 %v662, %v661
  %v733 = vpack.c.b16 %v664, %v663
  %v734 = vpack.c.b16 %v666, %v665
  %v735 = vpack.c.b16 %v668, %v667
  %v736 = vpack.c.b16 %v670, %v669
  %v737 = vpack.c.b16 %v672, %v671
  %v738 = vpack.c.b16 %v674, %v673
  %803 = vmatpush.bf16.msra.mxu0 %v682
  %804 = vmatpush.bf16.msra.mxu0 %v681
  %805 = vmatpush.bf16.msra.mxu0 %v680
  %806 = vmatpush.bf16.msra.mxu0 %v679
  %807 = vmatpush.bf16.msra.mxu0 %v678
  %808 = vmatpush.bf16.msra.mxu0 %v677
  %809 = vmatpush.bf16.msra.mxu0 %v676
  %810 = vmatpush.bf16.msra.mxu0 %v675
  %811 = vmatmul.bf16.gmra.mxu0 %v279
  %v812 = vpop.f32.mrf.mxu0
  %v813 = vadd.f32 %v417, %v812
  %v814 = vpop.f32.mrf.mxu0
  %v815 = vadd.f32 %v417, %v814
  %816 = vdwg.mxu0
  %817 = vmatpush.bf16.msra.mxu0 %v690
  %818 = vmatpush.bf16.msra.mxu0 %v689
  %819 = vmatpush.bf16.msra.mxu0 %v688
  %820 = vmatpush.bf16.msra.mxu0 %v687
  %821 = vmatpush.bf16.msra.mxu0 %v686
  %822 = vmatpush.bf16.msra.mxu0 %v685
  %823 = vmatpush.bf16.msra.mxu0 %v684
  %824 = vmatpush.bf16.msra.mxu0 %v683
  %825 = vmatmul.bf16.gmra.mxu0 %v280
  %v826 = vpop.f32.mrf.mxu0
  %v827 = vadd.f32 %v813, %v826
  %v828 = vpop.f32.mrf.mxu0
  %v829 = vadd.f32 %v815, %v828
  %830 = vdwg.mxu0
  %831 = vmatpush.bf16.msra.mxu0 %v698
  %832 = vmatpush.bf16.msra.mxu0 %v697
  %833 = vmatpush.bf16.msra.mxu0 %v696
  %834 = vmatpush.bf16.msra.mxu0 %v695
  %835 = vmatpush.bf16.msra.mxu0 %v694
  %836 = vmatpush.bf16.msra.mxu0 %v693
  %837 = vmatpush.bf16.msra.mxu0 %v692
  %838 = vmatpush.bf16.msra.mxu0 %v691
  %839 = vmatmul.bf16.gmra.mxu0 %v281
  %v840 = vpop.f32.mrf.mxu0
  %v841 = vadd.f32 %v827, %v840
  %v842 = vpop.f32.mrf.mxu0
  %v843 = vadd.f32 %v829, %v842
  %844 = vdwg.mxu0
  %845 = vmatpush.bf16.msra.mxu0 %v706
  %846 = vmatpush.bf16.msra.mxu0 %v705
  %847 = vmatpush.bf16.msra.mxu0 %v704
  %848 = vmatpush.bf16.msra.mxu0 %v703
  %849 = vmatpush.bf16.msra.mxu0 %v702
  %850 = vmatpush.bf16.msra.mxu0 %v701
  %851 = vmatpush.bf16.msra.mxu0 %v700
  %852 = vmatpush.bf16.msra.mxu0 %v699
  %853 = vmatmul.bf16.gmra.mxu0 %v282
  %v854 = vpop.f32.mrf.mxu0
  %v855 = vadd.f32 %v841, %v854
  %v856 = vpop.f32.mrf.mxu0
  %v857 = vadd.f32 %v843, %v856
  %858 = vdwg.mxu0
  %859 = vmatpush.bf16.msra.mxu0 %v714
  %860 = vmatpush.bf16.msra.mxu0 %v713
  %861 = vmatpush.bf16.msra.mxu0 %v712
  %862 = vmatpush.bf16.msra.mxu0 %v711
  %863 = vmatpush.bf16.msra.mxu0 %v710
  %864 = vmatpush.bf16.msra.mxu0 %v709
  %865 = vmatpush.bf16.msra.mxu0 %v708
  %866 = vmatpush.bf16.msra.mxu0 %v707
  %867 = vmatmul.bf16.gmra.mxu0 %v283
  %v868 = vpop.f32.mrf.mxu0
  %v869 = vadd.f32 %v855, %v868
  %v870 = vpop.f32.mrf.mxu0
  %v871 = vadd.f32 %v857, %v870
  %872 = vdwg.mxu0
  %873 = vmatpush.bf16.msra.mxu0 %v722
  %874 = vmatpush.bf16.msra.mxu0 %v721
  %875 = vmatpush.bf16.msra.mxu0 %v720
  %876 = vmatpush.bf16.msra.mxu0 %v719
  %877 = vmatpush.bf16.msra.mxu0 %v718
  %878 = vmatpush.bf16.msra.mxu0 %v717
  %879 = vmatpush.bf16.msra.mxu0 %v716
  %880 = vmatpush.bf16.msra.mxu0 %v715
  %881 = vmatmul.bf16.gmra.mxu0 %v284
  %v882 = vpop.f32.mrf.mxu0
  %v883 = vadd.f32 %v869, %v882
  %v884 = vpop.f32.mrf.mxu0
  %v885 = vadd.f32 %v871, %v884
  %886 = vdwg.mxu0
  %887 = vmatpush.bf16.msra.mxu0 %v730
  %888 = vmatpush.bf16.msra.mxu0 %v729
  %889 = vmatpush.bf16.msra.mxu0 %v728
  %890 = vmatpush.bf16.msra.mxu0 %v727
  %891 = vmatpush.bf16.msra.mxu0 %v726
  %892 = vmatpush.bf16.msra.mxu0 %v725
  %893 = vmatpush.bf16.msra.mxu0 %v724
  %894 = vmatpush.bf16.msra.mxu0 %v723
  %895 = vmatmul.bf16.gmra.mxu0 %v285
  %v896 = vpop.f32.mrf.mxu0
  %v897 = vadd.f32 %v883, %v896
  %v898 = vpop.f32.mrf.mxu0
  %v899 = vadd.f32 %v885, %v898
  %900 = vdwg.mxu0
  %901 = vmatpush.bf16.msra.mxu0 %v738
  %902 = vmatpush.bf16.msra.mxu0 %v737
  %903 = vmatpush.bf16.msra.mxu0 %v736
  %904 = vmatpush.bf16.msra.mxu0 %v735
  %905 = vmatpush.bf16.msra.mxu0 %v734
  %906 = vmatpush.bf16.msra.mxu0 %v733
  %907 = vmatpush.bf16.msra.mxu0 %v732
  %908 = vmatpush.bf16.msra.mxu0 %v731
  %909 = vmatmul.bf16.gmra.mxu0 %v286
  %v910 = vpop.f32.mrf.mxu0
  %v911 = vadd.f32 %v897, %v910
  %v912 = vpop.f32.mrf.mxu0
  %v913 = vadd.f32 %v899, %v912
  %914 = vdwg.mxu0
  %v915 = vmax.f32 %v911, 0.0
  %v916 = vmax.f32 %v913, 0.0
  %917 = vadd.xlane.f32.xlu0 %v915
  %v918 = vpop.xlane.xlu0 %917
  %919 = vadd.xlane.f32.xlu0 %v916
  %v920 = vpop.xlane.xlu0 %919
  %v921 = vrcp.pop 128.0
  %v922 = vmul.f32 128.0, %v921
  %v923 = vsub.f32 1.0, %v922
  %v924 = vmul.f32 %v921, %v923
  %v925 = vadd.f32 %v921, %v924
  %vm926 = vweird.f32 %v921
  %v927 = vsel %vm926, %v921, %v925
  %v928 = vmul.f32 %v918, %v927
  %v929 = vmul.f32 %v920, %v927
  %v930 = vsub.f32 %v915, %v928
  %v931 = vsub.f32 %v916, %v929
  %v932 = vmul.f32 %v930, %v930
  %v933 = vmul.f32 %v931, %v931
  %934 = vadd.xlane.f32.xlu0 %v932
  %v935 = vpop.xlane.xlu0 %934
  %936 = vadd.xlane.f32.xlu0 %v933
  %v937 = vpop.xlane.xlu0 %936
  %v938 = vmul.f32 %v935, %v927
  %v939 = vmul.f32 %v937, %v927
  %v940 = vadd.f32 %v938, 1e-05
  %v941 = vadd.f32 %v939, 1e-05
  %v942 = vrsqrt.pop %v940
  %v943 = vmul.f32 %v942, %v940
  %v944 = vmul.f32 %v943, %v942
  %v945 = vmul.f32 0.5, %v944
  %v946 = vsub.f32 1.5, %v945
  %v947 = vmul.f32 %v942, %v946
  %vm948 = vweird.f32 %v940
  %vm949 = vweird.f32 %v942
  %vm950 = vmor %vm948, %vm949
  %v951 = vsel %vm950, %v942, %v947
  %v952 = vrsqrt.pop %v941
  %v953 = vmul.f32 %v952, %v941
  %v954 = vmul.f32 %v953, %v952
  %v955 = vmul.f32 0.5, %v954
  %v956 = vsub.f32 1.5, %v955
  %v957 = vmul.f32 %v952, %v956
  %vm958 = vweird.f32 %v941
  %vm959 = vweird.f32 %v952
  %vm960 = vmor %vm958, %vm959
  %v961 = vsel %vm960, %v952, %v957
  %v962 = vmul.f32 %v930, %v951
  %v963 = vmul.f32 %v931, %v961
  %v964 = vld [vmem:[%s4] sm:$0x1]
  %v966 = vperm.slane %v964, 0
  %v968 = vmul.f32 %v962, %v966
  %v969 = vmul.f32 %v963, %v966
  %v970 = vld [vmem:[%s5] sm:$0x1]
  %v972 = vperm.slane %v970, 0
  %v974 = vadd.f32 %v968, %v972
  %v975 = vadd.f32 %v969, %v972
  %976 = vst [vmem:[%s9] sm:$0xff] %v974
  %977 = vst [vmem:[%s9 + $0x8] sm:$0xff] %v975
  %v978 = vpack.c.bf16 %v975, %v974
  %v979 = vld [vmem:[%s6] sm:$0xff]
  %v980 = vld [vmem:[%s6 + $0x8] sm:$0xf]
  %v981 = vld [vmem:[%s6 + $0xc] sm:$0xff]
  %v982 = vld [vmem:[%s6 + $0x14] sm:$0xf]
  %v983 = vld [vmem:[%s6 + $0x18] sm:$0xff]
  %v984 = vld [vmem:[%s6 + $0x20] sm:$0xf]
  %v985 = vld [vmem:[%s6 + $0x24] sm:$0xff]
  %v986 = vld [vmem:[%s6 + $0x2c] sm:$0xf]
  %v987 = vld [vmem:[%s6 + $0x30] sm:$0xff]
  %v988 = vld [vmem:[%s6 + $0x38] sm:$0xf]
  %v989 = vld [vmem:[%s6 + $0x3c] sm:$0xff]
  %v990 = vld [vmem:[%s6 + $0x44] sm:$0xf]
  %v991 = vld [vmem:[%s6 + $0x48] sm:$0xff]
  %v992 = vld [vmem:[%s6 + $0x50] sm:$0xf]
  %v993 = vld [vmem:[%s6 + $0x54] sm:$0xff]
  %v994 = vld [vmem:[%s6 + $0x5c] sm:$0xf]
  %v995 = vld [vmem:[%s6 + $0x60] sm:$0xff]
  %v996 = vld [vmem:[%s6 + $0x68] sm:$0xf]
  %v997 = vld [vmem:[%s6 + $0x6c] sm:$0xff]
  %v998 = vld [vmem:[%s6 + $0x74] sm:$0xf]
  %v999 = vld [vmem:[%s6 + $0x78] sm:$0xff]
  %v1000 = vld [vmem:[%s6 + $0x80] sm:$0xf]
  %v1001 = vld [vmem:[%s6 + $0x84] sm:$0xff]
  %v1002 = vld [vmem:[%s6 + $0x8c] sm:$0xf]
  %v1003 = vld [vmem:[%s6 + $0x90] sm:$0xff]
  %v1004 = vld [vmem:[%s6 + $0x98] sm:$0xf]
  %v1005 = vld [vmem:[%s6 + $0x9c] sm:$0xff]
  %v1006 = vld [vmem:[%s6 + $0xa4] sm:$0xf]
  %v1007 = vld [vmem:[%s6 + $0xa8] sm:$0xff]
  %v1008 = vld [vmem:[%s6 + $0xb0] sm:$0xf]
  %v1009 = vld [vmem:[%s6 + $0xb4] sm:$0xff]
  %v1010 = vld [vmem:[%s6 + $0xbc] sm:$0xf]
  %v1043 = vunpack.c.l.b16 %v979
  %v1044 = vunpack.c.h.b16 %v979
  %v1045 = vunpack.c.l.b16 %v980
  %v1046 = vunpack.c.l.b16 %v981
  %v1047 = vunpack.c.h.b16 %v981
  %v1048 = vunpack.c.l.b16 %v982
  %v1049 = vunpack.c.l.b16 %v983
  %v1050 = vunpack.c.h.b16 %v983
  %v1051 = vunpack.c.l.b16 %v984
  %v1052 = vunpack.c.l.b16 %v985
  %v1053 = vunpack.c.h.b16 %v985
  %v1054 = vunpack.c.l.b16 %v986
  %v1055 = vunpack.c.l.b16 %v987
  %v1056 = vunpack.c.h.b16 %v987
  %v1057 = vunpack.c.l.b16 %v988
  %v1058 = vunpack.c.l.b16 %v989
  %v1059 = vunpack.c.h.b16 %v989
  %v1060 = vunpack.c.l.b16 %v990
  %v1061 = vunpack.c.l.b16 %v991
  %v1062 = vunpack.c.h.b16 %v991
  %v1063 = vunpack.c.l.b16 %v992
  %v1064 = vunpack.c.l.b16 %v993
  %v1065 = vunpack.c.h.b16 %v993
  %v1066 = vunpack.c.l.b16 %v994
  %v1067 = vunpack.c.l.b16 %v995
  %v1068 = vunpack.c.h.b16 %v995
  %v1069 = vunpack.c.l.b16 %v996
  %v1070 = vunpack.c.l.b16 %v997
  %v1071 = vunpack.c.h.b16 %v997
  %v1072 = vunpack.c.l.b16 %v998
  %v1073 = vunpack.c.l.b16 %v999
  %v1074 = vunpack.c.h.b16 %v999
  %v1075 = vunpack.c.l.b16 %v1000
  %v1076 = vunpack.c.l.b16 %v1001
  %v1077 = vunpack.c.h.b16 %v1001
  %v1078 = vunpack.c.l.b16 %v1002
  %v1079 = vunpack.c.l.b16 %v1003
  %v1080 = vunpack.c.h.b16 %v1003
  %v1081 = vunpack.c.l.b16 %v1004
  %v1082 = vunpack.c.l.b16 %v1005
  %v1083 = vunpack.c.h.b16 %v1005
  %v1084 = vunpack.c.l.b16 %v1006
  %v1085 = vunpack.c.l.b16 %v1007
  %v1086 = vunpack.c.h.b16 %v1007
  %v1087 = vunpack.c.l.b16 %v1008
  %v1088 = vunpack.c.l.b16 %v1009
  %v1089 = vunpack.c.h.b16 %v1009
  %v1090 = vunpack.c.l.b16 %v1010
  %v1091 = vpack.c.b16 %v1046, %v1043
  %v1092 = vpack.c.b16 %v1047, %v1044
  %v1093 = vpack.c.b16 %v1048, %v1045
  %v1094 = vpack.c.b16 %v1052, %v1049
  %v1095 = vpack.c.b16 %v1053, %v1050
  %v1096 = vpack.c.b16 %v1054, %v1051
  %v1097 = vpack.c.b16 %v1058, %v1055
  %v1098 = vpack.c.b16 %v1059, %v1056
  %v1099 = vpack.c.b16 %v1060, %v1057
  %v1100 = vpack.c.b16 %v1064, %v1061
  %v1101 = vpack.c.b16 %v1065, %v1062
  %v1102 = vpack.c.b16 %v1066, %v1063
  %v1103 = vpack.c.b16 %v1070, %v1067
  %v1104 = vpack.c.b16 %v1071, %v1068
  %v1105 = vpack.c.b16 %v1072, %v1069
  %v1106 = vpack.c.b16 %v1076, %v1073
  %v1107 = vpack.c.b16 %v1077, %v1074
  %v1108 = vpack.c.b16 %v1078, %v1075
  %v1109 = vpack.c.b16 %v1082, %v1079
  %v1110 = vpack.c.b16 %v1083, %v1080
  %v1111 = vpack.c.b16 %v1084, %v1081
  %v1112 = vpack.c.b16 %v1088, %v1085
  %v1113 = vpack.c.b16 %v1089, %v1086
  %v1114 = vpack.c.b16 %v1090, %v1087
  %1139 = vmatpush.bf16.msra.mxu0 %v1112
  %1140 = vmatpush.bf16.msra.mxu0 %v1109
  %1141 = vmatpush.bf16.msra.mxu0 %v1106
  %1142 = vmatpush.bf16.msra.mxu0 %v1103
  %1143 = vmatpush.bf16.msra.mxu0 %v1100
  %1144 = vmatpush.bf16.msra.mxu0 %v1097
  %1145 = vmatpush.bf16.msra.mxu0 %v1094
  %1146 = vmatpush.bf16.msra.mxu0 %v1091
  %1147 = vmatmul.bf16.gmra.mxu0 %v978
  %v1148 = vpop.f32.mrf.mxu0
  %v1149 = vadd.f32 0.0, %v1148
  %v1150 = vpop.f32.mrf.mxu0
  %v1151 = vadd.f32 0.0, %v1150
  %1152 = vdwg.mxu0
  %1153 = vmatpush.bf16.msra.mxu0 %v1113
  %1154 = vmatpush.bf16.msra.mxu0 %v1110
  %1155 = vmatpush.bf16.msra.mxu0 %v1107
  %1156 = vmatpush.bf16.msra.mxu0 %v1104
  %1157 = vmatpush.bf16.msra.mxu0 %v1101
  %1158 = vmatpush.bf16.msra.mxu0 %v1098
  %1159 = vmatpush.bf16.msra.mxu0 %v1095
  %1160 = vmatpush.bf16.msra.mxu0 %v1092
  %1161 = vmatmul.bf16.gmra.mxu0 %v978
  %v1162 = vpop.f32.mrf.mxu0
  %v1163 = vadd.f32 0.0, %v1162
  %v1164 = vpop.f32.mrf.mxu0
  %v1165 = vadd.f32 0.0, %v1164
  %1166 = vdwg.mxu0
  %1167 = vmatpush.bf16.msra.mxu0 %v1114
  %1168 = vmatpush.bf16.msra.mxu0 %v1111
  %1169 = vmatpush.bf16.msra.mxu0 %v1108
  %1170 = vmatpush.bf16.msra.mxu0 %v1105
  %1171 = vmatpush.bf16.msra.mxu0 %v1102
  %1172 = vmatpush.bf16.msra.mxu0 %v1099
  %1173 = vmatpush.bf16.msra.mxu0 %v1096
  %1174 = vmatpush.bf16.msra.mxu0 %v1093
  %1175 = vmatmul.bf16.gmra.mxu0 %v978
  %v1176 = vpop.f32.mrf.mxu0
  %v1177 = vadd.f32 0.0, %v1176
  %v1178 = vpop.f32.mrf.mxu0
  %v1179 = vadd.f32 0.0, %v1178
  %1180 = vdwg.mxu0
  %v1181 = vpack.c.bf16 %v1149, %v1149
  %v1182 = vpack.c.bf16 %v1151, %v1151
  %1183 = vst [vmem:[%s10] sm:$0xf] %v1181
  %1184 = vst [vmem:[%s10 + $0x4] sm:$0xf] %v1182
  %v1185 = vpack.c.bf16 %v1163, %v1163
  %v1186 = vpack.c.bf16 %v1165, %v1165
  %s1187 = scalar_lea.vmem %s10, 8
  %1188 = vst [vmem:[%s1187] sm:$0xf] %v1185
  %1189 = vst [vmem:[%s1187 + $0x4] sm:$0xf] %v1186
  %v1190 = vpack.c.bf16 %v1177, %v1177
  %v1191 = vpack.c.bf16 %v1179, %v1179
  %s1192 = scalar_lea.vmem %s10, 16
  %1193 = vst [vmem:[%s1192] sm:$0xf] %v1190
  %1194 = vst [vmem:[%s1192 + $0x4] sm:$0xf] %v1191
  %v1195 = vld [vmem:[%s7] sm:$0xf]
  %v1196 = vld [vmem:[%s7 + $0x4] sm:$0xf]
  %v1197 = vld [vmem:[%s7 + $0x8] sm:$0xf]
  %v1198 = vld [vmem:[%s7 + $0xc] sm:$0xf]
  %v1199 = vld [vmem:[%s7 + $0x10] sm:$0xf]
  %v1200 = vld [vmem:[%s7 + $0x14] sm:$0xf]
  %v1201 = vld [vmem:[%s7 + $0x18] sm:$0xf]
  %v1202 = vld [vmem:[%s7 + $0x1c] sm:$0xf]
  %v1203 = vld [vmem:[%s7 + $0x20] sm:$0xf]
  %v1204 = vld [vmem:[%s7 + $0x24] sm:$0xf]
  %v1205 = vld [vmem:[%s7 + $0x28] sm:$0xf]
  %v1206 = vld [vmem:[%s7 + $0x2c] sm:$0xf]
  %v1207 = vld [vmem:[%s7 + $0x30] sm:$0xf]
  %v1208 = vld [vmem:[%s7 + $0x34] sm:$0xf]
  %v1209 = vld [vmem:[%s7 + $0x38] sm:$0xf]
  %v1210 = vld [vmem:[%s7 + $0x3c] sm:$0xf]
  %v1211 = vld [vmem:[%s8] sm:$0x1]
  %v1213 = vperm.slane %v1211, 0
  %v1231 = vunpack.c.l.b16 %v1195
  %v1232 = vunpack.c.l.b16 %v1196
  %v1233 = vunpack.c.l.b16 %v1197
  %v1234 = vunpack.c.l.b16 %v1198
  %v1235 = vunpack.c.l.b16 %v1199
  %v1236 = vunpack.c.l.b16 %v1200
  %v1237 = vunpack.c.l.b16 %v1201
  %v1238 = vunpack.c.l.b16 %v1202
  %v1239 = vunpack.c.l.b16 %v1203
  %v1240 = vunpack.c.l.b16 %v1204
  %v1241 = vunpack.c.l.b16 %v1205
  %v1242 = vunpack.c.l.b16 %v1206
  %v1243 = vunpack.c.l.b16 %v1207
  %v1244 = vunpack.c.l.b16 %v1208
  %v1245 = vunpack.c.l.b16 %v1209
  %v1246 = vunpack.c.l.b16 %v1210
  %v1247 = vpack.c.b16 %v1232, %v1231
  %v1248 = vpack.c.b16 %v1234, %v1233
  %v1249 = vpack.c.b16 %v1236, %v1235
  %v1250 = vpack.c.b16 %v1238, %v1237
  %v1251 = vpack.c.b16 %v1240, %v1239
  %v1252 = vpack.c.b16 %v1242, %v1241
  %v1253 = vpack.c.b16 %v1244, %v1243
  %v1254 = vpack.c.b16 %v1246, %v1245
  %1263 = vmatpush.bf16.msra.mxu0 %v1254
  %1264 = vmatpush.bf16.msra.mxu0 %v1253
  %1265 = vmatpush.bf16.msra.mxu0 %v1252
  %1266 = vmatpush.bf16.msra.mxu0 %v1251
  %1267 = vmatpush.bf16.msra.mxu0 %v1250
  %1268 = vmatpush.bf16.msra.mxu0 %v1249
  %1269 = vmatpush.bf16.msra.mxu0 %v1248
  %1270 = vmatpush.bf16.msra.mxu0 %v1247
  %1271 = vmatmul.bf16.gmra.mxu0 %v978
  %v1272 = vpop.f32.mrf.mxu0
  %v1273 = vadd.f32 %v1213, %v1272
  %v1274 = vpop.f32.mrf.mxu0
  %v1275 = vadd.f32 %v1213, %v1274
  %1276 = vdwg.mxu0
  %1277 = vst [vmem:[%s11] sm:$0xff] %v1273
  %1278 = vst [vmem:[%s11 + $0x8] sm:$0xff] %v1275
  // Predicated region
  $region38: #{lm_concat_rgcn_attn_forward.4} parent=0 // pred_check
    _
  $region39: #{lm_concat_rgcn_attn_forward.4} parent=0 // pred_check_branch
    %1280 = sbr.rel (0) target = $region41
  $region40: #{lm_concat_rgcn_attn_forward.4} parent=0 // pred_region
    _
  $region41: #{lm_concat_rgcn_attn_forward.4} parent=0 // pred_fallthru
    _
  // Predicated region
  $region42: #{lm_concat_rgcn_attn_forward.4} parent=0 // pred_check
    _
  $region43: #{lm_concat_rgcn_attn_forward.4} parent=0 // pred_check_branch
    %1282 = sbr.rel (0) target = $region45
  $region44: #{lm_concat_rgcn_attn_forward.4} parent=0 // pred_region
    _
  $region45: #{lm_concat_rgcn_attn_forward.4} parent=0 // pred_fallthru
    _
  // Predicated region
  $region46: #{lm_concat_rgcn_attn_forward.4} parent=0 // pred_check
    _
  $region47: #{lm_concat_rgcn_attn_forward.4} parent=0 // pred_check_branch
    %1284 = sbr.rel (0) target = $region49
  $region48: #{lm_concat_rgcn_attn_forward.4} parent=0 // pred_region
    _
  $region49: #{lm_concat_rgcn_attn_forward.4} parent=0 // pred_fallthru
    _
  // Predicated region
  $region50: #{lm_concat_rgcn_attn_forward.4} parent=0 // pred_check
    _
  $region51: #{lm_concat_rgcn_attn_forward.4} parent=0 // pred_check_branch
    %1286 = sbr.rel (0) target = $region53
  $region52: #{lm_concat_rgcn_attn_forward.4} parent=0 // pred_region
    _
  $region53: #{lm_concat_rgcn_attn_forward.4} parent=0 // pred_fallthru
    _
  // Predicated region
  $region54: #{lm_concat_rgcn_attn_forward.4} parent=0 // pred_check
    _
  $region55: #{lm_concat_rgcn_attn_forward.4} parent=0 // pred_check_branch
    %1288 = sbr.rel (0) target = $region57
  $region56: #{lm_concat_rgcn_attn_forward.4} parent=0 // pred_region
    _
  $region57: #{lm_concat_rgcn_attn_forward.4} parent=0 // pred_fallthru
    _
  // Predicated region
  $region58: #{lm_concat_rgcn_attn_forward.4} parent=0 // pred_check
    _
  $region59: #{lm_concat_rgcn_attn_forward.4} parent=0 // pred_check_branch
    %1290 = sbr.rel (0) target = $region61
  $region60: #{lm_concat_rgcn_attn_forward.4} parent=0 // pred_region
    _
  $region61: #{lm_concat_rgcn_attn_forward.4} parent=0 // pred_fallthru
    _

// kernel: lm_concat_rgcn_attn_forward.6
$region0: #{lm_concat_rgcn_attn_forward.6}
  #allocation0 [shape = 'u32[]', space=smem, size = 0x4, offset = 0x4, fixed_abs, tag = 'smem constant byte address 0x4 - core index']
  #allocation1 [shape = 'u32[72,128]{1,0:T(1,128)}', space=vmem, size = 0x9000, scoped, tag = 'internal scratch']
  #allocation2 [shape = 'f32[16,128]{1,0:T(8,128)}', space=vmem, size = 0x2000, scoped, tag = 'scratch operand']
  %s0 = inlined_call_operand.vmem [shape: bf16[16,48], index: 0, kind: input, shape index: {}]
  %s1 = inlined_call_operand.vmem [shape: bf16[48,128], index: 1, kind: input, shape index: {}]
  %s2 = inlined_call_operand.vmem [shape: f32[16,128], index: 2, kind: input, shape index: {}]
  %s3 = inlined_call_operand.vmem [shape: bf16[128,128], index: 3, kind: input, shape index: {}]
  %s4 = inlined_call_operand.vmem [shape: f32[1,128], index: 4, kind: input, shape index: {}]
  %s5 = inlined_call_operand.vmem [shape: f32[16,128], index: 5, kind: output, shape index: {}]
  %s6 = sld [smem:[#allocation0]]
  $region38: #{lm_concat_rgcn_attn_forward.6} parent=0
    _
  %s8 = ssub.s32 1, %s6
  %s9 = scalar_select 0, %s8, %s6
  // Predicated region
  $region2: #{lm_concat_rgcn_attn_forward.6} parent=0 // pred_check
    _
  $region3: #{lm_concat_rgcn_attn_forward.6} parent=0 // pred_check_branch
    %11 = sbr.rel (0) target = $region5
  $region4: #{lm_concat_rgcn_attn_forward.6} parent=0 // pred_region
    _
  $region5: #{lm_concat_rgcn_attn_forward.6} parent=0 // pred_fallthru
    _
  // Predicated region
  $region6: #{lm_concat_rgcn_attn_forward.6} parent=0 // pred_check
    _
  $region7: #{lm_concat_rgcn_attn_forward.6} parent=0 // pred_check_branch
    %13 = sbr.rel (0) target = $region9
  $region8: #{lm_concat_rgcn_attn_forward.6} parent=0 // pred_region
    _
  $region9: #{lm_concat_rgcn_attn_forward.6} parent=0 // pred_fallthru
    _
  // Predicated region
  $region10: #{lm_concat_rgcn_attn_forward.6} parent=0 // pred_check
    _
  $region11: #{lm_concat_rgcn_attn_forward.6} parent=0 // pred_check_branch
    %15 = sbr.rel (0) target = $region13
  $region12: #{lm_concat_rgcn_attn_forward.6} parent=0 // pred_region
    _
  $region13: #{lm_concat_rgcn_attn_forward.6} parent=0 // pred_fallthru
    _
  // Predicated region
  $region14: #{lm_concat_rgcn_attn_forward.6} parent=0 // pred_check
    _
  $region15: #{lm_concat_rgcn_attn_forward.6} parent=0 // pred_check_branch
    %17 = sbr.rel (0) target = $region17
  $region16: #{lm_concat_rgcn_attn_forward.6} parent=0 // pred_region
    _
  $region17: #{lm_concat_rgcn_attn_forward.6} parent=0 // pred_fallthru
    _
  // Predicated region
  $region18: #{lm_concat_rgcn_attn_forward.6} parent=0 // pred_check
    _
  $region19: #{lm_concat_rgcn_attn_forward.6} parent=0 // pred_check_branch
    %19 = sbr.rel (0) target = $region21
  $region20: #{lm_concat_rgcn_attn_forward.6} parent=0 // pred_region
    _
  $region21: #{lm_concat_rgcn_attn_forward.6} parent=0 // pred_fallthru
    _
  %p21 = scmp.eq.s32.totalorder 0, 0
  // Predicated region
  $region22: #{lm_concat_rgcn_attn_forward.6} parent=0 // pred_check
    %p22 = pneg %p21
  $region23: #{lm_concat_rgcn_attn_forward.6} parent=0 // pred_check_branch
    %24 = sbr.rel (%p22) target = $region25
  $region24: #{lm_concat_rgcn_attn_forward.6} parent=0 // pred_region
    %v25 = vld [vmem:[%s2] sm:$0xff]
    %v26 = vld [vmem:[%s2 + $0x8] sm:$0xff]
    %27 = vst [vmem:[#allocation2] sm:$0xff] %v25
    %28 = vst [vmem:[#allocation2 + $0x8] sm:$0xff] %v26
  $region25: #{lm_concat_rgcn_attn_forward.6} parent=0 // pred_fallthru
    _
  %v29 = vld [vmem:[#allocation2] sm:$0xff]
  %v30 = vld [vmem:[#allocation2 + $0x8] sm:$0xff]
  %v31 = vld [vmem:[%s0] sm:$0xf]
  %v32 = vld [vmem:[%s0 + $0x4] sm:$0xf]
  %v33 = vld [vmem:[%s1] sm:$0xf]
  %v34 = vld [vmem:[%s1 + $0x4] sm:$0xf]
  %v35 = vld [vmem:[%s1 + $0x8] sm:$0xf]
  %v36 = vld [vmem:[%s1 + $0xc] sm:$0xf]
  %v37 = vld [vmem:[%s1 + $0x10] sm:$0xf]
  %v38 = vld [vmem:[%s1 + $0x14] sm:$0xf]
  %v41 = vunpack.c.l.b16 %v31
  %v42 = vunpack.c.l.b16 %v32
  %v43 = vpack.c.b16 %v42, %v41
  %v50 = vunpack.c.l.b16 %v33
  %v51 = vunpack.c.l.b16 %v34
  %v52 = vunpack.c.l.b16 %v35
  %v53 = vunpack.c.l.b16 %v36
  %v54 = vunpack.c.l.b16 %v37
  %v55 = vunpack.c.l.b16 %v38
  %v56 = vpack.c.b16 %v51, %v50
  %v57 = vpack.c.b16 %v53, %v52
  %v58 = vpack.c.b16 %v55, %v54
  %vm62 = vcmask 392192
  %v64 = vsel %vm62, %v43, 0
  %66 = vmatpush.bf16.msra.mxu0 0
  %67 = vmatpush.bf16.msra.mxu0 0
  %68 = vmatpush.bf16.msra.mxu0 0
  %69 = vmatpush.bf16.msra.mxu0 0
  %70 = vmatpush.bf16.msra.mxu0 0
  %71 = vmatpush.bf16.msra.mxu0 %v58
  %72 = vmatpush.bf16.msra.mxu0 %v57
  %73 = vmatpush.bf16.msra.mxu0 %v56
  %74 = vmatmul.bf16.gmra.mxu0 %v64
  %v75 = vpop.f32.mrf.mxu0
  %v76 = vadd.f32 0.0, %v75
  %v77 = vpop.f32.mrf.mxu0
  %v78 = vadd.f32 0.0, %v77
  %79 = vdwg.mxu0
  %v80 = vadd.f32 %v29, %v76
  %v81 = vadd.f32 %v30, %v78
  %82 = vst [vmem:[#allocation2] sm:$0xff] %v80
  %83 = vst [vmem:[#allocation2 + $0x8] sm:$0xff] %v81
  // Predicated region
  $region26: #{lm_concat_rgcn_attn_forward.6} parent=0 // pred_check
    %p84 = pneg %p21
  $region27: #{lm_concat_rgcn_attn_forward.6} parent=0 // pred_check_branch
    %86 = sbr.rel (%p84) target = $region29
  $region28: #{lm_concat_rgcn_attn_forward.6} parent=0 // pred_region
    %v87 = vld [vmem:[#allocation2] sm:$0xff]
    %v88 = vld [vmem:[#allocation2 + $0x8] sm:$0xff]
    %v89 = vmax.f32 %v87, 0.0
    %v90 = vmax.f32 %v88, 0.0
    %v91 = vpack.c.bf16 %v90, %v89
    %v92 = vld [vmem:[%s3] sm:$0xf]
    %v93 = vld [vmem:[%s3 + $0x4] sm:$0xf]
    %v94 = vld [vmem:[%s3 + $0x8] sm:$0xf]
    %v95 = vld [vmem:[%s3 + $0xc] sm:$0xf]
    %v96 = vld [vmem:[%s3 + $0x10] sm:$0xf]
    %v97 = vld [vmem:[%s3 + $0x14] sm:$0xf]
    %v98 = vld [vmem:[%s3 + $0x18] sm:$0xf]
    %v99 = vld [vmem:[%s3 + $0x1c] sm:$0xf]
    %v100 = vld [vmem:[%s3 + $0x20] sm:$0xf]
    %v101 = vld [vmem:[%s3 + $0x24] sm:$0xf]
    %v102 = vld [vmem:[%s3 + $0x28] sm:$0xf]
    %v103 = vld [vmem:[%s3 + $0x2c] sm:$0xf]
    %v104 = vld [vmem:[%s3 + $0x30] sm:$0xf]
    %v105 = vld [vmem:[%s3 + $0x34] sm:$0xf]
    %v106 = vld [vmem:[%s3 + $0x38] sm:$0xf]
    %v107 = vld [vmem:[%s3 + $0x3c] sm:$0xf]
    %v108 = vld [vmem:[%s4] sm:$0x1]
    %v110 = vperm.slane %v108, 0
    %v128 = vunpack.c.l.b16 %v92
    %v129 = vunpack.c.l.b16 %v93
    %v130 = vunpack.c.l.b16 %v94
    %v131 = vunpack.c.l.b16 %v95
    %v132 = vunpack.c.l.b16 %v96
    %v133 = vunpack.c.l.b16 %v97
    %v134 = vunpack.c.l.b16 %v98
    %v135 = vunpack.c.l.b16 %v99
    %v136 = vunpack.c.l.b16 %v100
    %v137 = vunpack.c.l.b16 %v101
    %v138 = vunpack.c.l.b16 %v102
    %v139 = vunpack.c.l.b16 %v103
    %v140 = vunpack.c.l.b16 %v104
    %v141 = vunpack.c.l.b16 %v105
    %v142 = vunpack.c.l.b16 %v106
    %v143 = vunpack.c.l.b16 %v107
    %v144 = vpack.c.b16 %v129, %v128
    %v145 = vpack.c.b16 %v131, %v130
    %v146 = vpack.c.b16 %v133, %v132
    %v147 = vpack.c.b16 %v135, %v134
    %v148 = vpack.c.b16 %v137, %v136
    %v149 = vpack.c.b16 %v139, %v138
    %v150 = vpack.c.b16 %v141, %v140
    %v151 = vpack.c.b16 %v143, %v142
    %160 = vmatpush.bf16.msra.mxu0 %v151
    %161 = vmatpush.bf16.msra.mxu0 %v150
    %162 = vmatpush.bf16.msra.mxu0 %v149
    %163 = vmatpush.bf16.msra.mxu0 %v148
    %164 = vmatpush.bf16.msra.mxu0 %v147
    %165 = vmatpush.bf16.msra.mxu0 %v146
    %166 = vmatpush.bf16.msra.mxu0 %v145
    %167 = vmatpush.bf16.msra.mxu0 %v144
    %168 = vmatmul.bf16.gmra.mxu0 %v91
    %v169 = vpop.f32.mrf.mxu0
    %v170 = vadd.f32 %v110, %v169
    %v171 = vpop.f32.mrf.mxu0
    %v172 = vadd.f32 %v110, %v171
    %173 = vdwg.mxu0
    %174 = vst [vmem:[%s5] sm:$0xff] %v170
    %175 = vst [vmem:[%s5 + $0x8] sm:$0xff] %v172
  $region29: #{lm_concat_rgcn_attn_forward.6} parent=0 // pred_fallthru
    _
  // Predicated region
  $region30: #{lm_concat_rgcn_attn_forward.6} parent=0 // pred_check
    _
  $region31: #{lm_concat_rgcn_attn_forward.6} parent=0 // pred_check_branch
    %177 = sbr.rel (0) target = $region33
  $region32: #{lm_concat_rgcn_attn_forward.6} parent=0 // pred_region
    _
  $region33: #{lm_concat_rgcn_attn_forward.6} parent=0 // pred_fallthru
    _
  // Predicated region
  $region34: #{lm_concat_rgcn_attn_forward.6} parent=0 // pred_check
    _
  $region35: #{lm_concat_rgcn_attn_forward.6} parent=0 // pred_check_branch
    %179 = sbr.rel (0) target = $region37
  $region36: #{lm_concat_rgcn_attn_forward.6} parent=0 // pred_region
    _
  $region37: #{lm_concat_rgcn_attn_forward.6} parent=0 // pred_fallthru
    _

// kernel: lm_concat_rgcn_attn_forward.7
$region0: #{lm_concat_rgcn_attn_forward.7}
  #allocation0 [shape = 'u32[]', space=smem, size = 0x4, offset = 0x4, fixed_abs, tag = 'smem constant byte address 0x4 - core index']
  #allocation1 [shape = 'u32[72,128]{1,0:T(1,128)}', space=vmem, size = 0x9000, scoped, tag = 'internal scratch']
  %s0 = inlined_call_operand.vmem [shape: f32[16,128], index: 0, kind: input, shape index: {}]
  %s1 = inlined_call_operand.vmem [shape: f32[16,128], index: 1, kind: input, shape index: {}]
  %s2 = inlined_call_operand.vmem [shape: f32[16,16], index: 2, kind: input, shape index: {}]
  %s3 = inlined_call_operand.vmem [shape: bf16[128,128], index: 3, kind: input, shape index: {}]
  %s4 = inlined_call_operand.vmem [shape: f32[1,128], index: 4, kind: input, shape index: {}]
  %s5 = inlined_call_operand.vmem [shape: bf16[128,128], index: 5, kind: input, shape index: {}]
  %s6 = inlined_call_operand.vmem [shape: f32[1,128], index: 6, kind: input, shape index: {}]
  %s7 = inlined_call_operand.vmem [shape: bf16[128,128], index: 7, kind: input, shape index: {}]
  %s8 = inlined_call_operand.vmem [shape: f32[1,128], index: 8, kind: input, shape index: {}]
  %s9 = inlined_call_operand.vmem [shape: bf16[128,128], index: 9, kind: input, shape index: {}]
  %s10 = inlined_call_operand.vmem [shape: f32[1,128], index: 10, kind: input, shape index: {}]
  %s11 = inlined_call_operand.vmem [shape: bf16[128,128], index: 11, kind: input, shape index: {}]
  %s12 = inlined_call_operand.vmem [shape: f32[1,128], index: 12, kind: input, shape index: {}]
  %s13 = inlined_call_operand.vmem [shape: bf16[128,128], index: 13, kind: input, shape index: {}]
  %s14 = inlined_call_operand.vmem [shape: f32[1,128], index: 14, kind: input, shape index: {}]
  %s15 = inlined_call_operand.vmem [shape: f32[16,128], index: 15, kind: output, shape index: {}]
  %s16 = sld [smem:[#allocation0]]
  $region70: #{lm_concat_rgcn_attn_forward.7} parent=0
    _
  %s18 = ssub.s32 1, %s16
  %s19 = scalar_select 0, %s18, %s16
  // Predicated region
  $region2: #{lm_concat_rgcn_attn_forward.7} parent=0 // pred_check
    _
  $region3: #{lm_concat_rgcn_attn_forward.7} parent=0 // pred_check_branch
    %21 = sbr.rel (0) target = $region5
  $region4: #{lm_concat_rgcn_attn_forward.7} parent=0 // pred_region
    _
  $region5: #{lm_concat_rgcn_attn_forward.7} parent=0 // pred_fallthru
    _
  // Predicated region
  $region6: #{lm_concat_rgcn_attn_forward.7} parent=0 // pred_check
    _
  $region7: #{lm_concat_rgcn_attn_forward.7} parent=0 // pred_check_branch
    %23 = sbr.rel (0) target = $region9
  $region8: #{lm_concat_rgcn_attn_forward.7} parent=0 // pred_region
    _
  $region9: #{lm_concat_rgcn_attn_forward.7} parent=0 // pred_fallthru
    _
  // Predicated region
  $region10: #{lm_concat_rgcn_attn_forward.7} parent=0 // pred_check
    _
  $region11: #{lm_concat_rgcn_attn_forward.7} parent=0 // pred_check_branch
    %25 = sbr.rel (0) target = $region13
  $region12: #{lm_concat_rgcn_attn_forward.7} parent=0 // pred_region
    _
  $region13: #{lm_concat_rgcn_attn_forward.7} parent=0 // pred_fallthru
    _
  // Predicated region
  $region14: #{lm_concat_rgcn_attn_forward.7} parent=0 // pred_check
    _
  $region15: #{lm_concat_rgcn_attn_forward.7} parent=0 // pred_check_branch
    %27 = sbr.rel (0) target = $region17
  $region16: #{lm_concat_rgcn_attn_forward.7} parent=0 // pred_region
    _
  $region17: #{lm_concat_rgcn_attn_forward.7} parent=0 // pred_fallthru
    _
  // Predicated region
  $region18: #{lm_concat_rgcn_attn_forward.7} parent=0 // pred_check
    _
  $region19: #{lm_concat_rgcn_attn_forward.7} parent=0 // pred_check_branch
    %29 = sbr.rel (0) target = $region21
  $region20: #{lm_concat_rgcn_attn_forward.7} parent=0 // pred_region
    _
  $region21: #{lm_concat_rgcn_attn_forward.7} parent=0 // pred_fallthru
    _
  // Predicated region
  $region22: #{lm_concat_rgcn_attn_forward.7} parent=0 // pred_check
    _
  $region23: #{lm_concat_rgcn_attn_forward.7} parent=0 // pred_check_branch
    %31 = sbr.rel (0) target = $region25
  $region24: #{lm_concat_rgcn_attn_forward.7} parent=0 // pred_region
    _
  $region25: #{lm_concat_rgcn_attn_forward.7} parent=0 // pred_fallthru
    _
  // Predicated region
  $region26: #{lm_concat_rgcn_attn_forward.7} parent=0 // pred_check
    _
  $region27: #{lm_concat_rgcn_attn_forward.7} parent=0 // pred_check_branch
    %33 = sbr.rel (0) target = $region29
  $region28: #{lm_concat_rgcn_attn_forward.7} parent=0 // pred_region
    _
  $region29: #{lm_concat_rgcn_attn_forward.7} parent=0 // pred_fallthru
    _
  // Predicated region
  $region30: #{lm_concat_rgcn_attn_forward.7} parent=0 // pred_check
    _
  $region31: #{lm_concat_rgcn_attn_forward.7} parent=0 // pred_check_branch
    %35 = sbr.rel (0) target = $region33
  $region32: #{lm_concat_rgcn_attn_forward.7} parent=0 // pred_region
    _
  $region33: #{lm_concat_rgcn_attn_forward.7} parent=0 // pred_fallthru
    _
  // Predicated region
  $region34: #{lm_concat_rgcn_attn_forward.7} parent=0 // pred_check
    _
  $region35: #{lm_concat_rgcn_attn_forward.7} parent=0 // pred_check_branch
    %37 = sbr.rel (0) target = $region37
  $region36: #{lm_concat_rgcn_attn_forward.7} parent=0 // pred_region
    _
  $region37: #{lm_concat_rgcn_attn_forward.7} parent=0 // pred_fallthru
    _
  // Predicated region
  $region38: #{lm_concat_rgcn_attn_forward.7} parent=0 // pred_check
    _
  $region39: #{lm_concat_rgcn_attn_forward.7} parent=0 // pred_check_branch
    %39 = sbr.rel (0) target = $region41
  $region40: #{lm_concat_rgcn_attn_forward.7} parent=0 // pred_region
    _
  $region41: #{lm_concat_rgcn_attn_forward.7} parent=0 // pred_fallthru
    _
  // Predicated region
  $region42: #{lm_concat_rgcn_attn_forward.7} parent=0 // pred_check
    _
  $region43: #{lm_concat_rgcn_attn_forward.7} parent=0 // pred_check_branch
    %41 = sbr.rel (0) target = $region45
  $region44: #{lm_concat_rgcn_attn_forward.7} parent=0 // pred_region
    _
  $region45: #{lm_concat_rgcn_attn_forward.7} parent=0 // pred_fallthru
    _
  // Predicated region
  $region46: #{lm_concat_rgcn_attn_forward.7} parent=0 // pred_check
    _
  $region47: #{lm_concat_rgcn_attn_forward.7} parent=0 // pred_check_branch
    %43 = sbr.rel (0) target = $region49
  $region48: #{lm_concat_rgcn_attn_forward.7} parent=0 // pred_region
    _
  $region49: #{lm_concat_rgcn_attn_forward.7} parent=0 // pred_fallthru
    _
  // Predicated region
  $region50: #{lm_concat_rgcn_attn_forward.7} parent=0 // pred_check
    _
  $region51: #{lm_concat_rgcn_attn_forward.7} parent=0 // pred_check_branch
    %45 = sbr.rel (0) target = $region53
  $region52: #{lm_concat_rgcn_attn_forward.7} parent=0 // pred_region
    _
  $region53: #{lm_concat_rgcn_attn_forward.7} parent=0 // pred_fallthru
    _
  // Predicated region
  $region54: #{lm_concat_rgcn_attn_forward.7} parent=0 // pred_check
    _
  $region55: #{lm_concat_rgcn_attn_forward.7} parent=0 // pred_check_branch
    %47 = sbr.rel (0) target = $region57
  $region56: #{lm_concat_rgcn_attn_forward.7} parent=0 // pred_region
    _
  $region57: #{lm_concat_rgcn_attn_forward.7} parent=0 // pred_fallthru
    _
  // Predicated region
  $region58: #{lm_concat_rgcn_attn_forward.7} parent=0 // pred_check
    _
  $region59: #{lm_concat_rgcn_attn_forward.7} parent=0 // pred_check_branch
    %49 = sbr.rel (0) target = $region61
  $region60: #{lm_concat_rgcn_attn_forward.7} parent=0 // pred_region
    _
  $region61: #{lm_concat_rgcn_attn_forward.7} parent=0 // pred_fallthru
    _
  %v51 = vld [vmem:[%s0] sm:$0xff]
  %v52 = vld [vmem:[%s0 + $0x8] sm:$0xff]
  %v53 = vld [vmem:[%s1] sm:$0xff]
  %v54 = vld [vmem:[%s1 + $0x8] sm:$0xff]
  %v55 = vld [vmem:[%s2] sm:$0xff]
  %v56 = vld [vmem:[%s2 + $0x8] sm:$0xff]
  %v57 = vpack.c.bf16 %v52, %v51
  %v58 = vpack.c.bf16 %v54, %v53
  %v59 = vld [vmem:[%s3] sm:$0xf]
  %v60 = vld [vmem:[%s3 + $0x4] sm:$0xf]
  %v61 = vld [vmem:[%s3 + $0x8] sm:$0xf]
  %v62 = vld [vmem:[%s3 + $0xc] sm:$0xf]
  %v63 = vld [vmem:[%s3 + $0x10] sm:$0xf]
  %v64 = vld [vmem:[%s3 + $0x14] sm:$0xf]
  %v65 = vld [vmem:[%s3 + $0x18] sm:$0xf]
  %v66 = vld [vmem:[%s3 + $0x1c] sm:$0xf]
  %v67 = vld [vmem:[%s3 + $0x20] sm:$0xf]
  %v68 = vld [vmem:[%s3 + $0x24] sm:$0xf]
  %v69 = vld [vmem:[%s3 + $0x28] sm:$0xf]
  %v70 = vld [vmem:[%s3 + $0x2c] sm:$0xf]
  %v71 = vld [vmem:[%s3 + $0x30] sm:$0xf]
  %v72 = vld [vmem:[%s3 + $0x34] sm:$0xf]
  %v73 = vld [vmem:[%s3 + $0x38] sm:$0xf]
  %v74 = vld [vmem:[%s3 + $0x3c] sm:$0xf]
  %v75 = vld [vmem:[%s4] sm:$0x1]
  %v77 = vperm.slane %v75, 0
  %v95 = vunpack.c.l.b16 %v59
  %v96 = vunpack.c.l.b16 %v60
  %v97 = vunpack.c.l.b16 %v61
  %v98 = vunpack.c.l.b16 %v62
  %v99 = vunpack.c.l.b16 %v63
  %v100 = vunpack.c.l.b16 %v64
  %v101 = vunpack.c.l.b16 %v65
  %v102 = vunpack.c.l.b16 %v66
  %v103 = vunpack.c.l.b16 %v67
  %v104 = vunpack.c.l.b16 %v68
  %v105 = vunpack.c.l.b16 %v69
  %v106 = vunpack.c.l.b16 %v70
  %v107 = vunpack.c.l.b16 %v71
  %v108 = vunpack.c.l.b16 %v72
  %v109 = vunpack.c.l.b16 %v73
  %v110 = vunpack.c.l.b16 %v74
  %v111 = vpack.c.b16 %v96, %v95
  %v112 = vpack.c.b16 %v98, %v97
  %v113 = vpack.c.b16 %v100, %v99
  %v114 = vpack.c.b16 %v102, %v101
  %v115 = vpack.c.b16 %v104, %v103
  %v116 = vpack.c.b16 %v106, %v105
  %v117 = vpack.c.b16 %v108, %v107
  %v118 = vpack.c.b16 %v110, %v109
  %127 = vmatpush.bf16.msra.mxu0 %v118
  %128 = vmatpush.bf16.msra.mxu0 %v117
  %129 = vmatpush.bf16.msra.mxu0 %v116
  %130 = vmatpush.bf16.msra.mxu0 %v115
  %131 = vmatpush.bf16.msra.mxu0 %v114
  %132 = vmatpush.bf16.msra.mxu0 %v113
  %133 = vmatpush.bf16.msra.mxu0 %v112
  %134 = vmatpush.bf16.msra.mxu0 %v111
  %135 = vmatmul.bf16.gmra.mxu0 %v57
  %v136 = vpop.f32.mrf.mxu0
  %v137 = vadd.f32 %v77, %v136
  %v138 = vpop.f32.mrf.mxu0
  %v139 = vadd.f32 %v77, %v138
  %140 = vdwg.mxu0
  %v141 = vmul.f32 %v137, 0.17677669
  %v142 = vmul.f32 %v139, 0.17677669
  %v143 = vld [vmem:[%s5] sm:$0xf]
  %v144 = vld [vmem:[%s5 + $0x4] sm:$0xf]
  %v145 = vld [vmem:[%s5 + $0x8] sm:$0xf]
  %v146 = vld [vmem:[%s5 + $0xc] sm:$0xf]
  %v147 = vld [vmem:[%s5 + $0x10] sm:$0xf]
  %v148 = vld [vmem:[%s5 + $0x14] sm:$0xf]
  %v149 = vld [vmem:[%s5 + $0x18] sm:$0xf]
  %v150 = vld [vmem:[%s5 + $0x1c] sm:$0xf]
  %v151 = vld [vmem:[%s5 + $0x20] sm:$0xf]
  %v152 = vld [vmem:[%s5 + $0x24] sm:$0xf]
  %v153 = vld [vmem:[%s5 + $0x28] sm:$0xf]
  %v154 = vld [vmem:[%s5 + $0x2c] sm:$0xf]
  %v155 = vld [vmem:[%s5 + $0x30] sm:$0xf]
  %v156 = vld [vmem:[%s5 + $0x34] sm:$0xf]
  %v157 = vld [vmem:[%s5 + $0x38] sm:$0xf]
  %v158 = vld [vmem:[%s5 + $0x3c] sm:$0xf]
  %v159 = vld [vmem:[%s6] sm:$0x1]
  %v161 = vperm.slane %v159, 0
  %v179 = vunpack.c.l.b16 %v143
  %v180 = vunpack.c.l.b16 %v144
  %v181 = vunpack.c.l.b16 %v145
  %v182 = vunpack.c.l.b16 %v146
  %v183 = vunpack.c.l.b16 %v147
  %v184 = vunpack.c.l.b16 %v148
  %v185 = vunpack.c.l.b16 %v149
  %v186 = vunpack.c.l.b16 %v150
  %v187 = vunpack.c.l.b16 %v151
  %v188 = vunpack.c.l.b16 %v152
  %v189 = vunpack.c.l.b16 %v153
  %v190 = vunpack.c.l.b16 %v154
  %v191 = vunpack.c.l.b16 %v155
  %v192 = vunpack.c.l.b16 %v156
  %v193 = vunpack.c.l.b16 %v157
  %v194 = vunpack.c.l.b16 %v158
  %v195 = vpack.c.b16 %v180, %v179
  %v196 = vpack.c.b16 %v182, %v181
  %v197 = vpack.c.b16 %v184, %v183
  %v198 = vpack.c.b16 %v186, %v185
  %v199 = vpack.c.b16 %v188, %v187
  %v200 = vpack.c.b16 %v190, %v189
  %v201 = vpack.c.b16 %v192, %v191
  %v202 = vpack.c.b16 %v194, %v193
  %211 = vmatpush.bf16.msra.mxu0 %v202
  %212 = vmatpush.bf16.msra.mxu0 %v201
  %213 = vmatpush.bf16.msra.mxu0 %v200
  %214 = vmatpush.bf16.msra.mxu0 %v199
  %215 = vmatpush.bf16.msra.mxu0 %v198
  %216 = vmatpush.bf16.msra.mxu0 %v197
  %217 = vmatpush.bf16.msra.mxu0 %v196
  %218 = vmatpush.bf16.msra.mxu0 %v195
  %219 = vmatmul.bf16.gmra.mxu0 %v58
  %v220 = vpop.f32.mrf.mxu0
  %v221 = vadd.f32 %v161, %v220
  %v222 = vpop.f32.mrf.mxu0
  %v223 = vadd.f32 %v161, %v222
  %224 = vdwg.mxu0
  %v225 = vld [vmem:[%s7] sm:$0xf]
  %v226 = vld [vmem:[%s7 + $0x4] sm:$0xf]
  %v227 = vld [vmem:[%s7 + $0x8] sm:$0xf]
  %v228 = vld [vmem:[%s7 + $0xc] sm:$0xf]
  %v229 = vld [vmem:[%s7 + $0x10] sm:$0xf]
  %v230 = vld [vmem:[%s7 + $0x14] sm:$0xf]
  %v231 = vld [vmem:[%s7 + $0x18] sm:$0xf]
  %v232 = vld [vmem:[%s7 + $0x1c] sm:$0xf]
  %v233 = vld [vmem:[%s7 + $0x20] sm:$0xf]
  %v234 = vld [vmem:[%s7 + $0x24] sm:$0xf]
  %v235 = vld [vmem:[%s7 + $0x28] sm:$0xf]
  %v236 = vld [vmem:[%s7 + $0x2c] sm:$0xf]
  %v237 = vld [vmem:[%s7 + $0x30] sm:$0xf]
  %v238 = vld [vmem:[%s7 + $0x34] sm:$0xf]
  %v239 = vld [vmem:[%s7 + $0x38] sm:$0xf]
  %v240 = vld [vmem:[%s7 + $0x3c] sm:$0xf]
  %v241 = vld [vmem:[%s8] sm:$0x1]
  %v243 = vperm.slane %v241, 0
  %v261 = vunpack.c.l.b16 %v225
  %v262 = vunpack.c.l.b16 %v226
  %v263 = vunpack.c.l.b16 %v227
  %v264 = vunpack.c.l.b16 %v228
  %v265 = vunpack.c.l.b16 %v229
  %v266 = vunpack.c.l.b16 %v230
  %v267 = vunpack.c.l.b16 %v231
  %v268 = vunpack.c.l.b16 %v232
  %v269 = vunpack.c.l.b16 %v233
  %v270 = vunpack.c.l.b16 %v234
  %v271 = vunpack.c.l.b16 %v235
  %v272 = vunpack.c.l.b16 %v236
  %v273 = vunpack.c.l.b16 %v237
  %v274 = vunpack.c.l.b16 %v238
  %v275 = vunpack.c.l.b16 %v239
  %v276 = vunpack.c.l.b16 %v240
  %v277 = vpack.c.b16 %v262, %v261
  %v278 = vpack.c.b16 %v264, %v263
  %v279 = vpack.c.b16 %v266, %v265
  %v280 = vpack.c.b16 %v268, %v267
  %v281 = vpack.c.b16 %v270, %v269
  %v282 = vpack.c.b16 %v272, %v271
  %v283 = vpack.c.b16 %v274, %v273
  %v284 = vpack.c.b16 %v276, %v275
  %293 = vmatpush.bf16.msra.mxu0 %v284
  %294 = vmatpush.bf16.msra.mxu0 %v283
  %295 = vmatpush.bf16.msra.mxu0 %v282
  %296 = vmatpush.bf16.msra.mxu0 %v281
  %297 = vmatpush.bf16.msra.mxu0 %v280
  %298 = vmatpush.bf16.msra.mxu0 %v279
  %299 = vmatpush.bf16.msra.mxu0 %v278
  %300 = vmatpush.bf16.msra.mxu0 %v277
  %301 = vmatmul.bf16.gmra.mxu0 %v58
  %v302 = vpop.f32.mrf.mxu0
  %v303 = vadd.f32 %v243, %v302
  %v304 = vpop.f32.mrf.mxu0
  %v305 = vadd.f32 %v243, %v304
  %306 = vdwg.mxu0
  %v307 = vpack.c.bf16 %v305, %v303
  %v308 = vpack.c.bf16 %v142, %v141
  %v309 = vpack.c.bf16 %v223, %v221
  %vm310 = vcmask 261120
  %v312 = vsel %vm310, %v308, 0
  %v315 = vsel %vm310, %v309, 0
  %317 = vmatpush.bf16.xpose.msra.mxu0 0
  %318 = vmatpush.bf16.xpose.msra.mxu0 0
  %319 = vmatpush.bf16.xpose.msra.mxu0 0
  %320 = vmatpush.bf16.xpose.msra.mxu0 0
  %321 = vmatpush.bf16.xpose.msra.mxu0 0
  %322 = vmatpush.bf16.xpose.msra.mxu0 0
  %323 = vmatpush.bf16.xpose.msra.mxu0 0
  %324 = vmatpush.bf16.xpose.msra.mxu0 %v315
  %325 = vmatmul.bf16.gmra.mxu0 %v312
  %v326 = vpop.f32.mrf.mxu0
  %v327 = vadd.f32 %v55, %v326
  %v328 = vpop.f32.mrf.mxu0
  %v329 = vadd.f32 %v56, %v328
  %330 = vdwg.mxu0
  %vm331 = vcmask 130048
  %v332 = vsel %vm331, %v327, -inf
  %333 = vmax.xlane.f32.xlu0 %v332
  %v334 = vpop.xlane.xlu0 %333
  %v335 = vsel %vm331, %v329, -inf
  %336 = vmax.xlane.f32.xlu0 %v335
  %v337 = vpop.xlane.xlu0 %336
  %v338 = vsub.f32 %v327, %v334
  %v339 = vsub.f32 %v329, %v337
  %v340 = vmul.f32 %v338, 1.442695
  %v341 = vpow.pop %v340
  %v342 = vmul.f32 %v339, 1.442695
  %v343 = vpow.pop %v342
  %v344 = vsel %vm331, %v341, 0.0
  %345 = vadd.xlane.f32.xlu0 %v344
  %v346 = vpop.xlane.xlu0 %345
  %v347 = vsel %vm331, %v343, 0.0
  %348 = vadd.xlane.f32.xlu0 %v347
  %v349 = vpop.xlane.xlu0 %348
  %v350 = vrcp.pop %v346
  %v351 = vrcp.pop %v349
  %v352 = vmul.f32 %v341, %v350
  %v353 = vmul.f32 %v343, %v351
  %v354 = vpack.c.bf16 %v353, %v352
  %v356 = vsel %vm331, %v354, 0
  %358 = vmatpush.bf16.msra.mxu0 0
  %359 = vmatpush.bf16.msra.mxu0 0
  %360 = vmatpush.bf16.msra.mxu0 0
  %361 = vmatpush.bf16.msra.mxu0 0
  %362 = vmatpush.bf16.msra.mxu0 0
  %363 = vmatpush.bf16.msra.mxu0 0
  %364 = vmatpush.bf16.msra.mxu0 0
  %365 = vmatpush.bf16.msra.mxu0 %v307
  %366 = vmatmul.bf16.gmra.mxu0 %v356
  %v367 = vpop.f32.mrf.mxu0
  %v368 = vadd.f32 0.0, %v367
  %v369 = vpop.f32.mrf.mxu0
  %v370 = vadd.f32 0.0, %v369
  %371 = vdwg.mxu0
  %v372 = vpack.c.bf16 %v370, %v368
  %v373 = vld [vmem:[%s9] sm:$0xf]
  %v374 = vld [vmem:[%s9 + $0x4] sm:$0xf]
  %v375 = vld [vmem:[%s9 + $0x8] sm:$0xf]
  %v376 = vld [vmem:[%s9 + $0xc] sm:$0xf]
  %377 = vrot.lane.b32.xlu0 %v111, 96
  %v378 = vpop.permute.xlu0 %377
  %379 = vrot.lane.b32.xlu0 %v112, 96
  %v380 = vpop.permute.xlu0 %379
  %381 = vrot.lane.b32.xlu0 %v113, 96
  %v382 = vpop.permute.xlu0 %381
  %383 = vrot.lane.b32.xlu0 %v114, 96
  %v384 = vpop.permute.xlu0 %383
  %385 = vrot.lane.b32.xlu0 %v115, 96
  %v386 = vpop.permute.xlu0 %385
  %387 = vrot.lane.b32.xlu0 %v116, 96
  %v388 = vpop.permute.xlu0 %387
  %389 = vrot.lane.b32.xlu0 %v117, 96
  %v390 = vpop.permute.xlu0 %389
  %391 = vrot.lane.b32.xlu0 %v118, 96
  %v392 = vpop.permute.xlu0 %391
  %401 = vrot.lane.b32.xlu0 %v77, 96
  %v402 = vpop.permute.xlu0 %401
  %404 = vmatpush.bf16.msra.mxu0 %v392
  %405 = vmatpush.bf16.msra.mxu0 %v390
  %406 = vmatpush.bf16.msra.mxu0 %v388
  %407 = vmatpush.bf16.msra.mxu0 %v386
  %408 = vmatpush.bf16.msra.mxu0 %v384
  %409 = vmatpush.bf16.msra.mxu0 %v382
  %410 = vmatpush.bf16.msra.mxu0 %v380
  %411 = vmatpush.bf16.msra.mxu0 %v378
  %412 = vmatmul.bf16.gmra.mxu0 %v57
  %v413 = vpop.f32.mrf.mxu0
  %v414 = vadd.f32 %v402, %v413
  %v415 = vpop.f32.mrf.mxu0
  %v416 = vadd.f32 %v402, %v415
  %417 = vdwg.mxu0
  %v418 = vmul.f32 %v414, 0.17677669
  %v419 = vmul.f32 %v416, 0.17677669
  %420 = vrot.lane.b32.xlu0 %v195, 96
  %v421 = vpop.permute.xlu0 %420
  %422 = vrot.lane.b32.xlu0 %v196, 96
  %v423 = vpop.permute.xlu0 %422
  %424 = vrot.lane.b32.xlu0 %v197, 96
  %v425 = vpop.permute.xlu0 %424
  %426 = vrot.lane.b32.xlu0 %v198, 96
  %v427 = vpop.permute.xlu0 %426
  %428 = vrot.lane.b32.xlu0 %v199, 96
  %v429 = vpop.permute.xlu0 %428
  %430 = vrot.lane.b32.xlu0 %v200, 96
  %v431 = vpop.permute.xlu0 %430
  %432 = vrot.lane.b32.xlu0 %v201, 96
  %v433 = vpop.permute.xlu0 %432
  %434 = vrot.lane.b32.xlu0 %v202, 96
  %v435 = vpop.permute.xlu0 %434
  %444 = vrot.lane.b32.xlu0 %v161, 96
  %v445 = vpop.permute.xlu0 %444
  %447 = vmatpush.bf16.msra.mxu0 %v435
  %448 = vmatpush.bf16.msra.mxu0 %v433
  %449 = vmatpush.bf16.msra.mxu0 %v431
  %450 = vmatpush.bf16.msra.mxu0 %v429
  %451 = vmatpush.bf16.msra.mxu0 %v427
  %452 = vmatpush.bf16.msra.mxu0 %v425
  %453 = vmatpush.bf16.msra.mxu0 %v423
  %454 = vmatpush.bf16.msra.mxu0 %v421
  %455 = vmatmul.bf16.gmra.mxu0 %v58
  %v456 = vpop.f32.mrf.mxu0
  %v457 = vadd.f32 %v445, %v456
  %v458 = vpop.f32.mrf.mxu0
  %v459 = vadd.f32 %v445, %v458
  %460 = vdwg.mxu0
  %461 = vrot.lane.b32.xlu0 %v277, 96
  %v462 = vpop.permute.xlu0 %461
  %463 = vrot.lane.b32.xlu0 %v278, 96
  %v464 = vpop.permute.xlu0 %463
  %465 = vrot.lane.b32.xlu0 %v279, 96
  %v466 = vpop.permute.xlu0 %465
  %467 = vrot.lane.b32.xlu0 %v280, 96
  %v468 = vpop.permute.xlu0 %467
  %469 = vrot.lane.b32.xlu0 %v281, 96
  %v470 = vpop.permute.xlu0 %469
  %471 = vrot.lane.b32.xlu0 %v282, 96
  %v472 = vpop.permute.xlu0 %471
  %473 = vrot.lane.b32.xlu0 %v283, 96
  %v474 = vpop.permute.xlu0 %473
  %475 = vrot.lane.b32.xlu0 %v284, 96
  %v476 = vpop.permute.xlu0 %475
  %485 = vrot.lane.b32.xlu0 %v243, 96
  %v486 = vpop.permute.xlu0 %485
  %488 = vmatpush.bf16.msra.mxu0 %v476
  %489 = vmatpush.bf16.msra.mxu0 %v474
  %490 = vmatpush.bf16.msra.mxu0 %v472
  %491 = vmatpush.bf16.msra.mxu0 %v470
  %492 = vmatpush.bf16.msra.mxu0 %v468
  %493 = vmatpush.bf16.msra.mxu0 %v466
  %494 = vmatpush.bf16.msra.mxu0 %v464
  %495 = vmatpush.bf16.msra.mxu0 %v462
  %496 = vmatmul.bf16.gmra.mxu0 %v58
  %v497 = vpop.f32.mrf.mxu0
  %v498 = vadd.f32 %v486, %v497
  %v499 = vpop.f32.mrf.mxu0
  %v500 = vadd.f32 %v486, %v499
  %501 = vdwg.mxu0
  %v502 = vpack.c.bf16 %v500, %v498
  %v503 = vpack.c.bf16 %v419, %v418
  %v504 = vpack.c.bf16 %v459, %v457
  %v506 = vsel %vm310, %v503, 0
  %v509 = vsel %vm310, %v504, 0
  %511 = vmatpush.bf16.xpose.msra.mxu0 0
  %512 = vmatpush.bf16.xpose.msra.mxu0 0
  %513 = vmatpush.bf16.xpose.msra.mxu0 0
  %514 = vmatpush.bf16.xpose.msra.mxu0 0
  %515 = vmatpush.bf16.xpose.msra.mxu0 0
  %516 = vmatpush.bf16.xpose.msra.mxu0 0
  %517 = vmatpush.bf16.xpose.msra.mxu0 0
  %518 = vmatpush.bf16.xpose.msra.mxu0 %v509
  %519 = vmatmul.bf16.gmra.mxu0 %v506
  %v520 = vpop.f32.mrf.mxu0
  %v521 = vadd.f32 %v55, %v520
  %v522 = vpop.f32.mrf.mxu0
  %v523 = vadd.f32 %v56, %v522
  %524 = vdwg.mxu0
  %v525 = vsel %vm331, %v521, -inf
  %526 = vmax.xlane.f32.xlu0 %v525
  %v527 = vpop.xlane.xlu0 %526
  %v528 = vsel %vm331, %v523, -inf
  %529 = vmax.xlane.f32.xlu0 %v528
  %v530 = vpop.xlane.xlu0 %529
  %v531 = vsub.f32 %v521, %v527
  %v532 = vsub.f32 %v523, %v530
  %v533 = vmul.f32 %v531, 1.442695
  %v534 = vpow.pop %v533
  %v535 = vmul.f32 %v532, 1.442695
  %v536 = vpow.pop %v535
  %v537 = vsel %vm331, %v534, 0.0
  %538 = vadd.xlane.f32.xlu0 %v537
  %v539 = vpop.xlane.xlu0 %538
  %v540 = vsel %vm331, %v536, 0.0
  %541 = vadd.xlane.f32.xlu0 %v540
  %v542 = vpop.xlane.xlu0 %541
  %v543 = vrcp.pop %v539
  %v544 = vrcp.pop %v542
  %v545 = vmul.f32 %v534, %v543
  %v546 = vmul.f32 %v536, %v544
  %v547 = vpack.c.bf16 %v546, %v545
  %v549 = vsel %vm331, %v547, 0
  %551 = vmatpush.bf16.msra.mxu0 0
  %552 = vmatpush.bf16.msra.mxu0 0
  %553 = vmatpush.bf16.msra.mxu0 0
  %554 = vmatpush.bf16.msra.mxu0 0
  %555 = vmatpush.bf16.msra.mxu0 0
  %556 = vmatpush.bf16.msra.mxu0 0
  %557 = vmatpush.bf16.msra.mxu0 0
  %558 = vmatpush.bf16.msra.mxu0 %v502
  %559 = vmatmul.bf16.gmra.mxu0 %v549
  %v560 = vpop.f32.mrf.mxu0
  %v561 = vadd.f32 0.0, %v560
  %v562 = vpop.f32.mrf.mxu0
  %v563 = vadd.f32 0.0, %v562
  %564 = vdwg.mxu0
  %v565 = vpack.c.bf16 %v563, %v561
  %v566 = vld [vmem:[%s9 + $0x10] sm:$0xf]
  %v567 = vld [vmem:[%s9 + $0x14] sm:$0xf]
  %v568 = vld [vmem:[%s9 + $0x18] sm:$0xf]
  %v569 = vld [vmem:[%s9 + $0x1c] sm:$0xf]
  %v574 = vunpack.c.l.b16 %v566
  %v575 = vunpack.c.l.b16 %v567
  %v576 = vunpack.c.l.b16 %v568
  %v577 = vunpack.c.l.b16 %v569
  %v578 = vpack.c.b16 %v575, %v574
  %v579 = vpack.c.b16 %v577, %v576
  %v583 = vsel %vm310, %v565, 0
  %585 = vmatpush.bf16.msra.mxu0 0
  %586 = vmatpush.bf16.msra.mxu0 0
  %587 = vmatpush.bf16.msra.mxu0 0
  %588 = vmatpush.bf16.msra.mxu0 0
  %589 = vmatpush.bf16.msra.mxu0 0
  %590 = vmatpush.bf16.msra.mxu0 0
  %591 = vmatpush.bf16.msra.mxu0 %v579
  %592 = vmatpush.bf16.msra.mxu0 %v578
  %593 = vmatmul.bf16.gmra.mxu0 %v583
  %v594 = vpop.f32.mrf.mxu0
  %v595 = vadd.f32 0.0, %v594
  %v596 = vpop.f32.mrf.mxu0
  %v597 = vadd.f32 0.0, %v596
  %598 = vdwg.mxu0
  %v603 = vunpack.c.l.b16 %v373
  %v604 = vunpack.c.l.b16 %v374
  %v605 = vunpack.c.l.b16 %v375
  %v606 = vunpack.c.l.b16 %v376
  %v607 = vpack.c.b16 %v604, %v603
  %v608 = vpack.c.b16 %v606, %v605
  %v612 = vsel %vm310, %v372, 0
  %614 = vmatpush.bf16.msra.mxu0 0
  %615 = vmatpush.bf16.msra.mxu0 0
  %616 = vmatpush.bf16.msra.mxu0 0
  %617 = vmatpush.bf16.msra.mxu0 0
  %618 = vmatpush.bf16.msra.mxu0 0
  %619 = vmatpush.bf16.msra.mxu0 0
  %620 = vmatpush.bf16.msra.mxu0 %v608
  %621 = vmatpush.bf16.msra.mxu0 %v607
  %622 = vmatmul.bf16.gmra.mxu0 %v612
  %v623 = vpop.f32.mrf.mxu0
  %v624 = vadd.f32 %v595, %v623
  %v625 = vpop.f32.mrf.mxu0
  %v626 = vadd.f32 %v597, %v625
  %627 = vdwg.mxu0
  %628 = vrot.lane.b32.xlu0 %v111, 64
  %v629 = vpop.permute.xlu0 %628
  %630 = vrot.lane.b32.xlu0 %v112, 64
  %v631 = vpop.permute.xlu0 %630
  %632 = vrot.lane.b32.xlu0 %v113, 64
  %v633 = vpop.permute.xlu0 %632
  %634 = vrot.lane.b32.xlu0 %v114, 64
  %v635 = vpop.permute.xlu0 %634
  %636 = vrot.lane.b32.xlu0 %v115, 64
  %v637 = vpop.permute.xlu0 %636
  %638 = vrot.lane.b32.xlu0 %v116, 64
  %v639 = vpop.permute.xlu0 %638
  %640 = vrot.lane.b32.xlu0 %v117, 64
  %v641 = vpop.permute.xlu0 %640
  %642 = vrot.lane.b32.xlu0 %v118, 64
  %v643 = vpop.permute.xlu0 %642
  %652 = vrot.lane.b32.xlu0 %v77, 64
  %v653 = vpop.permute.xlu0 %652
  %655 = vmatpush.bf16.msra.mxu0 %v643
  %656 = vmatpush.bf16.msra.mxu0 %v641
  %657 = vmatpush.bf16.msra.mxu0 %v639
  %658 = vmatpush.bf16.msra.mxu0 %v637
  %659 = vmatpush.bf16.msra.mxu0 %v635
  %660 = vmatpush.bf16.msra.mxu0 %v633
  %661 = vmatpush.bf16.msra.mxu0 %v631
  %662 = vmatpush.bf16.msra.mxu0 %v629
  %663 = vmatmul.bf16.gmra.mxu0 %v57
  %v664 = vpop.f32.mrf.mxu0
  %v665 = vadd.f32 %v653, %v664
  %v666 = vpop.f32.mrf.mxu0
  %v667 = vadd.f32 %v653, %v666
  %668 = vdwg.mxu0
  %v669 = vmul.f32 %v665, 0.17677669
  %v670 = vmul.f32 %v667, 0.17677669
  %671 = vrot.lane.b32.xlu0 %v195, 64
  %v672 = vpop.permute.xlu0 %671
  %673 = vrot.lane.b32.xlu0 %v196, 64
  %v674 = vpop.permute.xlu0 %673
  %675 = vrot.lane.b32.xlu0 %v197, 64
  %v676 = vpop.permute.xlu0 %675
  %677 = vrot.lane.b32.xlu0 %v198, 64
  %v678 = vpop.permute.xlu0 %677
  %679 = vrot.lane.b32.xlu0 %v199, 64
  %v680 = vpop.permute.xlu0 %679
  %681 = vrot.lane.b32.xlu0 %v200, 64
  %v682 = vpop.permute.xlu0 %681
  %683 = vrot.lane.b32.xlu0 %v201, 64
  %v684 = vpop.permute.xlu0 %683
  %685 = vrot.lane.b32.xlu0 %v202, 64
  %v686 = vpop.permute.xlu0 %685
  %695 = vrot.lane.b32.xlu0 %v161, 64
  %v696 = vpop.permute.xlu0 %695
  %698 = vmatpush.bf16.msra.mxu0 %v686
  %699 = vmatpush.bf16.msra.mxu0 %v684
  %700 = vmatpush.bf16.msra.mxu0 %v682
  %701 = vmatpush.bf16.msra.mxu0 %v680
  %702 = vmatpush.bf16.msra.mxu0 %v678
  %703 = vmatpush.bf16.msra.mxu0 %v676
  %704 = vmatpush.bf16.msra.mxu0 %v674
  %705 = vmatpush.bf16.msra.mxu0 %v672
  %706 = vmatmul.bf16.gmra.mxu0 %v58
  %v707 = vpop.f32.mrf.mxu0
  %v708 = vadd.f32 %v696, %v707
  %v709 = vpop.f32.mrf.mxu0
  %v710 = vadd.f32 %v696, %v709
  %711 = vdwg.mxu0
  %712 = vrot.lane.b32.xlu0 %v277, 64
  %v713 = vpop.permute.xlu0 %712
  %714 = vrot.lane.b32.xlu0 %v278, 64
  %v715 = vpop.permute.xlu0 %714
  %716 = vrot.lane.b32.xlu0 %v279, 64
  %v717 = vpop.permute.xlu0 %716
  %718 = vrot.lane.b32.xlu0 %v280, 64
  %v719 = vpop.permute.xlu0 %718
  %720 = vrot.lane.b32.xlu0 %v281, 64
  %v721 = vpop.permute.xlu0 %720
  %722 = vrot.lane.b32.xlu0 %v282, 64
  %v723 = vpop.permute.xlu0 %722
  %724 = vrot.lane.b32.xlu0 %v283, 64
  %v725 = vpop.permute.xlu0 %724
  %726 = vrot.lane.b32.xlu0 %v284, 64
  %v727 = vpop.permute.xlu0 %726
  %736 = vrot.lane.b32.xlu0 %v243, 64
  %v737 = vpop.permute.xlu0 %736
  %739 = vmatpush.bf16.msra.mxu0 %v727
  %740 = vmatpush.bf16.msra.mxu0 %v725
  %741 = vmatpush.bf16.msra.mxu0 %v723
  %742 = vmatpush.bf16.msra.mxu0 %v721
  %743 = vmatpush.bf16.msra.mxu0 %v719
  %744 = vmatpush.bf16.msra.mxu0 %v717
  %745 = vmatpush.bf16.msra.mxu0 %v715
  %746 = vmatpush.bf16.msra.mxu0 %v713
  %747 = vmatmul.bf16.gmra.mxu0 %v58
  %v748 = vpop.f32.mrf.mxu0
  %v749 = vadd.f32 %v737, %v748
  %v750 = vpop.f32.mrf.mxu0
  %v751 = vadd.f32 %v737, %v750
  %752 = vdwg.mxu0
  %v753 = vpack.c.bf16 %v751, %v749
  %v754 = vpack.c.bf16 %v670, %v669
  %v755 = vpack.c.bf16 %v710, %v708
  %v757 = vsel %vm310, %v754, 0
  %v760 = vsel %vm310, %v755, 0
  %762 = vmatpush.bf16.xpose.msra.mxu0 0
  %763 = vmatpush.bf16.xpose.msra.mxu0 0
  %764 = vmatpush.bf16.xpose.msra.mxu0 0
  %765 = vmatpush.bf16.xpose.msra.mxu0 0
  %766 = vmatpush.bf16.xpose.msra.mxu0 0
  %767 = vmatpush.bf16.xpose.msra.mxu0 0
  %768 = vmatpush.bf16.xpose.msra.mxu0 0
  %769 = vmatpush.bf16.xpose.msra.mxu0 %v760
  %770 = vmatmul.bf16.gmra.mxu0 %v757
  %v771 = vpop.f32.mrf.mxu0
  %v772 = vadd.f32 %v55, %v771
  %v773 = vpop.f32.mrf.mxu0
  %v774 = vadd.f32 %v56, %v773
  %775 = vdwg.mxu0
  %v776 = vsel %vm331, %v772, -inf
  %777 = vmax.xlane.f32.xlu0 %v776
  %v778 = vpop.xlane.xlu0 %777
  %v779 = vsel %vm331, %v774, -inf
  %780 = vmax.xlane.f32.xlu0 %v779
  %v781 = vpop.xlane.xlu0 %780
  %v782 = vsub.f32 %v772, %v778
  %v783 = vsub.f32 %v774, %v781
  %v784 = vmul.f32 %v782, 1.442695
  %v785 = vpow.pop %v784
  %v786 = vmul.f32 %v783, 1.442695
  %v787 = vpow.pop %v786
  %v788 = vsel %vm331, %v785, 0.0
  %789 = vadd.xlane.f32.xlu0 %v788
  %v790 = vpop.xlane.xlu0 %789
  %v791 = vsel %vm331, %v787, 0.0
  %792 = vadd.xlane.f32.xlu0 %v791
  %v793 = vpop.xlane.xlu0 %792
  %v794 = vrcp.pop %v790
  %v795 = vrcp.pop %v793
  %v796 = vmul.f32 %v785, %v794
  %v797 = vmul.f32 %v787, %v795
  %v798 = vpack.c.bf16 %v797, %v796
  %v800 = vsel %vm331, %v798, 0
  %802 = vmatpush.bf16.msra.mxu0 0
  %803 = vmatpush.bf16.msra.mxu0 0
  %804 = vmatpush.bf16.msra.mxu0 0
  %805 = vmatpush.bf16.msra.mxu0 0
  %806 = vmatpush.bf16.msra.mxu0 0
  %807 = vmatpush.bf16.msra.mxu0 0
  %808 = vmatpush.bf16.msra.mxu0 0
  %809 = vmatpush.bf16.msra.mxu0 %v753
  %810 = vmatmul.bf16.gmra.mxu0 %v800
  %v811 = vpop.f32.mrf.mxu0
  %v812 = vadd.f32 0.0, %v811
  %v813 = vpop.f32.mrf.mxu0
  %v814 = vadd.f32 0.0, %v813
  %815 = vdwg.mxu0
  %v816 = vpack.c.bf16 %v814, %v812
  %v817 = vld [vmem:[%s9 + $0x20] sm:$0xf]
  %v818 = vld [vmem:[%s9 + $0x24] sm:$0xf]
  %v819 = vld [vmem:[%s9 + $0x28] sm:$0xf]
  %v820 = vld [vmem:[%s9 + $0x2c] sm:$0xf]
  %v825 = vunpack.c.l.b16 %v817
  %v826 = vunpack.c.l.b16 %v818
  %v827 = vunpack.c.l.b16 %v819
  %v828 = vunpack.c.l.b16 %v820
  %v829 = vpack.c.b16 %v826, %v825
  %v830 = vpack.c.b16 %v828, %v827
  %v834 = vsel %vm310, %v816, 0
  %836 = vmatpush.bf16.msra.mxu0 0
  %837 = vmatpush.bf16.msra.mxu0 0
  %838 = vmatpush.bf16.msra.mxu0 0
  %839 = vmatpush.bf16.msra.mxu0 0
  %840 = vmatpush.bf16.msra.mxu0 0
  %841 = vmatpush.bf16.msra.mxu0 0
  %842 = vmatpush.bf16.msra.mxu0 %v830
  %843 = vmatpush.bf16.msra.mxu0 %v829
  %844 = vmatmul.bf16.gmra.mxu0 %v834
  %v845 = vpop.f32.mrf.mxu0
  %v846 = vadd.f32 0.0, %v845
  %v847 = vpop.f32.mrf.mxu0
  %v848 = vadd.f32 0.0, %v847
  %849 = vdwg.mxu0
  %v850 = vadd.f32 %v624, %v846
  %v851 = vadd.f32 %v626, %v848
  %852 = vrot.lane.b32.xlu0 %v111, 32
  %v853 = vpop.permute.xlu0 %852
  %854 = vrot.lane.b32.xlu0 %v112, 32
  %v855 = vpop.permute.xlu0 %854
  %856 = vrot.lane.b32.xlu0 %v113, 32
  %v857 = vpop.permute.xlu0 %856
  %858 = vrot.lane.b32.xlu0 %v114, 32
  %v859 = vpop.permute.xlu0 %858
  %860 = vrot.lane.b32.xlu0 %v115, 32
  %v861 = vpop.permute.xlu0 %860
  %862 = vrot.lane.b32.xlu0 %v116, 32
  %v863 = vpop.permute.xlu0 %862
  %864 = vrot.lane.b32.xlu0 %v117, 32
  %v865 = vpop.permute.xlu0 %864
  %866 = vrot.lane.b32.xlu0 %v118, 32
  %v867 = vpop.permute.xlu0 %866
  %876 = vrot.lane.b32.xlu0 %v77, 32
  %v877 = vpop.permute.xlu0 %876
  %879 = vmatpush.bf16.msra.mxu0 %v867
  %880 = vmatpush.bf16.msra.mxu0 %v865
  %881 = vmatpush.bf16.msra.mxu0 %v863
  %882 = vmatpush.bf16.msra.mxu0 %v861
  %883 = vmatpush.bf16.msra.mxu0 %v859
  %884 = vmatpush.bf16.msra.mxu0 %v857
  %885 = vmatpush.bf16.msra.mxu0 %v855
  %886 = vmatpush.bf16.msra.mxu0 %v853
  %887 = vmatmul.bf16.gmra.mxu0 %v57
  %v888 = vpop.f32.mrf.mxu0
  %v889 = vadd.f32 %v877, %v888
  %v890 = vpop.f32.mrf.mxu0
  %v891 = vadd.f32 %v877, %v890
  %892 = vdwg.mxu0
  %v893 = vmul.f32 %v889, 0.17677669
  %v894 = vmul.f32 %v891, 0.17677669
  %895 = vrot.lane.b32.xlu0 %v195, 32
  %v896 = vpop.permute.xlu0 %895
  %897 = vrot.lane.b32.xlu0 %v196, 32
  %v898 = vpop.permute.xlu0 %897
  %899 = vrot.lane.b32.xlu0 %v197, 32
  %v900 = vpop.permute.xlu0 %899
  %901 = vrot.lane.b32.xlu0 %v198, 32
  %v902 = vpop.permute.xlu0 %901
  %903 = vrot.lane.b32.xlu0 %v199, 32
  %v904 = vpop.permute.xlu0 %903
  %905 = vrot.lane.b32.xlu0 %v200, 32
  %v906 = vpop.permute.xlu0 %905
  %907 = vrot.lane.b32.xlu0 %v201, 32
  %v908 = vpop.permute.xlu0 %907
  %909 = vrot.lane.b32.xlu0 %v202, 32
  %v910 = vpop.permute.xlu0 %909
  %919 = vrot.lane.b32.xlu0 %v161, 32
  %v920 = vpop.permute.xlu0 %919
  %922 = vmatpush.bf16.msra.mxu0 %v910
  %923 = vmatpush.bf16.msra.mxu0 %v908
  %924 = vmatpush.bf16.msra.mxu0 %v906
  %925 = vmatpush.bf16.msra.mxu0 %v904
  %926 = vmatpush.bf16.msra.mxu0 %v902
  %927 = vmatpush.bf16.msra.mxu0 %v900
  %928 = vmatpush.bf16.msra.mxu0 %v898
  %929 = vmatpush.bf16.msra.mxu0 %v896
  %930 = vmatmul.bf16.gmra.mxu0 %v58
  %v931 = vpop.f32.mrf.mxu0
  %v932 = vadd.f32 %v920, %v931
  %v933 = vpop.f32.mrf.mxu0
  %v934 = vadd.f32 %v920, %v933
  %935 = vdwg.mxu0
  %936 = vrot.lane.b32.xlu0 %v277, 32
  %v937 = vpop.permute.xlu0 %936
  %938 = vrot.lane.b32.xlu0 %v278, 32
  %v939 = vpop.permute.xlu0 %938
  %940 = vrot.lane.b32.xlu0 %v279, 32
  %v941 = vpop.permute.xlu0 %940
  %942 = vrot.lane.b32.xlu0 %v280, 32
  %v943 = vpop.permute.xlu0 %942
  %944 = vrot.lane.b32.xlu0 %v281, 32
  %v945 = vpop.permute.xlu0 %944
  %946 = vrot.lane.b32.xlu0 %v282, 32
  %v947 = vpop.permute.xlu0 %946
  %948 = vrot.lane.b32.xlu0 %v283, 32
  %v949 = vpop.permute.xlu0 %948
  %950 = vrot.lane.b32.xlu0 %v284, 32
  %v951 = vpop.permute.xlu0 %950
  %960 = vrot.lane.b32.xlu0 %v243, 32
  %v961 = vpop.permute.xlu0 %960
  %963 = vmatpush.bf16.msra.mxu0 %v951
  %964 = vmatpush.bf16.msra.mxu0 %v949
  %965 = vmatpush.bf16.msra.mxu0 %v947
  %966 = vmatpush.bf16.msra.mxu0 %v945
  %967 = vmatpush.bf16.msra.mxu0 %v943
  %968 = vmatpush.bf16.msra.mxu0 %v941
  %969 = vmatpush.bf16.msra.mxu0 %v939
  %970 = vmatpush.bf16.msra.mxu0 %v937
  %971 = vmatmul.bf16.gmra.mxu0 %v58
  %v972 = vpop.f32.mrf.mxu0
  %v973 = vadd.f32 %v961, %v972
  %v974 = vpop.f32.mrf.mxu0
  %v975 = vadd.f32 %v961, %v974
  %976 = vdwg.mxu0
  %v977 = vpack.c.bf16 %v975, %v973
  %v978 = vpack.c.bf16 %v894, %v893
  %v979 = vpack.c.bf16 %v934, %v932
  %v981 = vsel %vm310, %v978, 0
  %v984 = vsel %vm310, %v979, 0
  %986 = vmatpush.bf16.xpose.msra.mxu0 0
  %987 = vmatpush.bf16.xpose.msra.mxu0 0
  %988 = vmatpush.bf16.xpose.msra.mxu0 0
  %989 = vmatpush.bf16.xpose.msra.mxu0 0
  %990 = vmatpush.bf16.xpose.msra.mxu0 0
  %991 = vmatpush.bf16.xpose.msra.mxu0 0
  %992 = vmatpush.bf16.xpose.msra.mxu0 0
  %993 = vmatpush.bf16.xpose.msra.mxu0 %v984
  %994 = vmatmul.bf16.gmra.mxu0 %v981
  %v995 = vpop.f32.mrf.mxu0
  %v996 = vadd.f32 %v55, %v995
  %v997 = vpop.f32.mrf.mxu0
  %v998 = vadd.f32 %v56, %v997
  %999 = vdwg.mxu0
  %v1000 = vsel %vm331, %v996, -inf
  %1001 = vmax.xlane.f32.xlu0 %v1000
  %v1002 = vpop.xlane.xlu0 %1001
  %v1003 = vsel %vm331, %v998, -inf
  %1004 = vmax.xlane.f32.xlu0 %v1003
  %v1005 = vpop.xlane.xlu0 %1004
  %v1006 = vsub.f32 %v996, %v1002
  %v1007 = vsub.f32 %v998, %v1005
  %v1008 = vmul.f32 %v1006, 1.442695
  %v1009 = vpow.pop %v1008
  %v1010 = vmul.f32 %v1007, 1.442695
  %v1011 = vpow.pop %v1010
  %v1012 = vsel %vm331, %v1009, 0.0
  %1013 = vadd.xlane.f32.xlu0 %v1012
  %v1014 = vpop.xlane.xlu0 %1013
  %v1015 = vsel %vm331, %v1011, 0.0
  %1016 = vadd.xlane.f32.xlu0 %v1015
  %v1017 = vpop.xlane.xlu0 %1016
  %v1018 = vrcp.pop %v1014
  %v1019 = vrcp.pop %v1017
  %v1020 = vmul.f32 %v1009, %v1018
  %v1021 = vmul.f32 %v1011, %v1019
  %v1022 = vpack.c.bf16 %v1021, %v1020
  %v1024 = vsel %vm331, %v1022, 0
  %1026 = vmatpush.bf16.msra.mxu0 0
  %1027 = vmatpush.bf16.msra.mxu0 0
  %1028 = vmatpush.bf16.msra.mxu0 0
  %1029 = vmatpush.bf16.msra.mxu0 0
  %1030 = vmatpush.bf16.msra.mxu0 0
  %1031 = vmatpush.bf16.msra.mxu0 0
  %1032 = vmatpush.bf16.msra.mxu0 0
  %1033 = vmatpush.bf16.msra.mxu0 %v977
  %1034 = vmatmul.bf16.gmra.mxu0 %v1024
  %v1035 = vpop.f32.mrf.mxu0
  %v1036 = vadd.f32 0.0, %v1035
  %v1037 = vpop.f32.mrf.mxu0
  %v1038 = vadd.f32 0.0, %v1037
  %1039 = vdwg.mxu0
  %v1040 = vpack.c.bf16 %v1038, %v1036
  %v1041 = vld [vmem:[%s9 + $0x30] sm:$0xf]
  %v1042 = vld [vmem:[%s9 + $0x34] sm:$0xf]
  %v1043 = vld [vmem:[%s9 + $0x38] sm:$0xf]
  %v1044 = vld [vmem:[%s9 + $0x3c] sm:$0xf]
  %v1049 = vunpack.c.l.b16 %v1041
  %v1050 = vunpack.c.l.b16 %v1042
  %v1051 = vunpack.c.l.b16 %v1043
  %v1052 = vunpack.c.l.b16 %v1044
  %v1053 = vpack.c.b16 %v1050, %v1049
  %v1054 = vpack.c.b16 %v1052, %v1051
  %v1058 = vsel %vm310, %v1040, 0
  %1060 = vmatpush.bf16.msra.mxu0 0
  %1061 = vmatpush.bf16.msra.mxu0 0
  %1062 = vmatpush.bf16.msra.mxu0 0
  %1063 = vmatpush.bf16.msra.mxu0 0
  %1064 = vmatpush.bf16.msra.mxu0 0
  %1065 = vmatpush.bf16.msra.mxu0 0
  %1066 = vmatpush.bf16.msra.mxu0 %v1054
  %1067 = vmatpush.bf16.msra.mxu0 %v1053
  %1068 = vmatmul.bf16.gmra.mxu0 %v1058
  %v1069 = vpop.f32.mrf.mxu0
  %v1070 = vadd.f32 0.0, %v1069
  %v1071 = vpop.f32.mrf.mxu0
  %v1072 = vadd.f32 0.0, %v1071
  %1073 = vdwg.mxu0
  %v1074 = vadd.f32 %v850, %v1070
  %v1075 = vadd.f32 %v851, %v1072
  %v1076 = vld [vmem:[%s10] sm:$0x1]
  %v1078 = vperm.slane %v1076, 0
  %v1080 = vadd.f32 %v1074, %v1078
  %v1081 = vadd.f32 %v1075, %v1078
  %v1082 = vpack.c.bf16 %v1081, %v1080
  %v1083 = vld [vmem:[%s11] sm:$0xf]
  %v1084 = vld [vmem:[%s11 + $0x4] sm:$0xf]
  %v1085 = vld [vmem:[%s11 + $0x8] sm:$0xf]
  %v1086 = vld [vmem:[%s11 + $0xc] sm:$0xf]
  %v1087 = vld [vmem:[%s11 + $0x10] sm:$0xf]
  %v1088 = vld [vmem:[%s11 + $0x14] sm:$0xf]
  %v1089 = vld [vmem:[%s11 + $0x18] sm:$0xf]
  %v1090 = vld [vmem:[%s11 + $0x1c] sm:$0xf]
  %v1091 = vld [vmem:[%s11 + $0x20] sm:$0xf]
  %v1092 = vld [vmem:[%s11 + $0x24] sm:$0xf]
  %v1093 = vld [vmem:[%s11 + $0x28] sm:$0xf]
  %v1094 = vld [vmem:[%s11 + $0x2c] sm:$0xf]
  %v1095 = vld [vmem:[%s11 + $0x30] sm:$0xf]
  %v1096 = vld [vmem:[%s11 + $0x34] sm:$0xf]
  %v1097 = vld [vmem:[%s11 + $0x38] sm:$0xf]
  %v1098 = vld [vmem:[%s11 + $0x3c] sm:$0xf]
  %v1099 = vld [vmem:[%s12] sm:$0x1]
  %v1101 = vperm.slane %v1099, 0
  %v1119 = vunpack.c.l.b16 %v1083
  %v1120 = vunpack.c.l.b16 %v1084
  %v1121 = vunpack.c.l.b16 %v1085
  %v1122 = vunpack.c.l.b16 %v1086
  %v1123 = vunpack.c.l.b16 %v1087
  %v1124 = vunpack.c.l.b16 %v1088
  %v1125 = vunpack.c.l.b16 %v1089
  %v1126 = vunpack.c.l.b16 %v1090
  %v1127 = vunpack.c.l.b16 %v1091
  %v1128 = vunpack.c.l.b16 %v1092
  %v1129 = vunpack.c.l.b16 %v1093
  %v1130 = vunpack.c.l.b16 %v1094
  %v1131 = vunpack.c.l.b16 %v1095
  %v1132 = vunpack.c.l.b16 %v1096
  %v1133 = vunpack.c.l.b16 %v1097
  %v1134 = vunpack.c.l.b16 %v1098
  %v1135 = vpack.c.b16 %v1120, %v1119
  %v1136 = vpack.c.b16 %v1122, %v1121
  %v1137 = vpack.c.b16 %v1124, %v1123
  %v1138 = vpack.c.b16 %v1126, %v1125
  %v1139 = vpack.c.b16 %v1128, %v1127
  %v1140 = vpack.c.b16 %v1130, %v1129
  %v1141 = vpack.c.b16 %v1132, %v1131
  %v1142 = vpack.c.b16 %v1134, %v1133
  %1151 = vmatpush.bf16.msra.mxu0 %v1142
  %1152 = vmatpush.bf16.msra.mxu0 %v1141
  %1153 = vmatpush.bf16.msra.mxu0 %v1140
  %1154 = vmatpush.bf16.msra.mxu0 %v1139
  %1155 = vmatpush.bf16.msra.mxu0 %v1138
  %1156 = vmatpush.bf16.msra.mxu0 %v1137
  %1157 = vmatpush.bf16.msra.mxu0 %v1136
  %1158 = vmatpush.bf16.msra.mxu0 %v1135
  %1159 = vmatmul.bf16.gmra.mxu0 %v1082
  %v1160 = vpop.f32.mrf.mxu0
  %v1161 = vadd.f32 %v1101, %v1160
  %v1162 = vpop.f32.mrf.mxu0
  %v1163 = vadd.f32 %v1101, %v1162
  %1164 = vdwg.mxu0
  %v1165 = vadd.f32 %v1161, %v53
  %v1166 = vadd.f32 %v1163, %v54
  %v1167 = vpack.c.bf16 %v1166, %v1165
  %v1168 = vld [vmem:[%s13] sm:$0xf]
  %v1169 = vld [vmem:[%s13 + $0x4] sm:$0xf]
  %v1170 = vld [vmem:[%s13 + $0x8] sm:$0xf]
  %v1171 = vld [vmem:[%s13 + $0xc] sm:$0xf]
  %v1172 = vld [vmem:[%s13 + $0x10] sm:$0xf]
  %v1173 = vld [vmem:[%s13 + $0x14] sm:$0xf]
  %v1174 = vld [vmem:[%s13 + $0x18] sm:$0xf]
  %v1175 = vld [vmem:[%s13 + $0x1c] sm:$0xf]
  %v1176 = vld [vmem:[%s13 + $0x20] sm:$0xf]
  %v1177 = vld [vmem:[%s13 + $0x24] sm:$0xf]
  %v1178 = vld [vmem:[%s13 + $0x28] sm:$0xf]
  %v1179 = vld [vmem:[%s13 + $0x2c] sm:$0xf]
  %v1180 = vld [vmem:[%s13 + $0x30] sm:$0xf]
  %v1181 = vld [vmem:[%s13 + $0x34] sm:$0xf]
  %v1182 = vld [vmem:[%s13 + $0x38] sm:$0xf]
  %v1183 = vld [vmem:[%s13 + $0x3c] sm:$0xf]
  %v1184 = vld [vmem:[%s14] sm:$0x1]
  %v1186 = vperm.slane %v1184, 0
  %v1204 = vunpack.c.l.b16 %v1168
  %v1205 = vunpack.c.l.b16 %v1169
  %v1206 = vunpack.c.l.b16 %v1170
  %v1207 = vunpack.c.l.b16 %v1171
  %v1208 = vunpack.c.l.b16 %v1172
  %v1209 = vunpack.c.l.b16 %v1173
  %v1210 = vunpack.c.l.b16 %v1174
  %v1211 = vunpack.c.l.b16 %v1175
  %v1212 = vunpack.c.l.b16 %v1176
  %v1213 = vunpack.c.l.b16 %v1177
  %v1214 = vunpack.c.l.b16 %v1178
  %v1215 = vunpack.c.l.b16 %v1179
  %v1216 = vunpack.c.l.b16 %v1180
  %v1217 = vunpack.c.l.b16 %v1181
  %v1218 = vunpack.c.l.b16 %v1182
  %v1219 = vunpack.c.l.b16 %v1183
  %v1220 = vpack.c.b16 %v1205, %v1204
  %v1221 = vpack.c.b16 %v1207, %v1206
  %v1222 = vpack.c.b16 %v1209, %v1208
  %v1223 = vpack.c.b16 %v1211, %v1210
  %v1224 = vpack.c.b16 %v1213, %v1212
  %v1225 = vpack.c.b16 %v1215, %v1214
  %v1226 = vpack.c.b16 %v1217, %v1216
  %v1227 = vpack.c.b16 %v1219, %v1218
  %1236 = vmatpush.bf16.msra.mxu0 %v1227
  %1237 = vmatpush.bf16.msra.mxu0 %v1226
  %1238 = vmatpush.bf16.msra.mxu0 %v1225
  %1239 = vmatpush.bf16.msra.mxu0 %v1224
  %1240 = vmatpush.bf16.msra.mxu0 %v1223
  %1241 = vmatpush.bf16.msra.mxu0 %v1222
  %1242 = vmatpush.bf16.msra.mxu0 %v1221
  %1243 = vmatpush.bf16.msra.mxu0 %v1220
  %1244 = vmatmul.bf16.gmra.mxu0 %v1167
  %v1245 = vpop.f32.mrf.mxu0
  %v1246 = vadd.f32 %v1186, %v1245
  %v1247 = vpop.f32.mrf.mxu0
  %v1248 = vadd.f32 %v1186, %v1247
  %1249 = vdwg.mxu0
  %1250 = vst [vmem:[%s15] sm:$0xff] %v1246
  %1251 = vst [vmem:[%s15 + $0x8] sm:$0xff] %v1248
  // Predicated region
  $region62: #{lm_concat_rgcn_attn_forward.7} parent=0 // pred_check
    _
  $region63: #{lm_concat_rgcn_attn_forward.7} parent=0 // pred_check_branch
    %1253 = sbr.rel (0) target = $region65
  $region64: #{lm_concat_rgcn_attn_forward.7} parent=0 // pred_region
    _
  $region65: #{lm_concat_rgcn_attn_forward.7} parent=0 // pred_fallthru
    _
  // Predicated region
  $region66: #{lm_concat_rgcn_attn_forward.7} parent=0 // pred_check
    _
  $region67: #{lm_concat_rgcn_attn_forward.7} parent=0 // pred_check_branch
    %1255 = sbr.rel (0) target = $region69
  $region68: #{lm_concat_rgcn_attn_forward.7} parent=0 // pred_region
    _
  $region69: #{lm_concat_rgcn_attn_forward.7} parent=0 // pred_fallthru
    _

</llo_original>
